<compile_context>
chip_gen: v7x
topology: tpu7x:2x2x1
jax: 0.10.0
libtpu: 0.0.40
codegen_flags: <defaults>
</compile_context>

<pallas_src>
import functools

import jax
import jax.numpy as jnp
import numpy as np
from jax.experimental import pallas as pl
from jax.experimental.pallas import tpu as pltpu

_LN_EPS = 1e-5
_NEG_INF = -1e30


# ---------------------------------------------------------------------------
# helpers
# ---------------------------------------------------------------------------
def _seq_tile(s, max_tile=128):
    """Largest tile <= max_tile dividing s; prefer multiples of 32 (int8 masks)."""
    if s <= max_tile:
        return s
    for step in (32, 8):
        start = max_tile - (max_tile % step)
        for t in range(start, 0, -step):
            if t > 0 and s % t == 0:
                return t
    return s


def _vmem_limit_bytes(est):
    """Scoped-VMEM request: 2x headroom, floor 32 MiB, cap 90% of physical VMEM."""
    try:
        cap = int(getattr(pltpu.get_tpu_info(), "vmem_capacity_bytes", 0)) or (64 << 20)
    except Exception:  # pragma: no cover - defensive
        cap = 64 << 20
    return int(min(int(cap * 0.9), max(32 << 20, 2 * est)))


def _layer_norm(x, gamma, beta, eps):
    mean = jnp.mean(x, axis=-1, keepdims=True)
    var = jnp.mean(jnp.square(x - mean), axis=-1, keepdims=True)
    return (x - mean) * jax.lax.rsqrt(var + eps) * gamma + beta


def _project_kv(x_bf16, wk, bk, wv, bv, n_head, head_dim):
    """(S, D) bf16 -> head-batched (H, S, hd) bf16 K and V projections."""
    s = x_bf16.shape[0]
    kp = jnp.dot(x_bf16, wk, preferred_element_type=jnp.float32) + bk
    vp = jnp.dot(x_bf16, wv, preferred_element_type=jnp.float32) + bv
    kh = kp.astype(jnp.bfloat16).reshape(s, n_head, head_dim).transpose(1, 0, 2)
    vh = vp.astype(jnp.bfloat16).reshape(s, n_head, head_dim).transpose(1, 0, 2)
    return kh, vh


def _attn_sublayer(x, kh, vh, mask, wq, bq, wo, bo, gamma, beta,
                   *, n_head, head_dim, ln_eps):
    """One MultiHead_revise sub-layer on a (TQ, D) f32 query tile.

    wq / bq arrive pre-scaled by 1/(sqrt(head_dim)+1e-8) (folded outside the
    kernel).  kh / vh are cached head-batched (H, Sk, hd) bf16 projections.
    """
    tq, model_dim = x.shape
    qp = jnp.dot(x.astype(jnp.bfloat16), wq, preferred_element_type=jnp.float32) + bq
    qh = qp.astype(jnp.bfloat16).reshape(tq, n_head, head_dim).transpose(1, 0, 2)

    # Head-batched scores (H, TQ, Sk), f32 accumulation on the MXU.
    scores = jnp.einsum("hqd,hkd->hqk", qh, kh, preferred_element_type=jnp.float32)
    scores = jnp.where(mask[None, :, :] != 0, jnp.float32(_NEG_INF), scores)

    # Explicit softmax; the divide goes to the EUP via approx reciprocal.
    m = jnp.max(scores, axis=-1, keepdims=True)
    p = jnp.exp(scores - m)
    l = jnp.sum(p, axis=-1, keepdims=True)
    attn = p * pl.reciprocal(l, approx=True)

    ctx = jnp.einsum("hqk,hkd->hqd", attn.astype(jnp.bfloat16), vh,
                     preferred_element_type=jnp.float32)
    ctx = ctx.astype(jnp.bfloat16).transpose(1, 0, 2).reshape(tq, model_dim)

    o = jnp.dot(ctx, wo, preferred_element_type=jnp.float32) + bo
    return _layer_norm(x + o, gamma, beta, ln_eps)


# ---------------------------------------------------------------------------
# fused decoder-layer kernel: self-attn + cross-attn + FFN (+res+LN each)
# ---------------------------------------------------------------------------
def _decoder_layer_kernel(
        # inputs
        yzq_ref, yz_ref, xz_ref, la_ref, pad_ref,
        wq0, bq0, wk0, bk0, wv0, bv0, wo0, bo0, g0, be0,
        wq1, bq1, wk1, bk1, wv1, bv1, wo1, bo1, g1, be1,
        w1, b1, w2, b2, g2, be2,
        # output
        out_ref,
        # scratch
        k0_ref, v0_ref, k1_ref, v1_ref,
        *, n_head, head_dim, ln_eps):
    qt = pl.program_id(1)

    # K/V projections for BOTH attention sub-layers are computed once per batch
    # element (q-tile 0, the q-tile axis is the innermost sequential axis) and
    # cached in VMEM scratch as head-batched bf16; every query tile reuses them.
    @pl.when(qt == 0)
    def _():
        kh, vh = _project_kv(yz_ref[...].astype(jnp.bfloat16),
                             wk0[...], bk0[...], wv0[...], bv0[...],
                             n_head, head_dim)
        k0_ref[...] = kh
        v0_ref[...] = vh
        kh, vh = _project_kv(xz_ref[...].astype(jnp.bfloat16),
                             wk1[...], bk1[...], wv1[...], bv1[...],
                             n_head, head_dim)
        k1_ref[...] = kh
        v1_ref[...] = vh

    x = yzq_ref[...]                                    # (TQ, D) f32 residual

    # 1) masked self-attention + residual + LayerNorm
    x = _attn_sublayer(x, k0_ref[...], v0_ref[...], la_ref[...],
                       wq0[...], bq0[...], wo0[...], bo0[...], g0[...], be0[...],
                       n_head=n_head, head_dim=head_dim, ln_eps=ln_eps)
    # 2) cross-attention over encoder output + residual + LayerNorm
    x = _attn_sublayer(x, k1_ref[...], v1_ref[...], pad_ref[...],
                       wq1[...], bq1[...], wo1[...], bo1[...], g1[...], be1[...],
                       n_head=n_head, head_dim=head_dim, ln_eps=ln_eps)
    # 3) position-wise FFN + residual + LayerNorm
    h = jnp.dot(x.astype(jnp.bfloat16), w1[...],
                preferred_element_type=jnp.float32) + b1[...]
    h = jnp.maximum(h, 0.0)
    o = jnp.dot(h.astype(jnp.bfloat16), w2[...],
                preferred_element_type=jnp.float32) + b2[...]
    out_ref[...] = _layer_norm(x + o, g2[...], be2[...], ln_eps).astype(out_ref.dtype)


def decoder_layer_pallas(yz, xz, la_mask, pad_mask, lp, *, n_head,
                         ln_eps=_LN_EPS, q_tile=128):
    """One DecoderLayer_revise forward.  yz: (B,Sy,D) f32, xz: (B,Sx,D) f32.
    Masks are 1 == masked; shape (Sq,Sk) (shared) or (B,Sq,Sk) (per-batch)."""
    B, Sy, D = yz.shape
    Sx = xz.shape[1]
    head_dim = D // n_head
    TQ = _seq_tile(Sy, q_tile)
    n_qt = Sy // TQ
    dff = lp["ffn"]["w1"].shape[1]

    # int8 masks -> 4x less mask DMA / VMEM than f32.
    la_mask = la_mask.astype(jnp.int8)
    pad_mask = pad_mask.astype(jnp.int8)

    def mask_spec(m, sk):
        if m.ndim == 2:                       # shared (e.g. causal) mask
            return pl.BlockSpec((TQ, sk), lambda b, t: (t, 0))
        return pl.BlockSpec((None, TQ, sk), lambda b, t: (b, t, 0))

    # Fold 1/(sqrt(dk)+1e-8) into the Q projection parameters (host/XLA side,
    # once per layer call) instead of scaling inside the kernel.
    scale = 1.0 / (np.sqrt(float(head_dim)) + 1e-8)

    def prep_mh(p):
        return dict(p,
                    wq=(p["wq"].astype(jnp.float32) * scale).astype(jnp.bfloat16),
                    bq=p["bq"] * scale)

    mh0, mh1, ffn = prep_mh(lp["mh0"]), prep_mh(lp["mh1"]), lp["ffn"]

    q_spec = pl.BlockSpec((None, TQ, D), lambda b, t: (b, t, 0))
    yz_full = pl.BlockSpec((None, Sy, D), lambda b, t: (b, 0, 0))
    xz_full = pl.BlockSpec((None, Sx, D), lambda b, t: (b, 0, 0))
    w_dd = pl.BlockSpec((D, D), lambda b, t: (0, 0))
    vec_d = pl.BlockSpec((1, D), lambda b, t: (0, 0))
    w1_s = pl.BlockSpec((D, dff), lambda b, t: (0, 0))
    vec_f = pl.BlockSpec((1, dff), lambda b, t: (0, 0))
    w2_s = pl.BlockSpec((dff, D), lambda b, t: (0, 0))
    out_spec = pl.BlockSpec((None, TQ, D), lambda b, t: (b, t, 0))

    mh_specs = [w_dd, vec_d, w_dd, vec_d, w_dd, vec_d, w_dd, vec_d, vec_d, vec_d]
    ffn_specs = [w1_s, vec_f, w2_s, vec_d, vec_d, vec_d]

    kernel = functools.partial(_decoder_layer_kernel, n_head=n_head,
                               head_dim=head_dim, ln_eps=ln_eps)

    est = (2 * TQ * D * 4 + 2 * Sy * D * 4 + 2 * Sx * D * 4     # activation inputs
           + 2 * TQ * (Sy + Sx)                                 # int8 mask tiles
           + 2 * (8 * D * D * 2 + 12 * D * 4)                   # two MHA weight sets
           + 2 * (2 * D * dff * 2 + (dff + 3 * D) * 4)          # FFN weights
           + 2 * TQ * D * 4                                     # output block
           + 2 * (Sy + Sx) * D * 2                              # bf16 K/V scratch
           + 4 * n_head * TQ * max(Sy, Sx) * 4                  # live scores/attn
           + 3 * TQ * dff * 4)                                  # FFN hidden

    mh_args = lambda p: (p["wq"], p["bq"], p["wk"], p["bk"], p["wv"], p["bv"],
                         p["wo"], p["bo"], p["gamma"], p["beta"])

    return pl.pallas_call(
        kernel,
        out_shape=jax.ShapeDtypeStruct((B, Sy, D), jnp.float32),
        grid_spec=pltpu.PrefetchScalarGridSpec(
            num_scalar_prefetch=0,
            grid=(B, n_qt),
            in_specs=[q_spec, yz_full, xz_full,
                      mask_spec(la_mask, Sy), mask_spec(pad_mask, Sx)]
                     + mh_specs + mh_specs + ffn_specs,
            out_specs=out_spec,
            scratch_shapes=[pltpu.VMEM((n_head, Sy, head_dim), jnp.bfloat16),
                            pltpu.VMEM((n_head, Sy, head_dim), jnp.bfloat16),
                            pltpu.VMEM((n_head, Sx, head_dim), jnp.bfloat16),
                            pltpu.VMEM((n_head, Sx, head_dim), jnp.bfloat16)]),
        compiler_params=pltpu.CompilerParams(
            dimension_semantics=("parallel", "arbitrary"),
            vmem_limit_bytes=_vmem_limit_bytes(est)),
    )(yz, yz, xz, la_mask, pad_mask,
      *mh_args(mh0), *mh_args(mh1),
      ffn["w1"], ffn["b1"], ffn["w2"], ffn["b2"], ffn["gamma"], ffn["beta"])


# ---------------------------------------------------------------------------
# Decoder_revise forward (eval mode): stack of fused decoder-layer kernels
# ---------------------------------------------------------------------------
def decoder_revise_pallas(yz, xz, look_ahead_mask, pad_mask, layers, *, n_head):
    for lp in layers:
        yz = decoder_layer_pallas(yz, xz, look_ahead_mask, pad_mask, lp,
                                  n_head=n_head)
    return yz


# ---------------------------------------------------------------------------
# pure-JAX reference (f32 math, mirrors the PyTorch module in eval mode)
# ---------------------------------------------------------------------------
def _layer_norm_ref(x, gamma, beta, eps=_LN_EPS):
    mean = jnp.mean(x, axis=-1, keepdims=True)
    var = jnp.mean(jnp.square(x - mean), axis=-1, keepdims=True)
    return (x - mean) / jnp.sqrt(var + eps) * gamma[0] + beta[0]


def _mha_ref(q, k, v, mask, p, n_head):
    B, Sq, D = q.shape
    Sk = k.shape[1]
    hd = D // n_head

    def lin(x, w, b):
        return x @ w.astype(jnp.float32) + b[0]

    Q = lin(q, p["wq"], p["bq"]).reshape(B, Sq, n_head, hd).transpose(0, 2, 1, 3)
    K = lin(k, p["wk"], p["bk"]).reshape(B, Sk, n_head, hd).transpose(0, 2, 1, 3)
    V = lin(v, p["wv"], p["bv"]).reshape(B, Sk, n_head, hd).transpose(0, 2, 1, 3)

    scores = jnp.einsum("bhqd,bhkd->bhqk", Q, K) / (jnp.sqrt(jnp.float32(hd)) + 1e-8)
    m = mask if mask.ndim == 3 else mask[None]
    scores = jnp.where(m[:, None] != 0, -jnp.inf, scores)
    attn = jax.nn.softmax(scores, axis=-1)
    ctx = jnp.einsum("bhqk,bhkd->bhqd", attn, V).transpose(0, 2, 1, 3).reshape(B, Sq, D)

    o = lin(ctx, p["wo"], p["bo"])
    return _layer_norm_ref(q + o, p["gamma"], p["beta"])


def _ffn_ref(x, p):
    h = jnp.maximum(x @ p["w1"].astype(jnp.float32) + p["b1"][0], 0.0)
    o = h @ p["w2"].astype(jnp.float32) + p["b2"][0]
    return _layer_norm_ref(x + o, p["gamma"], p["beta"])


def _decoder_ref(yz, xz, look_ahead_mask, pad_mask, layers, *, n_head):
    for lp in layers:
        yz = _mha_ref(yz, yz, yz, look_ahead_mask, lp["mh0"], n_head)
        yz = _mha_ref(yz, xz, xz, pad_mask, lp["mh1"], n_head)
        yz = _ffn_ref(yz, lp["ffn"])
    return yz


# ---------------------------------------------------------------------------
# parameter init (weights stored (in, out), bf16 for MXU; vectors f32)
# ---------------------------------------------------------------------------
def _init_mha_params(key, D):
    ks = jax.random.split(key, 10)
    w = lambda k_: (0.1 * jax.random.normal(k_, (D, D), jnp.float32)).astype(jnp.bfloat16)
    b = lambda k_: 0.1 * jax.random.normal(k_, (1, D), jnp.float32)
    return {
        "wq": w(ks[0]), "bq": b(ks[1]),
        "wk": w(ks[2]), "bk": b(ks[3]),
        "wv": w(ks[4]), "bv": b(ks[5]),
        "wo": w(ks[6]), "bo": b(ks[7]),
        "gamma": 1.0 + 0.1 * jax.random.normal(ks[8], (1, D), jnp.float32),
        "beta": 0.1 * jax.random.normal(ks[9], (1, D), jnp.float32),
    }


def _init_ffn_params(key, D):
    dff = 4 * D
    ks = jax.random.split(key, 6)
    return {
        "w1": (0.1 * jax.random.normal(ks[0], (D, dff), jnp.float32)).astype(jnp.bfloat16),
        "b1": 0.1 * jax.random.normal(ks[1], (1, dff), jnp.float32),
        "w2": (0.1 * jax.random.normal(ks[2], (dff, D), jnp.float32)).astype(jnp.bfloat16),
        "b2": 0.1 * jax.random.normal(ks[3], (1, D), jnp.float32),
        "gamma": 1.0 + 0.1 * jax.random.normal(ks[4], (1, D), jnp.float32),
        "beta": 0.1 * jax.random.normal(ks[5], (1, D), jnp.float32),
    }


if __name__ == "__main__":
    B, S_y, S_x, D, n_head, n_layer = 2, 8, 16, 32, 4, 2

    key = jax.random.PRNGKey(0)
    k_yz, k_xz, k_params = jax.random.split(key, 3)
    yz = jax.random.normal(k_yz, (B, S_y, D), dtype=jnp.float32)
    xz = jax.random.normal(k_xz, (B, S_x, D), dtype=jnp.float32)

    # Causal look-ahead mask: un-batched int8 (1 == masked / future position).
    row = jnp.arange(S_y)[:, None]
    col = jnp.arange(S_y)[None, :]
    look_ahead_mask = (col > row).astype(jnp.int8)                  # (S_y, S_y)

    # Cross-attention key-padding mask: per-batch int8 (1 == padded key).
    kv_valid = jnp.array([S_x - 3, S_x], dtype=jnp.int32)
    pad = (jnp.arange(S_x)[None, :] >= kv_valid[:, None])           # (B, S_x)
    xz_pad_mask = jnp.broadcast_to(pad[:, None, :], (B, S_y, S_x)).astype(jnp.int8)

    layers = []
    for lk in jax.random.split(k_params, n_layer):
        k0, k1, k2 = jax.random.split(lk, 3)
        layers.append({"mh0": _init_mha_params(k0, D),
                       "mh1": _init_mha_params(k1, D),
                       "ffn": _init_ffn_params(k2, D)})

    out = decoder_revise_pallas(yz, xz, look_ahead_mask, xz_pad_mask, layers,
                                n_head=n_head)
    out = jax.block_until_ready(out)

    ref = _decoder_ref(yz, xz, look_ahead_mask, xz_pad_mask, layers, n_head=n_head)
    # Tolerance accounts for bf16 MXU operands, the prescaled-Q bf16 rounding,
    # and the approx reciprocal in the kernel vs. the pure-f32 reference.
    np.testing.assert_allclose(np.asarray(out), np.asarray(ref), atol=5e-2, rtol=5e-2)

    print("KERNEL_OK")
</pallas_src>

<mosaic_0001>
module attributes {stable_mosaic.version = 11 : i64} {
  func.func @_decoder_layer_kernel(%arg0: i32, %arg1: i32, %arg2: memref<1x8x32xf32, #tpu.memory_space<vmem>>, %arg3: memref<1x8x32xf32, #tpu.memory_space<vmem>>, %arg4: memref<1x16x32xf32, #tpu.memory_space<vmem>>, %arg5: memref<8x8xi8, #tpu.memory_space<vmem>>, %arg6: memref<1x8x16xi8, #tpu.memory_space<vmem>>, %arg7: memref<32x32xbf16, #tpu.memory_space<vmem>>, %arg8: memref<1x32xf32, #tpu.memory_space<vmem>>, %arg9: memref<32x32xbf16, #tpu.memory_space<vmem>>, %arg10: memref<1x32xf32, #tpu.memory_space<vmem>>, %arg11: memref<32x32xbf16, #tpu.memory_space<vmem>>, %arg12: memref<1x32xf32, #tpu.memory_space<vmem>>, %arg13: memref<32x32xbf16, #tpu.memory_space<vmem>>, %arg14: memref<1x32xf32, #tpu.memory_space<vmem>>, %arg15: memref<1x32xf32, #tpu.memory_space<vmem>>, %arg16: memref<1x32xf32, #tpu.memory_space<vmem>>, %arg17: memref<32x32xbf16, #tpu.memory_space<vmem>>, %arg18: memref<1x32xf32, #tpu.memory_space<vmem>>, %arg19: memref<32x32xbf16, #tpu.memory_space<vmem>>, %arg20: memref<1x32xf32, #tpu.memory_space<vmem>>, %arg21: memref<32x32xbf16, #tpu.memory_space<vmem>>, %arg22: memref<1x32xf32, #tpu.memory_space<vmem>>, %arg23: memref<32x32xbf16, #tpu.memory_space<vmem>>, %arg24: memref<1x32xf32, #tpu.memory_space<vmem>>, %arg25: memref<1x32xf32, #tpu.memory_space<vmem>>, %arg26: memref<1x32xf32, #tpu.memory_space<vmem>>, %arg27: memref<32x128xbf16, #tpu.memory_space<vmem>>, %arg28: memref<1x128xf32, #tpu.memory_space<vmem>>, %arg29: memref<128x32xbf16, #tpu.memory_space<vmem>>, %arg30: memref<1x32xf32, #tpu.memory_space<vmem>>, %arg31: memref<1x32xf32, #tpu.memory_space<vmem>>, %arg32: memref<1x32xf32, #tpu.memory_space<vmem>>, %arg33: memref<1x8x32xf32, #tpu.memory_space<vmem>>, %arg34: memref<4x8x8xbf16, #tpu.memory_space<vmem>>, %arg35: memref<4x8x8xbf16, #tpu.memory_space<vmem>>, %arg36: memref<4x16x8xbf16, #tpu.memory_space<vmem>>, %arg37: memref<4x16x8xbf16, #tpu.memory_space<vmem>>) attributes {dimension_semantics = [#tpu.dimension_semantics<parallel>, #tpu.dimension_semantics<arbitrary>], iteration_bounds = array<i64: 2, 1>, scalar_prefetch = 0 : i64, scratch_operands = 4 : i64, tpu.core_type = #tpu.core_type<tc>, window_params = [{transform_indices = @transform_0, window_bounds = array<i64: 1, 8, 32>}, {transform_indices = @transform_1, window_bounds = array<i64: 1, 8, 32>}, {transform_indices = @transform_2, window_bounds = array<i64: 1, 16, 32>}, {transform_indices = @transform_3, window_bounds = array<i64: 8, 8>}, {transform_indices = @transform_4, window_bounds = array<i64: 1, 8, 16>}, {pipeline_mode = #tpu.pipeline_mode<synchronous>, transform_indices = @transform_5, window_bounds = array<i64: 32, 32>}, {pipeline_mode = #tpu.pipeline_mode<synchronous>, transform_indices = @transform_6, window_bounds = array<i64: 1, 32>}, {pipeline_mode = #tpu.pipeline_mode<synchronous>, transform_indices = @transform_7, window_bounds = array<i64: 32, 32>}, {pipeline_mode = #tpu.pipeline_mode<synchronous>, transform_indices = @transform_8, window_bounds = array<i64: 1, 32>}, {pipeline_mode = #tpu.pipeline_mode<synchronous>, transform_indices = @transform_9, window_bounds = array<i64: 32, 32>}, {pipeline_mode = #tpu.pipeline_mode<synchronous>, transform_indices = @transform_10, window_bounds = array<i64: 1, 32>}, {pipeline_mode = #tpu.pipeline_mode<synchronous>, transform_indices = @transform_11, window_bounds = array<i64: 32, 32>}, {pipeline_mode = #tpu.pipeline_mode<synchronous>, transform_indices = @transform_12, window_bounds = array<i64: 1, 32>}, {pipeline_mode = #tpu.pipeline_mode<synchronous>, transform_indices = @transform_13, window_bounds = array<i64: 1, 32>}, {pipeline_mode = #tpu.pipeline_mode<synchronous>, transform_indices = @transform_14, window_bounds = array<i64: 1, 32>}, {pipeline_mode = #tpu.pipeline_mode<synchronous>, transform_indices = @transform_15, window_bounds = array<i64: 32, 32>}, {pipeline_mode = #tpu.pipeline_mode<synchronous>, transform_indices = @transform_16, window_bounds = array<i64: 1, 32>}, {pipeline_mode = #tpu.pipeline_mode<synchronous>, transform_indices = @transform_17, window_bounds = array<i64: 32, 32>}, {pipeline_mode = #tpu.pipeline_mode<synchronous>, transform_indices = @transform_18, window_bounds = array<i64: 1, 32>}, {pipeline_mode = #tpu.pipeline_mode<synchronous>, transform_indices = @transform_19, window_bounds = array<i64: 32, 32>}, {pipeline_mode = #tpu.pipeline_mode<synchronous>, transform_indices = @transform_20, window_bounds = array<i64: 1, 32>}, {pipeline_mode = #tpu.pipeline_mode<synchronous>, transform_indices = @transform_21, window_bounds = array<i64: 32, 32>}, {pipeline_mode = #tpu.pipeline_mode<synchronous>, transform_indices = @transform_22, window_bounds = array<i64: 1, 32>}, {pipeline_mode = #tpu.pipeline_mode<synchronous>, transform_indices = @transform_23, window_bounds = array<i64: 1, 32>}, {pipeline_mode = #tpu.pipeline_mode<synchronous>, transform_indices = @transform_24, window_bounds = array<i64: 1, 32>}, {pipeline_mode = #tpu.pipeline_mode<synchronous>, transform_indices = @transform_25, window_bounds = array<i64: 32, 128>}, {pipeline_mode = #tpu.pipeline_mode<synchronous>, transform_indices = @transform_26, window_bounds = array<i64: 1, 128>}, {pipeline_mode = #tpu.pipeline_mode<synchronous>, transform_indices = @transform_27, window_bounds = array<i64: 128, 32>}, {pipeline_mode = #tpu.pipeline_mode<synchronous>, transform_indices = @transform_28, window_bounds = array<i64: 1, 32>}, {pipeline_mode = #tpu.pipeline_mode<synchronous>, transform_indices = @transform_29, window_bounds = array<i64: 1, 32>}, {pipeline_mode = #tpu.pipeline_mode<synchronous>, transform_indices = @transform_30, window_bounds = array<i64: 1, 32>}, {transform_indices = @transform_31, window_bounds = array<i64: 1, 8, 32>}]} {
    %c0_i32 = arith.constant 0 : i32
    %0 = arith.cmpi eq, %arg1, %c0_i32 : i32
    %1 = arith.extui %0 : i1 to i32
    %c0_i32_0 = arith.constant 0 : i32
    %2 = arith.cmpi ne, %1, %c0_i32_0 : i32
    scf.if %2 {
      %c0_91 = arith.constant 0 : index
      %c0_92 = arith.constant 0 : index
      %c0_93 = arith.constant 0 : index
      %178 = vector.load %arg3[%c0_91, %c0_92, %c0_93] : memref<1x8x32xf32, #tpu.memory_space<vmem>>, vector<1x8x32xf32>
      %179 = vector.shape_cast %178 : vector<1x8x32xf32> to vector<8x32xf32>
      %180 = arith.truncf %179 : vector<8x32xf32> to vector<8x32xbf16>
      %c0_94 = arith.constant 0 : index
      %c0_95 = arith.constant 0 : index
      %181 = vector.load %arg9[%c0_94, %c0_95] : memref<32x32xbf16, #tpu.memory_space<vmem>>, vector<32x32xbf16>
      %c0_96 = arith.constant 0 : index
      %c0_97 = arith.constant 0 : index
      %182 = vector.load %arg10[%c0_96, %c0_97] : memref<1x32xf32, #tpu.memory_space<vmem>>, vector<1x32xf32>
      %c0_98 = arith.constant 0 : index
      %c0_99 = arith.constant 0 : index
      %183 = vector.load %arg11[%c0_98, %c0_99] : memref<32x32xbf16, #tpu.memory_space<vmem>>, vector<32x32xbf16>
      %c0_100 = arith.constant 0 : index
      %c0_101 = arith.constant 0 : index
      %184 = vector.load %arg12[%c0_100, %c0_101] : memref<1x32xf32, #tpu.memory_space<vmem>>, vector<1x32xf32>
      %cst_102 = arith.constant dense<0.000000e+00> : vector<8x32xf32>
      %185 = tpu.matmul %180, %181, %cst_102 {dimension_numbers = #tpu.dot_dimension_numbers<[1], [0], [0], [1], [0, 0, 1, 1], [], []>} : vector<8x32xbf16>, vector<32x32xbf16>, vector<8x32xf32> -> vector<8x32xf32>
      %186 = vector.broadcast %182 : vector<1x32xf32> to vector<8x32xf32>
      %187 = arith.addf %185, %186 : vector<8x32xf32>
      %cst_103 = arith.constant dense<0.000000e+00> : vector<8x32xf32>
      %188 = tpu.matmul %180, %183, %cst_103 {dimension_numbers = #tpu.dot_dimension_numbers<[1], [0], [0], [1], [0, 0, 1, 1], [], []>} : vector<8x32xbf16>, vector<32x32xbf16>, vector<8x32xf32> -> vector<8x32xf32>
      %189 = vector.broadcast %184 : vector<1x32xf32> to vector<8x32xf32>
      %190 = arith.addf %188, %189 : vector<8x32xf32>
      %191 = arith.truncf %187 : vector<8x32xf32> to vector<8x32xbf16>
      %192 = vector.shape_cast %191 : vector<8x32xbf16> to vector<8x4x8xbf16>
      %193 = tpu.transpose %192, [1, 0, 2] : vector<8x4x8xbf16> -> vector<4x8x8xbf16>
      %194 = arith.truncf %190 : vector<8x32xf32> to vector<8x32xbf16>
      %195 = vector.shape_cast %194 : vector<8x32xbf16> to vector<8x4x8xbf16>
      %196 = tpu.transpose %195, [1, 0, 2] : vector<8x4x8xbf16> -> vector<4x8x8xbf16>
      %c0_104 = arith.constant 0 : index
      %c0_105 = arith.constant 0 : index
      %c0_106 = arith.constant 0 : index
      %197 = vector.load %arg34[%c0_104, %c0_105, %c0_106] : memref<4x8x8xbf16, #tpu.memory_space<vmem>>, vector<4x8x8xbf16>
      tpu.vector_store %arg34[%c0_104, %c0_105, %c0_106], %193 {strides = array<i32>} : memref<4x8x8xbf16, #tpu.memory_space<vmem>>, vector<4x8x8xbf16>,
      %c0_107 = arith.constant 0 : index
      %c0_108 = arith.constant 0 : index
      %c0_109 = arith.constant 0 : index
      %198 = vector.load %arg35[%c0_107, %c0_108, %c0_109] : memref<4x8x8xbf16, #tpu.memory_space<vmem>>, vector<4x8x8xbf16>
      tpu.vector_store %arg35[%c0_107, %c0_108, %c0_109], %196 {strides = array<i32>} : memref<4x8x8xbf16, #tpu.memory_space<vmem>>, vector<4x8x8xbf16>,
      %c0_110 = arith.constant 0 : index
      %c0_111 = arith.constant 0 : index
      %c0_112 = arith.constant 0 : index
      %199 = vector.load %arg4[%c0_110, %c0_111, %c0_112] : memref<1x16x32xf32, #tpu.memory_space<vmem>>, vector<1x16x32xf32>
      %200 = vector.shape_cast %199 : vector<1x16x32xf32> to vector<16x32xf32>
      %201 = arith.truncf %200 : vector<16x32xf32> to vector<16x32xbf16>
      %c0_113 = arith.constant 0 : index
      %c0_114 = arith.constant 0 : index
      %202 = vector.load %arg19[%c0_113, %c0_114] : memref<32x32xbf16, #tpu.memory_space<vmem>>, vector<32x32xbf16>
      %c0_115 = arith.constant 0 : index
      %c0_116 = arith.constant 0 : index
      %203 = vector.load %arg20[%c0_115, %c0_116] : memref<1x32xf32, #tpu.memory_space<vmem>>, vector<1x32xf32>
      %c0_117 = arith.constant 0 : index
      %c0_118 = arith.constant 0 : index
      %204 = vector.load %arg21[%c0_117, %c0_118] : memref<32x32xbf16, #tpu.memory_space<vmem>>, vector<32x32xbf16>
      %c0_119 = arith.constant 0 : index
      %c0_120 = arith.constant 0 : index
      %205 = vector.load %arg22[%c0_119, %c0_120] : memref<1x32xf32, #tpu.memory_space<vmem>>, vector<1x32xf32>
      %cst_121 = arith.constant dense<0.000000e+00> : vector<16x32xf32>
      %206 = tpu.matmul %201, %202, %cst_121 {dimension_numbers = #tpu.dot_dimension_numbers<[1], [0], [0], [1], [0, 0, 1, 1], [], []>} : vector<16x32xbf16>, vector<32x32xbf16>, vector<16x32xf32> -> vector<16x32xf32>
      %207 = vector.broadcast %203 : vector<1x32xf32> to vector<16x32xf32>
      %208 = arith.addf %206, %207 : vector<16x32xf32>
      %cst_122 = arith.constant dense<0.000000e+00> : vector<16x32xf32>
      %209 = tpu.matmul %201, %204, %cst_122 {dimension_numbers = #tpu.dot_dimension_numbers<[1], [0], [0], [1], [0, 0, 1, 1], [], []>} : vector<16x32xbf16>, vector<32x32xbf16>, vector<16x32xf32> -> vector<16x32xf32>
      %210 = vector.broadcast %205 : vector<1x32xf32> to vector<16x32xf32>
      %211 = arith.addf %209, %210 : vector<16x32xf32>
      %212 = arith.truncf %208 : vector<16x32xf32> to vector<16x32xbf16>
      %213 = vector.shape_cast %212 : vector<16x32xbf16> to vector<16x4x8xbf16>
      %214 = tpu.transpose %213, [1, 0, 2] : vector<16x4x8xbf16> -> vector<4x16x8xbf16>
      %215 = arith.truncf %211 : vector<16x32xf32> to vector<16x32xbf16>
      %216 = vector.shape_cast %215 : vector<16x32xbf16> to vector<16x4x8xbf16>
      %217 = tpu.transpose %216, [1, 0, 2] : vector<16x4x8xbf16> -> vector<4x16x8xbf16>
      %c0_123 = arith.constant 0 : index
      %c0_124 = arith.constant 0 : index
      %c0_125 = arith.constant 0 : index
      %218 = vector.load %arg36[%c0_123, %c0_124, %c0_125] : memref<4x16x8xbf16, #tpu.memory_space<vmem>>, vector<4x16x8xbf16>
      tpu.vector_store %arg36[%c0_123, %c0_124, %c0_125], %214 {strides = array<i32>} : memref<4x16x8xbf16, #tpu.memory_space<vmem>>, vector<4x16x8xbf16>,
      %c0_126 = arith.constant 0 : index
      %c0_127 = arith.constant 0 : index
      %c0_128 = arith.constant 0 : index
      %219 = vector.load %arg37[%c0_126, %c0_127, %c0_128] : memref<4x16x8xbf16, #tpu.memory_space<vmem>>, vector<4x16x8xbf16>
      tpu.vector_store %arg37[%c0_126, %c0_127, %c0_128], %217 {strides = array<i32>} : memref<4x16x8xbf16, #tpu.memory_space<vmem>>, vector<4x16x8xbf16>,
    } else {
    }
    %c0 = arith.constant 0 : index
    %c0_1 = arith.constant 0 : index
    %c0_2 = arith.constant 0 : index
    %3 = vector.load %arg2[%c0, %c0_1, %c0_2] : memref<1x8x32xf32, #tpu.memory_space<vmem>>, vector<1x8x32xf32>
    %4 = vector.shape_cast %3 : vector<1x8x32xf32> to vector<8x32xf32>
    %c0_3 = arith.constant 0 : index
    %c0_4 = arith.constant 0 : index
    %c0_5 = arith.constant 0 : index
    %5 = vector.load %arg34[%c0_3, %c0_4, %c0_5] : memref<4x8x8xbf16, #tpu.memory_space<vmem>>, vector<4x8x8xbf16>
    %c0_6 = arith.constant 0 : index
    %c0_7 = arith.constant 0 : index
    %c0_8 = arith.constant 0 : index
    %6 = vector.load %arg35[%c0_6, %c0_7, %c0_8] : memref<4x8x8xbf16, #tpu.memory_space<vmem>>, vector<4x8x8xbf16>
    %c0_9 = arith.constant 0 : index
    %c0_10 = arith.constant 0 : index
    %7 = vector.load %arg5[%c0_9, %c0_10] : memref<8x8xi8, #tpu.memory_space<vmem>>, vector<8x8xi8>
    %c0_11 = arith.constant 0 : index
    %c0_12 = arith.constant 0 : index
    %8 = vector.load %arg7[%c0_11, %c0_12] : memref<32x32xbf16, #tpu.memory_space<vmem>>, vector<32x32xbf16>
    %c0_13 = arith.constant 0 : index
    %c0_14 = arith.constant 0 : index
    %9 = vector.load %arg8[%c0_13, %c0_14] : memref<1x32xf32, #tpu.memory_space<vmem>>, vector<1x32xf32>
    %c0_15 = arith.constant 0 : index
    %c0_16 = arith.constant 0 : index
    %10 = vector.load %arg13[%c0_15, %c0_16] : memref<32x32xbf16, #tpu.memory_space<vmem>>, vector<32x32xbf16>
    %c0_17 = arith.constant 0 : index
    %c0_18 = arith.constant 0 : index
    %11 = vector.load %arg14[%c0_17, %c0_18] : memref<1x32xf32, #tpu.memory_space<vmem>>, vector<1x32xf32>
    %c0_19 = arith.constant 0 : index
    %c0_20 = arith.constant 0 : index
    %12 = vector.load %arg15[%c0_19, %c0_20] : memref<1x32xf32, #tpu.memory_space<vmem>>, vector<1x32xf32>
    %c0_21 = arith.constant 0 : index
    %c0_22 = arith.constant 0 : index
    %13 = vector.load %arg16[%c0_21, %c0_22] : memref<1x32xf32, #tpu.memory_space<vmem>>, vector<1x32xf32>
    %14 = arith.truncf %4 : vector<8x32xf32> to vector<8x32xbf16>
    %cst = arith.constant dense<0.000000e+00> : vector<8x32xf32>
    %15 = tpu.matmul %14, %8, %cst {dimension_numbers = #tpu.dot_dimension_numbers<[1], [0], [0], [1], [0, 0, 1, 1], [], []>} : vector<8x32xbf16>, vector<32x32xbf16>, vector<8x32xf32> -> vector<8x32xf32>
    %16 = vector.broadcast %9 : vector<1x32xf32> to vector<8x32xf32>
    %17 = arith.addf %15, %16 : vector<8x32xf32>
    %18 = arith.truncf %17 : vector<8x32xf32> to vector<8x32xbf16>
    %19 = vector.shape_cast %18 : vector<8x32xbf16> to vector<8x4x8xbf16>
    %20 = tpu.transpose %19, [1, 0, 2] : vector<8x4x8xbf16> -> vector<4x8x8xbf16>
    "tpu.trace_start"() <{level = 10 : i32, message = "hqd,hkd->hqk"}> : () -> ()
    %cst_23 = arith.constant dense<0.000000e+00> : vector<4x8x8xf32>
    %21 = tpu.matmul %20, %5, %cst_23 {dimension_numbers = #tpu.dot_dimension_numbers<[2], [2], [1], [1], [0, 0, 0, 1, 1, 1], [0], [0]>} : vector<4x8x8xbf16>, vector<4x8x8xbf16>, vector<4x8x8xf32> -> vector<4x8x8xf32>
    "tpu.trace_stop"() : () -> ()
    %22 = vector.shape_cast %7 : vector<8x8xi8> to vector<1x8x8xi8>
    %c0_i8 = arith.constant 0 : i8
    %23 = vector.broadcast %c0_i8 : i8 to vector<1x8x8xi8>
    %24 = arith.cmpi ne, %22, %23 : vector<1x8x8xi8>
    %cst_24 = arith.constant -1.000000e+30 : f32
    %25 = vector.shape_cast %24 : vector<1x8x8xi1> to vector<1x8x8xi1>
    %26 = vector.broadcast %25 : vector<1x8x8xi1> to vector<4x8x8xi1>
    %27 = vector.broadcast %cst_24 : f32 to vector<4x8x8xf32>
    %28 = arith.select %26, %27, %21 : vector<4x8x8xi1>, vector<4x8x8xf32>
    %cst_25 = arith.constant dense<0xFF800000> : vector<4x8xf32>
    %29 = vector.multi_reduction <maximumf>, %28, %cst_25 [2] : vector<4x8x8xf32> to vector<4x8xf32>
    %30 = vector.shape_cast %29 : vector<4x8xf32> to vector<4x8x1xf32>
    %31 = vector.broadcast %30 : vector<4x8x1xf32> to vector<4x8x8xf32>
    %32 = arith.subf %28, %31 : vector<4x8x8xf32>
    %33 = math.exp %32 : vector<4x8x8xf32>
    %cst_26 = arith.constant dense<0.000000e+00> : vector<4x8xf32>
    %34 = vector.multi_reduction <add>, %33, %cst_26 [2] : vector<4x8x8xf32> to vector<4x8xf32>
    %35 = vector.shape_cast %34 : vector<4x8xf32> to vector<4x8x1xf32>
    %36 = tpu.reciprocal %35 {approx = true} : vector<4x8x1xf32> -> vector<4x8x1xf32>
    %37 = vector.broadcast %36 : vector<4x8x1xf32> to vector<4x8x8xf32>
    %38 = arith.mulf %33, %37 : vector<4x8x8xf32>
    %39 = arith.truncf %38 : vector<4x8x8xf32> to vector<4x8x8xbf16>
    "tpu.trace_start"() <{level = 10 : i32, message = "hqk,hkd->hqd"}> : () -> ()
    %cst_27 = arith.constant dense<0.000000e+00> : vector<4x8x8xf32>
    %40 = tpu.matmul %39, %6, %cst_27 {dimension_numbers = #tpu.dot_dimension_numbers<[2], [1], [1], [2], [0, 0, 0, 1, 1, 2], [0], [0]>} : vector<4x8x8xbf16>, vector<4x8x8xbf16>, vector<4x8x8xf32> -> vector<4x8x8xf32>
    "tpu.trace_stop"() : () -> ()
    %41 = arith.truncf %40 : vector<4x8x8xf32> to vector<4x8x8xbf16>
    %42 = tpu.transpose %41, [1, 0, 2] : vector<4x8x8xbf16> -> vector<8x4x8xbf16>
    %43 = vector.shape_cast %42 : vector<8x4x8xbf16> to vector<8x32xbf16>
    %cst_28 = arith.constant dense<0.000000e+00> : vector<8x32xf32>
    %44 = tpu.matmul %43, %10, %cst_28 {dimension_numbers = #tpu.dot_dimension_numbers<[1], [0], [0], [1], [0, 0, 1, 1], [], []>} : vector<8x32xbf16>, vector<32x32xbf16>, vector<8x32xf32> -> vector<8x32xf32>
    %45 = vector.broadcast %11 : vector<1x32xf32> to vector<8x32xf32>
    %46 = arith.addf %44, %45 : vector<8x32xf32>
    %47 = arith.addf %4, %46 : vector<8x32xf32>
    %cst_29 = arith.constant dense<0.000000e+00> : vector<8xf32>
    %48 = vector.multi_reduction <add>, %47, %cst_29 [1] : vector<8x32xf32> to vector<8xf32>
    %49 = vector.shape_cast %48 : vector<8xf32> to vector<8x1xf32>
    %cst_30 = arith.constant 3.200000e+01 : f32
    %50 = vector.broadcast %cst_30 : f32 to vector<8x1xf32>
    %51 = arith.divf %49, %50 : vector<8x1xf32>
    %52 = vector.broadcast %51 : vector<8x1xf32> to vector<8x32xf32>
    %53 = arith.subf %47, %52 : vector<8x32xf32>
    %54 = arith.mulf %53, %53 : vector<8x32xf32>
    %cst_31 = arith.constant dense<0.000000e+00> : vector<8xf32>
    %55 = vector.multi_reduction <add>, %54, %cst_31 [1] : vector<8x32xf32> to vector<8xf32>
    %56 = vector.shape_cast %55 : vector<8xf32> to vector<8x1xf32>
    %cst_32 = arith.constant 3.200000e+01 : f32
    %57 = vector.broadcast %cst_32 : f32 to vector<8x1xf32>
    %58 = arith.divf %56, %57 : vector<8x1xf32>
    %59 = vector.broadcast %51 : vector<8x1xf32> to vector<8x32xf32>
    %60 = arith.subf %47, %59 : vector<8x32xf32>
    %cst_33 = arith.constant 9.99999974E-6 : f32
    %61 = vector.broadcast %cst_33 : f32 to vector<8x1xf32>
    %62 = arith.addf %58, %61 : vector<8x1xf32>
    %63 = math.rsqrt %62 : vector<8x1xf32>
    %64 = vector.broadcast %63 : vector<8x1xf32> to vector<8x32xf32>
    %65 = arith.mulf %60, %64 : vector<8x32xf32>
    %66 = vector.broadcast %12 : vector<1x32xf32> to vector<8x32xf32>
    %67 = arith.mulf %65, %66 : vector<8x32xf32>
    %68 = vector.broadcast %13 : vector<1x32xf32> to vector<8x32xf32>
    %69 = arith.addf %67, %68 : vector<8x32xf32>
    %c0_34 = arith.constant 0 : index
    %c0_35 = arith.constant 0 : index
    %c0_36 = arith.constant 0 : index
    %70 = vector.load %arg36[%c0_34, %c0_35, %c0_36] : memref<4x16x8xbf16, #tpu.memory_space<vmem>>, vector<4x16x8xbf16>
    %c0_37 = arith.constant 0 : index
    %c0_38 = arith.constant 0 : index
    %c0_39 = arith.constant 0 : index
    %71 = vector.load %arg37[%c0_37, %c0_38, %c0_39] : memref<4x16x8xbf16, #tpu.memory_space<vmem>>, vector<4x16x8xbf16>
    %c0_40 = arith.constant 0 : index
    %c0_41 = arith.constant 0 : index
    %c0_42 = arith.constant 0 : index
    %72 = vector.load %arg6[%c0_40, %c0_41, %c0_42] : memref<1x8x16xi8, #tpu.memory_space<vmem>>, vector<1x8x16xi8>
    %73 = vector.shape_cast %72 : vector<1x8x16xi8> to vector<8x16xi8>
    %c0_43 = arith.constant 0 : index
    %c0_44 = arith.constant 0 : index
    %74 = vector.load %arg17[%c0_43, %c0_44] : memref<32x32xbf16, #tpu.memory_space<vmem>>, vector<32x32xbf16>
    %c0_45 = arith.constant 0 : index
    %c0_46 = arith.constant 0 : index
    %75 = vector.load %arg18[%c0_45, %c0_46] : memref<1x32xf32, #tpu.memory_space<vmem>>, vector<1x32xf32>
    %c0_47 = arith.constant 0 : index
    %c0_48 = arith.constant 0 : index
    %76 = vector.load %arg23[%c0_47, %c0_48] : memref<32x32xbf16, #tpu.memory_space<vmem>>, vector<32x32xbf16>
    %c0_49 = arith.constant 0 : index
    %c0_50 = arith.constant 0 : index
    %77 = vector.load %arg24[%c0_49, %c0_50] : memref<1x32xf32, #tpu.memory_space<vmem>>, vector<1x32xf32>
    %c0_51 = arith.constant 0 : index
    %c0_52 = arith.constant 0 : index
    %78 = vector.load %arg25[%c0_51, %c0_52] : memref<1x32xf32, #tpu.memory_space<vmem>>, vector<1x32xf32>
    %c0_53 = arith.constant 0 : index
    %c0_54 = arith.constant 0 : index
    %79 = vector.load %arg26[%c0_53, %c0_54] : memref<1x32xf32, #tpu.memory_space<vmem>>, vector<1x32xf32>
    %80 = arith.truncf %69 : vector<8x32xf32> to vector<8x32xbf16>
    %cst_55 = arith.constant dense<0.000000e+00> : vector<8x32xf32>
    %81 = tpu.matmul %80, %74, %cst_55 {dimension_numbers = #tpu.dot_dimension_numbers<[1], [0], [0], [1], [0, 0, 1, 1], [], []>} : vector<8x32xbf16>, vector<32x32xbf16>, vector<8x32xf32> -> vector<8x32xf32>
    %82 = vector.broadcast %75 : vector<1x32xf32> to vector<8x32xf32>
    %83 = arith.addf %81, %82 : vector<8x32xf32>
    %84 = arith.truncf %83 : vector<8x32xf32> to vector<8x32xbf16>
    %85 = vector.shape_cast %84 : vector<8x32xbf16> to vector<8x4x8xbf16>
    %86 = tpu.transpose %85, [1, 0, 2] : vector<8x4x8xbf16> -> vector<4x8x8xbf16>
    "tpu.trace_start"() <{level = 10 : i32, message = "hqd,hkd->hqk"}> : () -> ()
    %cst_56 = arith.constant dense<0.000000e+00> : vector<4x8x16xf32>
    %87 = tpu.matmul %86, %70, %cst_56 {dimension_numbers = #tpu.dot_dimension_numbers<[2], [2], [1], [1], [0, 0, 0, 1, 1, 1], [0], [0]>} : vector<4x8x8xbf16>, vector<4x16x8xbf16>, vector<4x8x16xf32> -> vector<4x8x16xf32>
    "tpu.trace_stop"() : () -> ()
    %88 = vector.shape_cast %73 : vector<8x16xi8> to vector<1x8x16xi8>
    %c0_i8_57 = arith.constant 0 : i8
    %89 = vector.broadcast %c0_i8_57 : i8 to vector<1x8x16xi8>
    %90 = arith.cmpi ne, %88, %89 : vector<1x8x16xi8>
    %cst_58 = arith.constant -1.000000e+30 : f32
    %91 = vector.shape_cast %90 : vector<1x8x16xi1> to vector<1x8x16xi1>
    %92 = vector.broadcast %91 : vector<1x8x16xi1> to vector<4x8x16xi1>
    %93 = vector.broadcast %cst_58 : f32 to vector<4x8x16xf32>
    %94 = arith.select %92, %93, %87 : vector<4x8x16xi1>, vector<4x8x16xf32>
    %cst_59 = arith.constant dense<0xFF800000> : vector<4x8xf32>
    %95 = vector.multi_reduction <maximumf>, %94, %cst_59 [2] : vector<4x8x16xf32> to vector<4x8xf32>
    %96 = vector.shape_cast %95 : vector<4x8xf32> to vector<4x8x1xf32>
    %97 = vector.broadcast %96 : vector<4x8x1xf32> to vector<4x8x16xf32>
    %98 = arith.subf %94, %97 : vector<4x8x16xf32>
    %99 = math.exp %98 : vector<4x8x16xf32>
    %cst_60 = arith.constant dense<0.000000e+00> : vector<4x8xf32>
    %100 = vector.multi_reduction <add>, %99, %cst_60 [2] : vector<4x8x16xf32> to vector<4x8xf32>
    %101 = vector.shape_cast %100 : vector<4x8xf32> to vector<4x8x1xf32>
    %102 = tpu.reciprocal %101 {approx = true} : vector<4x8x1xf32> -> vector<4x8x1xf32>
    %103 = vector.broadcast %102 : vector<4x8x1xf32> to vector<4x8x16xf32>
    %104 = arith.mulf %99, %103 : vector<4x8x16xf32>
    %105 = arith.truncf %104 : vector<4x8x16xf32> to vector<4x8x16xbf16>
    "tpu.trace_start"() <{level = 10 : i32, message = "hqk,hkd->hqd"}> : () -> ()
    %cst_61 = arith.constant dense<0.000000e+00> : vector<4x8x8xf32>
    %106 = tpu.matmul %105, %71, %cst_61 {dimension_numbers = #tpu.dot_dimension_numbers<[2], [1], [1], [2], [0, 0, 0, 1, 1, 2], [0], [0]>} : vector<4x8x16xbf16>, vector<4x16x8xbf16>, vector<4x8x8xf32> -> vector<4x8x8xf32>
    "tpu.trace_stop"() : () -> ()
    %107 = arith.truncf %106 : vector<4x8x8xf32> to vector<4x8x8xbf16>
    %108 = tpu.transpose %107, [1, 0, 2] : vector<4x8x8xbf16> -> vector<8x4x8xbf16>
    %109 = vector.shape_cast %108 : vector<8x4x8xbf16> to vector<8x32xbf16>
    %cst_62 = arith.constant dense<0.000000e+00> : vector<8x32xf32>
    %110 = tpu.matmul %109, %76, %cst_62 {dimension_numbers = #tpu.dot_dimension_numbers<[1], [0], [0], [1], [0, 0, 1, 1], [], []>} : vector<8x32xbf16>, vector<32x32xbf16>, vector<8x32xf32> -> vector<8x32xf32>
    %111 = vector.broadcast %77 : vector<1x32xf32> to vector<8x32xf32>
    %112 = arith.addf %110, %111 : vector<8x32xf32>
    %113 = arith.addf %69, %112 : vector<8x32xf32>
    %cst_63 = arith.constant dense<0.000000e+00> : vector<8xf32>
    %114 = vector.multi_reduction <add>, %113, %cst_63 [1] : vector<8x32xf32> to vector<8xf32>
    %115 = vector.shape_cast %114 : vector<8xf32> to vector<8x1xf32>
    %cst_64 = arith.constant 3.200000e+01 : f32
    %116 = vector.broadcast %cst_64 : f32 to vector<8x1xf32>
    %117 = arith.divf %115, %116 : vector<8x1xf32>
    %118 = vector.broadcast %117 : vector<8x1xf32> to vector<8x32xf32>
    %119 = arith.subf %113, %118 : vector<8x32xf32>
    %120 = arith.mulf %119, %119 : vector<8x32xf32>
    %cst_65 = arith.constant dense<0.000000e+00> : vector<8xf32>
    %121 = vector.multi_reduction <add>, %120, %cst_65 [1] : vector<8x32xf32> to vector<8xf32>
    %122 = vector.shape_cast %121 : vector<8xf32> to vector<8x1xf32>
    %cst_66 = arith.constant 3.200000e+01 : f32
    %123 = vector.broadcast %cst_66 : f32 to vector<8x1xf32>
    %124 = arith.divf %122, %123 : vector<8x1xf32>
    %125 = vector.broadcast %117 : vector<8x1xf32> to vector<8x32xf32>
    %126 = arith.subf %113, %125 : vector<8x32xf32>
    %cst_67 = arith.constant 9.99999974E-6 : f32
    %127 = vector.broadcast %cst_67 : f32 to vector<8x1xf32>
    %128 = arith.addf %124, %127 : vector<8x1xf32>
    %129 = math.rsqrt %128 : vector<8x1xf32>
    %130 = vector.broadcast %129 : vector<8x1xf32> to vector<8x32xf32>
    %131 = arith.mulf %126, %130 : vector<8x32xf32>
    %132 = vector.broadcast %78 : vector<1x32xf32> to vector<8x32xf32>
    %133 = arith.mulf %131, %132 : vector<8x32xf32>
    %134 = vector.broadcast %79 : vector<1x32xf32> to vector<8x32xf32>
    %135 = arith.addf %133, %134 : vector<8x32xf32>
    %136 = arith.truncf %135 : vector<8x32xf32> to vector<8x32xbf16>
    %c0_68 = arith.constant 0 : index
    %c0_69 = arith.constant 0 : index
    %137 = vector.load %arg27[%c0_68, %c0_69] : memref<32x128xbf16, #tpu.memory_space<vmem>>, vector<32x128xbf16>
    %cst_70 = arith.constant dense<0.000000e+00> : vector<8x128xf32>
    %138 = tpu.matmul %136, %137, %cst_70 {dimension_numbers = #tpu.dot_dimension_numbers<[1], [0], [0], [1], [0, 0, 1, 1], [], []>} : vector<8x32xbf16>, vector<32x128xbf16>, vector<8x128xf32> -> vector<8x128xf32>
    %c0_71 = arith.constant 0 : index
    %c0_72 = arith.constant 0 : index
    %139 = vector.load %arg28[%c0_71, %c0_72] : memref<1x128xf32, #tpu.memory_space<vmem>>, vector<1x128xf32>
    %140 = vector.broadcast %139 : vector<1x128xf32> to vector<8x128xf32>
    %141 = arith.addf %138, %140 : vector<8x128xf32>
    %cst_73 = arith.constant 0.000000e+00 : f32
    %142 = vector.broadcast %cst_73 : f32 to vector<8x128xf32>
    %143 = arith.maximumf %141, %142 : vector<8x128xf32>
    %144 = arith.truncf %143 : vector<8x128xf32> to vector<8x128xbf16>
    %c0_74 = arith.constant 0 : index
    %c0_75 = arith.constant 0 : index
    %145 = vector.load %arg29[%c0_74, %c0_75] : memref<128x32xbf16, #tpu.memory_space<vmem>>, vector<128x32xbf16>
    %cst_76 = arith.constant dense<0.000000e+00> : vector<8x32xf32>
    %146 = tpu.matmul %144, %145, %cst_76 {dimension_numbers = #tpu.dot_dimension_numbers<[1], [0], [0], [1], [0, 0, 1, 1], [], []>} : vector<8x128xbf16>, vector<128x32xbf16>, vector<8x32xf32> -> vector<8x32xf32>
    %c0_77 = arith.constant 0 : index
    %c0_78 = arith.constant 0 : index
    %147 = vector.load %arg30[%c0_77, %c0_78] : memref<1x32xf32, #tpu.memory_space<vmem>>, vector<1x32xf32>
    %148 = vector.broadcast %147 : vector<1x32xf32> to vector<8x32xf32>
    %149 = arith.addf %146, %148 : vector<8x32xf32>
    %150 = arith.addf %135, %149 : vector<8x32xf32>
    %c0_79 = arith.constant 0 : index
    %c0_80 = arith.constant 0 : index
    %151 = vector.load %arg31[%c0_79, %c0_80] : memref<1x32xf32, #tpu.memory_space<vmem>>, vector<1x32xf32>
    %c0_81 = arith.constant 0 : index
    %c0_82 = arith.constant 0 : index
    %152 = vector.load %arg32[%c0_81, %c0_82] : memref<1x32xf32, #tpu.memory_space<vmem>>, vector<1x32xf32>
    %cst_83 = arith.constant dense<0.000000e+00> : vector<8xf32>
    %153 = vector.multi_reduction <add>, %150, %cst_83 [1] : vector<8x32xf32> to vector<8xf32>
    %154 = vector.shape_cast %153 : vector<8xf32> to vector<8x1xf32>
    %cst_84 = arith.constant 3.200000e+01 : f32
    %155 = vector.broadcast %cst_84 : f32 to vector<8x1xf32>
    %156 = arith.divf %154, %155 : vector<8x1xf32>
    %157 = vector.broadcast %156 : vector<8x1xf32> to vector<8x32xf32>
    %158 = arith.subf %150, %157 : vector<8x32xf32>
    %159 = arith.mulf %158, %158 : vector<8x32xf32>
    %cst_85 = arith.constant dense<0.000000e+00> : vector<8xf32>
    %160 = vector.multi_reduction <add>, %159, %cst_85 [1] : vector<8x32xf32> to vector<8xf32>
    %161 = vector.shape_cast %160 : vector<8xf32> to vector<8x1xf32>
    %cst_86 = arith.constant 3.200000e+01 : f32
    %162 = vector.broadcast %cst_86 : f32 to vector<8x1xf32>
    %163 = arith.divf %161, %162 : vector<8x1xf32>
    %164 = vector.broadcast %156 : vector<8x1xf32> to vector<8x32xf32>
    %165 = arith.subf %150, %164 : vector<8x32xf32>
    %cst_87 = arith.constant 9.99999974E-6 : f32
    %166 = vector.broadcast %cst_87 : f32 to vector<8x1xf32>
    %167 = arith.addf %163, %166 : vector<8x1xf32>
    %168 = math.rsqrt %167 : vector<8x1xf32>
    %169 = vector.broadcast %168 : vector<8x1xf32> to vector<8x32xf32>
    %170 = arith.mulf %165, %169 : vector<8x32xf32>
    %171 = vector.broadcast %151 : vector<1x32xf32> to vector<8x32xf32>
    %172 = arith.mulf %170, %171 : vector<8x32xf32>
    %173 = vector.broadcast %152 : vector<1x32xf32> to vector<8x32xf32>
    %174 = arith.addf %172, %173 : vector<8x32xf32>
    %c0_88 = arith.constant 0 : index
    %c0_89 = arith.constant 0 : index
    %c0_90 = arith.constant 0 : index
    %175 = vector.load %arg33[%c0_88, %c0_89, %c0_90] : memref<1x8x32xf32, #tpu.memory_space<vmem>>, vector<1x8x32xf32>
    %176 = vector.shape_cast %175 : vector<1x8x32xf32> to vector<8x32xf32>
    %177 = vector.shape_cast %174 : vector<8x32xf32> to vector<1x8x32xf32>
    tpu.vector_store %arg33[%c0_88, %c0_89, %c0_90], %177 {strides = array<i32>} : memref<1x8x32xf32, #tpu.memory_space<vmem>>, vector<1x8x32xf32>,
    return
  }
  func.func @transform_0(%arg0: i32, %arg1: i32) -> (i32, i32, i32) {
    %c0_i32 = arith.constant 0 : i32
    %c0_i32_0 = arith.constant 0 : i32
    return %arg0, %arg1, %c0_i32 : i32, i32, i32
  }
  func.func @transform_1(%arg0: i32, %arg1: i32) -> (i32, i32, i32) {
    %c0_i32 = arith.constant 0 : i32
    %c0_i32_0 = arith.constant 0 : i32
    %c0_i32_1 = arith.constant 0 : i32
    return %arg0, %c0_i32, %c0_i32_0 : i32, i32, i32
  }
  func.func @transform_2(%arg0: i32, %arg1: i32) -> (i32, i32, i32) {
    %c0_i32 = arith.constant 0 : i32
    %c0_i32_0 = arith.constant 0 : i32
    %c0_i32_1 = arith.constant 0 : i32
    return %arg0, %c0_i32, %c0_i32_0 : i32, i32, i32
  }
  func.func @transform_3(%arg0: i32, %arg1: i32) -> (i32, i32) {
    %c0_i32 = arith.constant 0 : i32
    %c0_i32_0 = arith.constant 0 : i32
    return %arg1, %c0_i32 : i32, i32
  }
  func.func @transform_4(%arg0: i32, %arg1: i32) -> (i32, i32, i32) {
    %c0_i32 = arith.constant 0 : i32
    %c0_i32_0 = arith.constant 0 : i32
    return %arg0, %arg1, %c0_i32 : i32, i32, i32
  }
  func.func @transform_5(%arg0: i32, %arg1: i32) -> (i32, i32) {
    %c0_i32 = arith.constant 0 : i32
    %c0_i32_0 = arith.constant 0 : i32
    %c0_i32_1 = arith.constant 0 : i32
    return %c0_i32, %c0_i32_0 : i32, i32
  }
  func.func @transform_6(%arg0: i32, %arg1: i32) -> (i32, i32) {
    %c0_i32 = arith.constant 0 : i32
    %c0_i32_0 = arith.constant 0 : i32
    %c0_i32_1 = arith.constant 0 : i32
    return %c0_i32, %c0_i32_0 : i32, i32
  }
  func.func @transform_7(%arg0: i32, %arg1: i32) -> (i32, i32) {
    %c0_i32 = arith.constant 0 : i32
    %c0_i32_0 = arith.constant 0 : i32
    %c0_i32_1 = arith.constant 0 : i32
    return %c0_i32, %c0_i32_0 : i32, i32
  }
  func.func @transform_8(%arg0: i32, %arg1: i32) -> (i32, i32) {
    %c0_i32 = arith.constant 0 : i32
    %c0_i32_0 = arith.constant 0 : i32
    %c0_i32_1 = arith.constant 0 : i32
    return %c0_i32, %c0_i32_0 : i32, i32
  }
  func.func @transform_9(%arg0: i32, %arg1: i32) -> (i32, i32) {
    %c0_i32 = arith.constant 0 : i32
    %c0_i32_0 = arith.constant 0 : i32
    %c0_i32_1 = arith.constant 0 : i32
    return %c0_i32, %c0_i32_0 : i32, i32
  }
  func.func @transform_10(%arg0: i32, %arg1: i32) -> (i32, i32) {
    %c0_i32 = arith.constant 0 : i32
    %c0_i32_0 = arith.constant 0 : i32
    %c0_i32_1 = arith.constant 0 : i32
    return %c0_i32, %c0_i32_0 : i32, i32
  }
  func.func @transform_11(%arg0: i32, %arg1: i32) -> (i32, i32) {
    %c0_i32 = arith.constant 0 : i32
    %c0_i32_0 = arith.constant 0 : i32
    %c0_i32_1 = arith.constant 0 : i32
    return %c0_i32, %c0_i32_0 : i32, i32
  }
  func.func @transform_12(%arg0: i32, %arg1: i32) -> (i32, i32) {
    %c0_i32 = arith.constant 0 : i32
    %c0_i32_0 = arith.constant 0 : i32
    %c0_i32_1 = arith.constant 0 : i32
    return %c0_i32, %c0_i32_0 : i32, i32
  }
  func.func @transform_13(%arg0: i32, %arg1: i32) -> (i32, i32) {
    %c0_i32 = arith.constant 0 : i32
    %c0_i32_0 = arith.constant 0 : i32
    %c0_i32_1 = arith.constant 0 : i32
    return %c0_i32, %c0_i32_0 : i32, i32
  }
  func.func @transform_14(%arg0: i32, %arg1: i32) -> (i32, i32) {
    %c0_i32 = arith.constant 0 : i32
    %c0_i32_0 = arith.constant 0 : i32
    %c0_i32_1 = arith.constant 0 : i32
    return %c0_i32, %c0_i32_0 : i32, i32
  }
  func.func @transform_15(%arg0: i32, %arg1: i32) -> (i32, i32) {
    %c0_i32 = arith.constant 0 : i32
    %c0_i32_0 = arith.constant 0 : i32
    %c0_i32_1 = arith.constant 0 : i32
    return %c0_i32, %c0_i32_0 : i32, i32
  }
  func.func @transform_16(%arg0: i32, %arg1: i32) -> (i32, i32) {
    %c0_i32 = arith.constant 0 : i32
    %c0_i32_0 = arith.constant 0 : i32
    %c0_i32_1 = arith.constant 0 : i32
    return %c0_i32, %c0_i32_0 : i32, i32
  }
  func.func @transform_17(%arg0: i32, %arg1: i32) -> (i32, i32) {
    %c0_i32 = arith.constant 0 : i32
    %c0_i32_0 = arith.constant 0 : i32
    %c0_i32_1 = arith.constant 0 : i32
    return %c0_i32, %c0_i32_0 : i32, i32
  }
  func.func @transform_18(%arg0: i32, %arg1: i32) -> (i32, i32) {
    %c0_i32 = arith.constant 0 : i32
    %c0_i32_0 = arith.constant 0 : i32
    %c0_i32_1 = arith.constant 0 : i32
    return %c0_i32, %c0_i32_0 : i32, i32
  }
  func.func @transform_19(%arg0: i32, %arg1: i32) -> (i32, i32) {
    %c0_i32 = arith.constant 0 : i32
    %c0_i32_0 = arith.constant 0 : i32
    %c0_i32_1 = arith.constant 0 : i32
    return %c0_i32, %c0_i32_0 : i32, i32
  }
  func.func @transform_20(%arg0: i32, %arg1: i32) -> (i32, i32) {
    %c0_i32 = arith.constant 0 : i32
    %c0_i32_0 = arith.constant 0 : i32
    %c0_i32_1 = arith.constant 0 : i32
    return %c0_i32, %c0_i32_0 : i32, i32
  }
  func.func @transform_21(%arg0: i32, %arg1: i32) -> (i32, i32) {
    %c0_i32 = arith.constant 0 : i32
    %c0_i32_0 = arith.constant 0 : i32
    %c0_i32_1 = arith.constant 0 : i32
    return %c0_i32, %c0_i32_0 : i32, i32
  }
  func.func @transform_22(%arg0: i32, %arg1: i32) -> (i32, i32) {
    %c0_i32 = arith.constant 0 : i32
    %c0_i32_0 = arith.constant 0 : i32
    %c0_i32_1 = arith.constant 0 : i32
    return %c0_i32, %c0_i32_0 : i32, i32
  }
  func.func @transform_23(%arg0: i32, %arg1: i32) -> (i32, i32) {
    %c0_i32 = arith.constant 0 : i32
    %c0_i32_0 = arith.constant 0 : i32
    %c0_i32_1 = arith.constant 0 : i32
    return %c0_i32, %c0_i32_0 : i32, i32
  }
  func.func @transform_24(%arg0: i32, %arg1: i32) -> (i32, i32) {
    %c0_i32 = arith.constant 0 : i32
    %c0_i32_0 = arith.constant 0 : i32
    %c0_i32_1 = arith.constant 0 : i32
    return %c0_i32, %c0_i32_0 : i32, i32
  }
  func.func @transform_25(%arg0: i32, %arg1: i32) -> (i32, i32) {
    %c0_i32 = arith.constant 0 : i32
    %c0_i32_0 = arith.constant 0 : i32
    %c0_i32_1 = arith.constant 0 : i32
    return %c0_i32, %c0_i32_0 : i32, i32
  }
  func.func @transform_26(%arg0: i32, %arg1: i32) -> (i32, i32) {
    %c0_i32 = arith.constant 0 : i32
    %c0_i32_0 = arith.constant 0 : i32
    %c0_i32_1 = arith.constant 0 : i32
    return %c0_i32, %c0_i32_0 : i32, i32
  }
  func.func @transform_27(%arg0: i32, %arg1: i32) -> (i32, i32) {
    %c0_i32 = arith.constant 0 : i32
    %c0_i32_0 = arith.constant 0 : i32
    %c0_i32_1 = arith.constant 0 : i32
    return %c0_i32, %c0_i32_0 : i32, i32
  }
  func.func @transform_28(%arg0: i32, %arg1: i32) -> (i32, i32) {
    %c0_i32 = arith.constant 0 : i32
    %c0_i32_0 = arith.constant 0 : i32
    %c0_i32_1 = arith.constant 0 : i32
    return %c0_i32, %c0_i32_0 : i32, i32
  }
  func.func @transform_29(%arg0: i32, %arg1: i32) -> (i32, i32) {
    %c0_i32 = arith.constant 0 : i32
    %c0_i32_0 = arith.constant 0 : i32
    %c0_i32_1 = arith.constant 0 : i32
    return %c0_i32, %c0_i32_0 : i32, i32
  }
  func.func @transform_30(%arg0: i32, %arg1: i32) -> (i32, i32) {
    %c0_i32 = arith.constant 0 : i32
    %c0_i32_0 = arith.constant 0 : i32
    %c0_i32_1 = arith.constant 0 : i32
    return %c0_i32, %c0_i32_0 : i32, i32
  }
  func.func @transform_31(%arg0: i32, %arg1: i32) -> (i32, i32, i32) {
    %c0_i32 = arith.constant 0 : i32
    %c0_i32_0 = arith.constant 0 : i32
    return %arg0, %arg1, %c0_i32 : i32, i32, i32
  }
}

</mosaic_0001>

<llo_original>
// kernel: tpu_custom_call.1
$region0: #{tpu_custom_call.1}
  #allocation0 [shape = 'u32[]', space=smem, size = 0x4, offset = 0x4, fixed_abs, tag = 'smem constant byte address 0x4 - core index']
  #allocation1 [shape = 'u32[144,128]{1,0:T(1,128)}', space=vmem, size = 0x12000, scoped, tag = 'internal scratch']
  #allocation2 [shape = 'bf16[4,8,8]{2,1,0:T(8,128)(2,1)}', space=vmem, size = 0x2000, scoped, tag = 'scratch operand']
  #allocation3 [shape = 'bf16[4,8,8]{2,1,0:T(8,128)(2,1)}', space=vmem, size = 0x2000, scoped, tag = 'scratch operand']
  #allocation4 [shape = 'bf16[4,16,8]{2,1,0:T(16,128)(2,1)}', space=vmem, size = 0x4000, scoped, tag = 'scratch operand']
  #allocation5 [shape = 'bf16[4,16,8]{2,1,0:T(16,128)(2,1)}', space=vmem, size = 0x4000, scoped, tag = 'scratch operand']
  %s0 = inlined_call_operand.smem [shape: u32[32], index: -1, kind: input, shape index: {}]
  %s1 = sld [smem:[%s0]]
  %s2 = scalar_lea.smem %s0, 1
  %s3 = sld [smem:[%s2]]
  %s4 = scalar_lea.smem %s0, 2
  %s5 = sld [smem:[%s4]]
  %s6 = scalar_lea.smem %s0, 3
  %s7 = sld [smem:[%s6]]
  %s8 = scalar_lea.smem %s0, 4
  %s9 = sld [smem:[%s8]]
  %s10 = scalar_lea.smem %s0, 5
  %s11 = sld [smem:[%s10]]
  %s12 = scalar_lea.smem %s0, 6
  %s13 = sld [smem:[%s12]]
  %s14 = scalar_lea.smem %s0, 7
  %s15 = sld [smem:[%s14]]
  %s16 = scalar_lea.smem %s0, 8
  %s17 = sld [smem:[%s16]]
  %s18 = scalar_lea.smem %s0, 9
  %s19 = sld [smem:[%s18]]
  %s20 = scalar_lea.smem %s0, 10
  %s21 = sld [smem:[%s20]]
  %s22 = scalar_lea.smem %s0, 11
  %s23 = sld [smem:[%s22]]
  %s24 = scalar_lea.smem %s0, 12
  %s25 = sld [smem:[%s24]]
  %s26 = scalar_lea.smem %s0, 13
  %s27 = sld [smem:[%s26]]
  %s28 = scalar_lea.smem %s0, 14
  %s29 = sld [smem:[%s28]]
  %s30 = scalar_lea.smem %s0, 15
  %s31 = sld [smem:[%s30]]
  %s32 = scalar_lea.smem %s0, 16
  %s33 = sld [smem:[%s32]]
  %s34 = scalar_lea.smem %s0, 17
  %s35 = sld [smem:[%s34]]
  %s36 = scalar_lea.smem %s0, 18
  %s37 = sld [smem:[%s36]]
  %s38 = scalar_lea.smem %s0, 19
  %s39 = sld [smem:[%s38]]
  %s40 = scalar_lea.smem %s0, 20
  %s41 = sld [smem:[%s40]]
  %s42 = scalar_lea.smem %s0, 21
  %s43 = sld [smem:[%s42]]
  %s44 = scalar_lea.smem %s0, 22
  %s45 = sld [smem:[%s44]]
  %s46 = scalar_lea.smem %s0, 23
  %s47 = sld [smem:[%s46]]
  %s48 = scalar_lea.smem %s0, 24
  %s49 = sld [smem:[%s48]]
  %s50 = scalar_lea.smem %s0, 25
  %s51 = sld [smem:[%s50]]
  %s52 = scalar_lea.smem %s0, 26
  %s53 = sld [smem:[%s52]]
  %s54 = scalar_lea.smem %s0, 27
  %s55 = sld [smem:[%s54]]
  %s56 = scalar_lea.smem %s0, 28
  %s57 = sld [smem:[%s56]]
  %s58 = scalar_lea.smem %s0, 29
  %s59 = sld [smem:[%s58]]
  %s60 = scalar_lea.smem %s0, 30
  %s61 = sld [smem:[%s60]]
  %s62 = scalar_lea.smem %s0, 31
  %s63 = sld [smem:[%s62]]
  %s64 = sld [smem:[#allocation0]]
  $region213: #{tpu_custom_call.1} parent=0
    _
  %s66 = ssub.s32 1, %s64
  %s67 = scalar_select 0, %s66, %s64
  $region1: #{tpu_custom_call.1} parent=0
    #allocation6 [shape = 'u8[1024]{0}', space=vmem, size = 0x400, scoped, tag = 'input window, operand 3, single buffered']
    #allocation7 [shape = 's32[2]{0}', space=sflag, size = 0x8, scoped, tag = 'scoped memory for tpu_custom_call.1']
    #allocation8 [shape = 's32[2]{0}', space=sflag, size = 0x8, scoped, tag = 'scoped memory for tpu_custom_call.1']
    #allocation9 [shape = 'u8[2048]{0}', space=vmem, size = 0x800, scoped, tag = 'input window, operand 4']
    #allocation10 [shape = 's32[2]{0}', space=sflag, size = 0x8, scoped, tag = 'scoped memory for tpu_custom_call.1']
    #allocation11 [shape = 'u8[512]{0}', space=vmem, size = 0x400, scoped, tag = 'input window, operand 6, single buffered']
    #allocation12 [shape = 'u8[8192]{0}', space=vmem, size = 0x2000, scoped, tag = 'input window, operand 7, single buffered']
    #allocation13 [shape = 's32[1]{0}', space=sflag, size = 0x4, scoped, tag = 'scoped memory for tpu_custom_call.1']
    #allocation14 [shape = 'u8[512]{0}', space=vmem, size = 0x400, scoped, tag = 'input window, operand 8, single buffered']
    #allocation15 [shape = 'u8[512]{0}', space=vmem, size = 0x400, scoped, tag = 'input window, operand 10, single buffered']
    #allocation16 [shape = 's32[1]{0}', space=sflag, size = 0x4, scoped, tag = 'scoped memory for tpu_custom_call.1']
    #allocation17 [shape = 'u8[8192]{0}', space=vmem, size = 0x2000, scoped, tag = 'input window, operand 11, single buffered']
    #allocation18 [shape = 'u8[512]{0}', space=vmem, size = 0x400, scoped, tag = 'input window, operand 12, single buffered']
    #allocation19 [shape = 's32[1]{0}', space=sflag, size = 0x4, scoped, tag = 'scoped memory for tpu_custom_call.1']
    #allocation20 [shape = 'u8[512]{0}', space=vmem, size = 0x400, scoped, tag = 'input window, operand 13, single buffered']
    #allocation21 [shape = 'u8[512]{0}', space=vmem, size = 0x400, scoped, tag = 'input window, operand 14, single buffered']
    #allocation22 [shape = 's32[1]{0}', space=sflag, size = 0x4, scoped, tag = 'scoped memory for tpu_custom_call.1']
    #allocation23 [shape = 'u8[512]{0}', space=vmem, size = 0x400, scoped, tag = 'input window, operand 16, single buffered']
    #allocation24 [shape = 'u8[8192]{0}', space=vmem, size = 0x2000, scoped, tag = 'input window, operand 19, single buffered']
    #allocation25 [shape = 's32[1]{0}', space=sflag, size = 0x4, scoped, tag = 'scoped memory for tpu_custom_call.1']
    #allocation26 [shape = 'u8[8192]{0}', space=vmem, size = 0x2000, scoped, tag = 'input window, operand 21, single buffered']
    #allocation27 [shape = 'u8[8192]{0}', space=vmem, size = 0x2000, scoped, tag = 'output window, operand 0']
    %68 = vsyncpa [#allocation7], 0
    %69 = vsyncpa [#allocation10], 0
    %s70 = scalar_lea.sflag [#allocation10], 1
    %71 = vsyncpa %s70, 0
    %72 = vsyncpa [#allocation13], 0
    %73 = vsyncpa [#allocation16], 0
    %74 = vsyncpa [#allocation19], 0
    %75 = vsyncpa [#allocation22], 0
    %76 = vsyncpa [#allocation25], 0
    %77 = vsyncpa [#allocation8], 0
    %s78 = scalar_lea.sflag [#allocation8], 1
    %79 = vsyncpa %s78, 0
    loop: start=0, step=1, limit=4
    $region2: #{tpu_custom_call.1} parent=1 // loop_pre_header
      _
    $region3: #{tpu_custom_call.1} parent=1 // loop_header
      %s81 = sphi 0, %s85
      %p82 = scmp.ge.s32.totalorder %s81, 4
      %s88 = sphi 0, %s100
      %s89 = sphi 0, %s96
      %s90 = sphi 0, %s88
      %s91 = sphi 0, %s89
      %s92 = sphi 0, %s90
      %s93 = sphi 0, %s91
      %s105 = sphi 0, %s107
      %s108 = sphi 0, %s105
      %s109 = sphi 0, %s108
      %s125 = sphi 0, %s109
      %s131 = sphi 0, %s133
      %s134 = sphi 0, %s131
      %s135 = sphi 0, %s134
      %s151 = sphi 0, %s135
      %s157 = sphi 0, %s159
      %s160 = sphi 0, %s157
      %s161 = sphi 0, %s160
      %s177 = sphi 0, %s161
      %s183 = sphi 0, %s185
      %s186 = sphi 0, %s183
      %s187 = sphi 0, %s186
      %s203 = sphi 0, %s187
      %s211 = sphi 0, %s213
      %s214 = sphi 0, %s211
      %s215 = sphi 0, %s214
      %s231 = sphi 0, %s215
      %s235 = sphi 0, %s235
      %s237 = sphi 0, %s235
      %s238 = sphi 0, %s237
      %s252 = sphi 0, %s238
      %s256 = sphi 0, %s256
      %s258 = sphi 0, %s256
      %s259 = sphi 0, %s258
      %s273 = sphi 0, %s259
      %s277 = sphi 0, %s277
      %s279 = sphi 0, %s277
      %s280 = sphi 0, %s279
      %s294 = sphi 0, %s280
      %s298 = sphi 0, %s298
      %s300 = sphi 0, %s298
      %s301 = sphi 0, %s300
      %s315 = sphi 0, %s301
      %s319 = sphi 0, %s319
      %s321 = sphi 0, %s319
      %s322 = sphi 0, %s321
      %s336 = sphi 0, %s322
      %s340 = sphi 0, %s340
      %s342 = sphi 0, %s340
      %s343 = sphi 0, %s342
      %s357 = sphi 0, %s343
      %s361 = sphi 0, %s361
      %s363 = sphi 0, %s361
      %s364 = sphi 0, %s363
      %s378 = sphi 0, %s364
      %s382 = sphi 0, %s382
      %s384 = sphi 0, %s382
      %s385 = sphi 0, %s384
      %s399 = sphi 0, %s385
      %s403 = sphi 0, %s403
      %s405 = sphi 0, %s403
      %s406 = sphi 0, %s405
      %s420 = sphi 0, %s406
      %s424 = sphi 0, %s424
      %s426 = sphi 0, %s424
      %s427 = sphi 0, %s426
      %s441 = sphi 0, %s427
      %s445 = sphi 0, %s445
      %s447 = sphi 0, %s445
      %s448 = sphi 0, %s447
      %s462 = sphi 0, %s448
      %s466 = sphi 0, %s466
      %s468 = sphi 0, %s466
      %s469 = sphi 0, %s468
      %s483 = sphi 0, %s469
      %s487 = sphi 0, %s487
      %s489 = sphi 0, %s487
      %s490 = sphi 0, %s489
      %s504 = sphi 0, %s490
      %s508 = sphi 0, %s508
      %s510 = sphi 0, %s508
      %s511 = sphi 0, %s510
      %s525 = sphi 0, %s511
      %s529 = sphi 0, %s529
      %s531 = sphi 0, %s529
      %s532 = sphi 0, %s531
      %s546 = sphi 0, %s532
      %s550 = sphi 0, %s550
      %s552 = sphi 0, %s550
      %s553 = sphi 0, %s552
      %s567 = sphi 0, %s553
      %s571 = sphi 0, %s571
      %s573 = sphi 0, %s571
      %s574 = sphi 0, %s573
      %s588 = sphi 0, %s574
      %s592 = sphi 0, %s592
      %s594 = sphi 0, %s592
      %s595 = sphi 0, %s594
      %s609 = sphi 0, %s595
      %s613 = sphi 0, %s613
      %s615 = sphi 0, %s613
      %s616 = sphi 0, %s615
      %s630 = sphi 0, %s616
      %s634 = sphi 0, %s634
      %s636 = sphi 0, %s634
      %s637 = sphi 0, %s636
      %s651 = sphi 0, %s637
      %s655 = sphi 0, %s655
      %s657 = sphi 0, %s655
      %s658 = sphi 0, %s657
      %s672 = sphi 0, %s658
      %s676 = sphi 0, %s676
      %s678 = sphi 0, %s676
      %s679 = sphi 0, %s678
      %s693 = sphi 0, %s679
      %s697 = sphi 0, %s697
      %s699 = sphi 0, %s697
      %s700 = sphi 0, %s699
      %s714 = sphi 0, %s700
      %s718 = sphi 0, %s718
      %s720 = sphi 0, %s718
      %s721 = sphi 0, %s720
      %s735 = sphi 0, %s721
      %s739 = sphi 0, %s739
      %s741 = sphi 0, %s739
      %s742 = sphi 0, %s741
      %s756 = sphi 0, %s742
      %s760 = sphi 0, %s760
      %s762 = sphi 0, %s760
      %s763 = sphi 0, %s762
      %s777 = sphi 0, %s763
      %s785 = sphi 0, %s787
      %s788 = sphi 0, %s785
      %s789 = sphi 0, %s788
      %s805 = sphi 0, %s789
    $region4: #{tpu_custom_call.1} parent=1 // loop_header_branch
      %84 = sbr.rel (%p82) target = $region8
    $region5: #{tpu_custom_call.1} parent=1 // loop_body
      %s86 = ssub.s32 %s81, 1
      %s87 = ssub.s32 %s81, 2
      %s94 = sadd.s32 1, %s89
      %p95 = scmp.ge.s32.totalorder %s94, 1
      %s96 = scalar_select %p95, 0, %s94
      %s97 = sadd.s32 1, %s88
      %s98 = scalar_select %p95, %s97, %s88
      %p99 = scmp.ge.s32.totalorder %s98, 2
      %s100 = scalar_select %p99, 0, %s98
      %s101 = ssub.s32 %s88, %s100
      %s102 = ssub.s32 %s89, %s96
      %s103 = sor.u32 %s101, %s102
      %p104 = scmp.eq.s32.totalorder %s103, 0
      %s106 = sadd.s32 %s105, 1
      %s107 = scalar_select %p104, %s105, %s106
      %p110 = pneg %p104
      %p111 = scmp.eq.s32.totalorder %s81, 1
      %p112 = por %p110, %p111
      %p113 = scmp.ne.s32.totalorder %s105, %s108
      %p114 = scmp.eq.s32.totalorder %s81, 0
      %p115 = por %p113, %p114
      %p116 = scmp.ne.s32.totalorder %s105, %s108
      %p117 = scmp.eq.s32.totalorder %s86, 1
      %p118 = por %p116, %p117
      %p119 = scmp.ne.s32.totalorder %s108, %s109
      %p120 = scmp.eq.s32.totalorder %s86, 0
      %p121 = por %p119, %p120
      %p122 = scmp.ne.s32.totalorder %s108, %s109
      %p123 = scmp.eq.s32.totalorder %s87, 1
      %p124 = por %p122, %p123
      %p126 = scmp.ne.s32.totalorder %s109, %s125
      %p127 = scmp.eq.s32.totalorder %s87, 0
      %p128 = por %p126, %p127
      %s129 = ssub.s32 %s88, %s100
      %p130 = scmp.eq.s32.totalorder %s129, 0
      %s132 = sadd.s32 %s131, 1
      %s133 = scalar_select %p130, %s131, %s132
      %p136 = pneg %p130
      %p137 = scmp.eq.s32.totalorder %s81, 1
      %p138 = por %p136, %p137
      %p139 = scmp.ne.s32.totalorder %s131, %s134
      %p140 = scmp.eq.s32.totalorder %s81, 0
      %p141 = por %p139, %p140
      %p142 = scmp.ne.s32.totalorder %s131, %s134
      %p143 = scmp.eq.s32.totalorder %s86, 1
      %p144 = por %p142, %p143
      %p145 = scmp.ne.s32.totalorder %s134, %s135
      %p146 = scmp.eq.s32.totalorder %s86, 0
      %p147 = por %p145, %p146
      %p148 = scmp.ne.s32.totalorder %s134, %s135
      %p149 = scmp.eq.s32.totalorder %s87, 1
      %p150 = por %p148, %p149
      %p152 = scmp.ne.s32.totalorder %s135, %s151
      %p153 = scmp.eq.s32.totalorder %s87, 0
      %p154 = por %p152, %p153
      %s155 = ssub.s32 %s88, %s100
      %p156 = scmp.eq.s32.totalorder %s155, 0
      %s158 = sadd.s32 %s157, 1
      %s159 = scalar_select %p156, %s157, %s158
      %p162 = pneg %p156
      %p163 = scmp.eq.s32.totalorder %s81, 1
      %p164 = por %p162, %p163
      %p165 = scmp.ne.s32.totalorder %s157, %s160
      %p166 = scmp.eq.s32.totalorder %s81, 0
      %p167 = por %p165, %p166
      %p168 = scmp.ne.s32.totalorder %s157, %s160
      %p169 = scmp.eq.s32.totalorder %s86, 1
      %p170 = por %p168, %p169
      %p171 = scmp.ne.s32.totalorder %s160, %s161
      %p172 = scmp.eq.s32.totalorder %s86, 0
      %p173 = por %p171, %p172
      %p174 = scmp.ne.s32.totalorder %s160, %s161
      %p175 = scmp.eq.s32.totalorder %s87, 1
      %p176 = por %p174, %p175
      %p178 = scmp.ne.s32.totalorder %s161, %s177
      %p179 = scmp.eq.s32.totalorder %s87, 0
      %p180 = por %p178, %p179
      %s181 = ssub.s32 %s89, %s96
      %p182 = scmp.eq.s32.totalorder %s181, 0
      %s184 = sadd.s32 %s183, 1
      %s185 = scalar_select %p182, %s183, %s184
      %p188 = pneg %p182
      %p189 = scmp.eq.s32.totalorder %s81, 1
      %p190 = por %p188, %p189
      %p191 = scmp.ne.s32.totalorder %s183, %s186
      %p192 = scmp.eq.s32.totalorder %s81, 0
      %p193 = por %p191, %p192
      %p194 = scmp.ne.s32.totalorder %s183, %s186
      %p195 = scmp.eq.s32.totalorder %s86, 1
      %p196 = por %p194, %p195
      %p197 = scmp.ne.s32.totalorder %s186, %s187
      %p198 = scmp.eq.s32.totalorder %s86, 0
      %p199 = por %p197, %p198
      %p200 = scmp.ne.s32.totalorder %s186, %s187
      %p201 = scmp.eq.s32.totalorder %s87, 1
      %p202 = por %p200, %p201
      %p204 = scmp.ne.s32.totalorder %s187, %s203
      %p205 = scmp.eq.s32.totalorder %s87, 0
      %p206 = por %p204, %p205
      %s207 = ssub.s32 %s88, %s100
      %s208 = ssub.s32 %s89, %s96
      %s209 = sor.u32 %s207, %s208
      %p210 = scmp.eq.s32.totalorder %s209, 0
      %s212 = sadd.s32 %s211, 1
      %s213 = scalar_select %p210, %s211, %s212
      %p216 = pneg %p210
      %p217 = scmp.eq.s32.totalorder %s81, 1
      %p218 = por %p216, %p217
      %p219 = scmp.ne.s32.totalorder %s211, %s214
      %p220 = scmp.eq.s32.totalorder %s81, 0
      %p221 = por %p219, %p220
      %p222 = scmp.ne.s32.totalorder %s211, %s214
      %p223 = scmp.eq.s32.totalorder %s86, 1
      %p224 = por %p222, %p223
      %p225 = scmp.ne.s32.totalorder %s214, %s215
      %p226 = scmp.eq.s32.totalorder %s86, 0
      %p227 = por %p225, %p226
      %p228 = scmp.ne.s32.totalorder %s214, %s215
      %p229 = scmp.eq.s32.totalorder %s87, 1
      %p230 = por %p228, %p229
      %p232 = scmp.ne.s32.totalorder %s215, %s231
      %p233 = scmp.eq.s32.totalorder %s87, 0
      %p234 = por %p232, %p233
      %s236 = sadd.s32 %s235, 1
      %p239 = scmp.eq.s32.totalorder %s81, 1
      %p240 = scmp.ne.s32.totalorder %s235, %s237
      %p241 = scmp.eq.s32.totalorder %s81, 0
      %p242 = por %p240, %p241
      %p243 = scmp.ne.s32.totalorder %s235, %s237
      %p244 = scmp.eq.s32.totalorder %s86, 1
      %p245 = por %p243, %p244
      %p246 = scmp.ne.s32.totalorder %s237, %s238
      %p247 = scmp.eq.s32.totalorder %s86, 0
      %p248 = por %p246, %p247
      %p249 = scmp.ne.s32.totalorder %s237, %s238
      %p250 = scmp.eq.s32.totalorder %s87, 1
      %p251 = por %p249, %p250
      %p253 = scmp.ne.s32.totalorder %s238, %s252
      %p254 = scmp.eq.s32.totalorder %s87, 0
      %p255 = por %p253, %p254
      %s257 = sadd.s32 %s256, 1
      %p260 = scmp.eq.s32.totalorder %s81, 1
      %p261 = scmp.ne.s32.totalorder %s256, %s258
      %p262 = scmp.eq.s32.totalorder %s81, 0
      %p263 = por %p261, %p262
      %p264 = scmp.ne.s32.totalorder %s256, %s258
      %p265 = scmp.eq.s32.totalorder %s86, 1
      %p266 = por %p264, %p265
      %p267 = scmp.ne.s32.totalorder %s258, %s259
      %p268 = scmp.eq.s32.totalorder %s86, 0
      %p269 = por %p267, %p268
      %p270 = scmp.ne.s32.totalorder %s258, %s259
      %p271 = scmp.eq.s32.totalorder %s87, 1
      %p272 = por %p270, %p271
      %p274 = scmp.ne.s32.totalorder %s259, %s273
      %p275 = scmp.eq.s32.totalorder %s87, 0
      %p276 = por %p274, %p275
      %s278 = sadd.s32 %s277, 1
      %p281 = scmp.eq.s32.totalorder %s81, 1
      %p282 = scmp.ne.s32.totalorder %s277, %s279
      %p283 = scmp.eq.s32.totalorder %s81, 0
      %p284 = por %p282, %p283
      %p285 = scmp.ne.s32.totalorder %s277, %s279
      %p286 = scmp.eq.s32.totalorder %s86, 1
      %p287 = por %p285, %p286
      %p288 = scmp.ne.s32.totalorder %s279, %s280
      %p289 = scmp.eq.s32.totalorder %s86, 0
      %p290 = por %p288, %p289
      %p291 = scmp.ne.s32.totalorder %s279, %s280
      %p292 = scmp.eq.s32.totalorder %s87, 1
      %p293 = por %p291, %p292
      %p295 = scmp.ne.s32.totalorder %s280, %s294
      %p296 = scmp.eq.s32.totalorder %s87, 0
      %p297 = por %p295, %p296
      %s299 = sadd.s32 %s298, 1
      %p302 = scmp.eq.s32.totalorder %s81, 1
      %p303 = scmp.ne.s32.totalorder %s298, %s300
      %p304 = scmp.eq.s32.totalorder %s81, 0
      %p305 = por %p303, %p304
      %p306 = scmp.ne.s32.totalorder %s298, %s300
      %p307 = scmp.eq.s32.totalorder %s86, 1
      %p308 = por %p306, %p307
      %p309 = scmp.ne.s32.totalorder %s300, %s301
      %p310 = scmp.eq.s32.totalorder %s86, 0
      %p311 = por %p309, %p310
      %p312 = scmp.ne.s32.totalorder %s300, %s301
      %p313 = scmp.eq.s32.totalorder %s87, 1
      %p314 = por %p312, %p313
      %p316 = scmp.ne.s32.totalorder %s301, %s315
      %p317 = scmp.eq.s32.totalorder %s87, 0
      %p318 = por %p316, %p317
      %s320 = sadd.s32 %s319, 1
      %p323 = scmp.eq.s32.totalorder %s81, 1
      %p324 = scmp.ne.s32.totalorder %s319, %s321
      %p325 = scmp.eq.s32.totalorder %s81, 0
      %p326 = por %p324, %p325
      %p327 = scmp.ne.s32.totalorder %s319, %s321
      %p328 = scmp.eq.s32.totalorder %s86, 1
      %p329 = por %p327, %p328
      %p330 = scmp.ne.s32.totalorder %s321, %s322
      %p331 = scmp.eq.s32.totalorder %s86, 0
      %p332 = por %p330, %p331
      %p333 = scmp.ne.s32.totalorder %s321, %s322
      %p334 = scmp.eq.s32.totalorder %s87, 1
      %p335 = por %p333, %p334
      %p337 = scmp.ne.s32.totalorder %s322, %s336
      %p338 = scmp.eq.s32.totalorder %s87, 0
      %p339 = por %p337, %p338
      %s341 = sadd.s32 %s340, 1
      %p344 = scmp.eq.s32.totalorder %s81, 1
      %p345 = scmp.ne.s32.totalorder %s340, %s342
      %p346 = scmp.eq.s32.totalorder %s81, 0
      %p347 = por %p345, %p346
      %p348 = scmp.ne.s32.totalorder %s340, %s342
      %p349 = scmp.eq.s32.totalorder %s86, 1
      %p350 = por %p348, %p349
      %p351 = scmp.ne.s32.totalorder %s342, %s343
      %p352 = scmp.eq.s32.totalorder %s86, 0
      %p353 = por %p351, %p352
      %p354 = scmp.ne.s32.totalorder %s342, %s343
      %p355 = scmp.eq.s32.totalorder %s87, 1
      %p356 = por %p354, %p355
      %p358 = scmp.ne.s32.totalorder %s343, %s357
      %p359 = scmp.eq.s32.totalorder %s87, 0
      %p360 = por %p358, %p359
      %s362 = sadd.s32 %s361, 1
      %p365 = scmp.eq.s32.totalorder %s81, 1
      %p366 = scmp.ne.s32.totalorder %s361, %s363
      %p367 = scmp.eq.s32.totalorder %s81, 0
      %p368 = por %p366, %p367
      %p369 = scmp.ne.s32.totalorder %s361, %s363
      %p370 = scmp.eq.s32.totalorder %s86, 1
      %p371 = por %p369, %p370
      %p372 = scmp.ne.s32.totalorder %s363, %s364
      %p373 = scmp.eq.s32.totalorder %s86, 0
      %p374 = por %p372, %p373
      %p375 = scmp.ne.s32.totalorder %s363, %s364
      %p376 = scmp.eq.s32.totalorder %s87, 1
      %p377 = por %p375, %p376
      %p379 = scmp.ne.s32.totalorder %s364, %s378
      %p380 = scmp.eq.s32.totalorder %s87, 0
      %p381 = por %p379, %p380
      %s383 = sadd.s32 %s382, 1
      %p386 = scmp.eq.s32.totalorder %s81, 1
      %p387 = scmp.ne.s32.totalorder %s382, %s384
      %p388 = scmp.eq.s32.totalorder %s81, 0
      %p389 = por %p387, %p388
      %p390 = scmp.ne.s32.totalorder %s382, %s384
      %p391 = scmp.eq.s32.totalorder %s86, 1
      %p392 = por %p390, %p391
      %p393 = scmp.ne.s32.totalorder %s384, %s385
      %p394 = scmp.eq.s32.totalorder %s86, 0
      %p395 = por %p393, %p394
      %p396 = scmp.ne.s32.totalorder %s384, %s385
      %p397 = scmp.eq.s32.totalorder %s87, 1
      %p398 = por %p396, %p397
      %p400 = scmp.ne.s32.totalorder %s385, %s399
      %p401 = scmp.eq.s32.totalorder %s87, 0
      %p402 = por %p400, %p401
      %s404 = sadd.s32 %s403, 1
      %p407 = scmp.eq.s32.totalorder %s81, 1
      %p408 = scmp.ne.s32.totalorder %s403, %s405
      %p409 = scmp.eq.s32.totalorder %s81, 0
      %p410 = por %p408, %p409
      %p411 = scmp.ne.s32.totalorder %s403, %s405
      %p412 = scmp.eq.s32.totalorder %s86, 1
      %p413 = por %p411, %p412
      %p414 = scmp.ne.s32.totalorder %s405, %s406
      %p415 = scmp.eq.s32.totalorder %s86, 0
      %p416 = por %p414, %p415
      %p417 = scmp.ne.s32.totalorder %s405, %s406
      %p418 = scmp.eq.s32.totalorder %s87, 1
      %p419 = por %p417, %p418
      %p421 = scmp.ne.s32.totalorder %s406, %s420
      %p422 = scmp.eq.s32.totalorder %s87, 0
      %p423 = por %p421, %p422
      %s425 = sadd.s32 %s424, 1
      %p428 = scmp.eq.s32.totalorder %s81, 1
      %p429 = scmp.ne.s32.totalorder %s424, %s426
      %p430 = scmp.eq.s32.totalorder %s81, 0
      %p431 = por %p429, %p430
      %p432 = scmp.ne.s32.totalorder %s424, %s426
      %p433 = scmp.eq.s32.totalorder %s86, 1
      %p434 = por %p432, %p433
      %p435 = scmp.ne.s32.totalorder %s426, %s427
      %p436 = scmp.eq.s32.totalorder %s86, 0
      %p437 = por %p435, %p436
      %p438 = scmp.ne.s32.totalorder %s426, %s427
      %p439 = scmp.eq.s32.totalorder %s87, 1
      %p440 = por %p438, %p439
      %p442 = scmp.ne.s32.totalorder %s427, %s441
      %p443 = scmp.eq.s32.totalorder %s87, 0
      %p444 = por %p442, %p443
      %s446 = sadd.s32 %s445, 1
      %p449 = scmp.eq.s32.totalorder %s81, 1
      %p450 = scmp.ne.s32.totalorder %s445, %s447
      %p451 = scmp.eq.s32.totalorder %s81, 0
      %p452 = por %p450, %p451
      %p453 = scmp.ne.s32.totalorder %s445, %s447
      %p454 = scmp.eq.s32.totalorder %s86, 1
      %p455 = por %p453, %p454
      %p456 = scmp.ne.s32.totalorder %s447, %s448
      %p457 = scmp.eq.s32.totalorder %s86, 0
      %p458 = por %p456, %p457
      %p459 = scmp.ne.s32.totalorder %s447, %s448
      %p460 = scmp.eq.s32.totalorder %s87, 1
      %p461 = por %p459, %p460
      %p463 = scmp.ne.s32.totalorder %s448, %s462
      %p464 = scmp.eq.s32.totalorder %s87, 0
      %p465 = por %p463, %p464
      %s467 = sadd.s32 %s466, 1
      %p470 = scmp.eq.s32.totalorder %s81, 1
      %p471 = scmp.ne.s32.totalorder %s466, %s468
      %p472 = scmp.eq.s32.totalorder %s81, 0
      %p473 = por %p471, %p472
      %p474 = scmp.ne.s32.totalorder %s466, %s468
      %p475 = scmp.eq.s32.totalorder %s86, 1
      %p476 = por %p474, %p475
      %p477 = scmp.ne.s32.totalorder %s468, %s469
      %p478 = scmp.eq.s32.totalorder %s86, 0
      %p479 = por %p477, %p478
      %p480 = scmp.ne.s32.totalorder %s468, %s469
      %p481 = scmp.eq.s32.totalorder %s87, 1
      %p482 = por %p480, %p481
      %p484 = scmp.ne.s32.totalorder %s469, %s483
      %p485 = scmp.eq.s32.totalorder %s87, 0
      %p486 = por %p484, %p485
      %s488 = sadd.s32 %s487, 1
      %p491 = scmp.eq.s32.totalorder %s81, 1
      %p492 = scmp.ne.s32.totalorder %s487, %s489
      %p493 = scmp.eq.s32.totalorder %s81, 0
      %p494 = por %p492, %p493
      %p495 = scmp.ne.s32.totalorder %s487, %s489
      %p496 = scmp.eq.s32.totalorder %s86, 1
      %p497 = por %p495, %p496
      %p498 = scmp.ne.s32.totalorder %s489, %s490
      %p499 = scmp.eq.s32.totalorder %s86, 0
      %p500 = por %p498, %p499
      %p501 = scmp.ne.s32.totalorder %s489, %s490
      %p502 = scmp.eq.s32.totalorder %s87, 1
      %p503 = por %p501, %p502
      %p505 = scmp.ne.s32.totalorder %s490, %s504
      %p506 = scmp.eq.s32.totalorder %s87, 0
      %p507 = por %p505, %p506
      %s509 = sadd.s32 %s508, 1
      %p512 = scmp.eq.s32.totalorder %s81, 1
      %p513 = scmp.ne.s32.totalorder %s508, %s510
      %p514 = scmp.eq.s32.totalorder %s81, 0
      %p515 = por %p513, %p514
      %p516 = scmp.ne.s32.totalorder %s508, %s510
      %p517 = scmp.eq.s32.totalorder %s86, 1
      %p518 = por %p516, %p517
      %p519 = scmp.ne.s32.totalorder %s510, %s511
      %p520 = scmp.eq.s32.totalorder %s86, 0
      %p521 = por %p519, %p520
      %p522 = scmp.ne.s32.totalorder %s510, %s511
      %p523 = scmp.eq.s32.totalorder %s87, 1
      %p524 = por %p522, %p523
      %p526 = scmp.ne.s32.totalorder %s511, %s525
      %p527 = scmp.eq.s32.totalorder %s87, 0
      %p528 = por %p526, %p527
      %s530 = sadd.s32 %s529, 1
      %p533 = scmp.eq.s32.totalorder %s81, 1
      %p534 = scmp.ne.s32.totalorder %s529, %s531
      %p535 = scmp.eq.s32.totalorder %s81, 0
      %p536 = por %p534, %p535
      %p537 = scmp.ne.s32.totalorder %s529, %s531
      %p538 = scmp.eq.s32.totalorder %s86, 1
      %p539 = por %p537, %p538
      %p540 = scmp.ne.s32.totalorder %s531, %s532
      %p541 = scmp.eq.s32.totalorder %s86, 0
      %p542 = por %p540, %p541
      %p543 = scmp.ne.s32.totalorder %s531, %s532
      %p544 = scmp.eq.s32.totalorder %s87, 1
      %p545 = por %p543, %p544
      %p547 = scmp.ne.s32.totalorder %s532, %s546
      %p548 = scmp.eq.s32.totalorder %s87, 0
      %p549 = por %p547, %p548
      %s551 = sadd.s32 %s550, 1
      %p554 = scmp.eq.s32.totalorder %s81, 1
      %p555 = scmp.ne.s32.totalorder %s550, %s552
      %p556 = scmp.eq.s32.totalorder %s81, 0
      %p557 = por %p555, %p556
      %p558 = scmp.ne.s32.totalorder %s550, %s552
      %p559 = scmp.eq.s32.totalorder %s86, 1
      %p560 = por %p558, %p559
      %p561 = scmp.ne.s32.totalorder %s552, %s553
      %p562 = scmp.eq.s32.totalorder %s86, 0
      %p563 = por %p561, %p562
      %p564 = scmp.ne.s32.totalorder %s552, %s553
      %p565 = scmp.eq.s32.totalorder %s87, 1
      %p566 = por %p564, %p565
      %p568 = scmp.ne.s32.totalorder %s553, %s567
      %p569 = scmp.eq.s32.totalorder %s87, 0
      %p570 = por %p568, %p569
      %s572 = sadd.s32 %s571, 1
      %p575 = scmp.eq.s32.totalorder %s81, 1
      %p576 = scmp.ne.s32.totalorder %s571, %s573
      %p577 = scmp.eq.s32.totalorder %s81, 0
      %p578 = por %p576, %p577
      %p579 = scmp.ne.s32.totalorder %s571, %s573
      %p580 = scmp.eq.s32.totalorder %s86, 1
      %p581 = por %p579, %p580
      %p582 = scmp.ne.s32.totalorder %s573, %s574
      %p583 = scmp.eq.s32.totalorder %s86, 0
      %p584 = por %p582, %p583
      %p585 = scmp.ne.s32.totalorder %s573, %s574
      %p586 = scmp.eq.s32.totalorder %s87, 1
      %p587 = por %p585, %p586
      %p589 = scmp.ne.s32.totalorder %s574, %s588
      %p590 = scmp.eq.s32.totalorder %s87, 0
      %p591 = por %p589, %p590
      %s593 = sadd.s32 %s592, 1
      %p596 = scmp.eq.s32.totalorder %s81, 1
      %p597 = scmp.ne.s32.totalorder %s592, %s594
      %p598 = scmp.eq.s32.totalorder %s81, 0
      %p599 = por %p597, %p598
      %p600 = scmp.ne.s32.totalorder %s592, %s594
      %p601 = scmp.eq.s32.totalorder %s86, 1
      %p602 = por %p600, %p601
      %p603 = scmp.ne.s32.totalorder %s594, %s595
      %p604 = scmp.eq.s32.totalorder %s86, 0
      %p605 = por %p603, %p604
      %p606 = scmp.ne.s32.totalorder %s594, %s595
      %p607 = scmp.eq.s32.totalorder %s87, 1
      %p608 = por %p606, %p607
      %p610 = scmp.ne.s32.totalorder %s595, %s609
      %p611 = scmp.eq.s32.totalorder %s87, 0
      %p612 = por %p610, %p611
      %s614 = sadd.s32 %s613, 1
      %p617 = scmp.eq.s32.totalorder %s81, 1
      %p618 = scmp.ne.s32.totalorder %s613, %s615
      %p619 = scmp.eq.s32.totalorder %s81, 0
      %p620 = por %p618, %p619
      %p621 = scmp.ne.s32.totalorder %s613, %s615
      %p622 = scmp.eq.s32.totalorder %s86, 1
      %p623 = por %p621, %p622
      %p624 = scmp.ne.s32.totalorder %s615, %s616
      %p625 = scmp.eq.s32.totalorder %s86, 0
      %p626 = por %p624, %p625
      %p627 = scmp.ne.s32.totalorder %s615, %s616
      %p628 = scmp.eq.s32.totalorder %s87, 1
      %p629 = por %p627, %p628
      %p631 = scmp.ne.s32.totalorder %s616, %s630
      %p632 = scmp.eq.s32.totalorder %s87, 0
      %p633 = por %p631, %p632
      %s635 = sadd.s32 %s634, 1
      %p638 = scmp.eq.s32.totalorder %s81, 1
      %p639 = scmp.ne.s32.totalorder %s634, %s636
      %p640 = scmp.eq.s32.totalorder %s81, 0
      %p641 = por %p639, %p640
      %p642 = scmp.ne.s32.totalorder %s634, %s636
      %p643 = scmp.eq.s32.totalorder %s86, 1
      %p644 = por %p642, %p643
      %p645 = scmp.ne.s32.totalorder %s636, %s637
      %p646 = scmp.eq.s32.totalorder %s86, 0
      %p647 = por %p645, %p646
      %p648 = scmp.ne.s32.totalorder %s636, %s637
      %p649 = scmp.eq.s32.totalorder %s87, 1
      %p650 = por %p648, %p649
      %p652 = scmp.ne.s32.totalorder %s637, %s651
      %p653 = scmp.eq.s32.totalorder %s87, 0
      %p654 = por %p652, %p653
      %s656 = sadd.s32 %s655, 1
      %p659 = scmp.eq.s32.totalorder %s81, 1
      %p660 = scmp.ne.s32.totalorder %s655, %s657
      %p661 = scmp.eq.s32.totalorder %s81, 0
      %p662 = por %p660, %p661
      %p663 = scmp.ne.s32.totalorder %s655, %s657
      %p664 = scmp.eq.s32.totalorder %s86, 1
      %p665 = por %p663, %p664
      %p666 = scmp.ne.s32.totalorder %s657, %s658
      %p667 = scmp.eq.s32.totalorder %s86, 0
      %p668 = por %p666, %p667
      %p669 = scmp.ne.s32.totalorder %s657, %s658
      %p670 = scmp.eq.s32.totalorder %s87, 1
      %p671 = por %p669, %p670
      %p673 = scmp.ne.s32.totalorder %s658, %s672
      %p674 = scmp.eq.s32.totalorder %s87, 0
      %p675 = por %p673, %p674
      %s677 = sadd.s32 %s676, 1
      %p680 = scmp.eq.s32.totalorder %s81, 1
      %p681 = scmp.ne.s32.totalorder %s676, %s678
      %p682 = scmp.eq.s32.totalorder %s81, 0
      %p683 = por %p681, %p682
      %p684 = scmp.ne.s32.totalorder %s676, %s678
      %p685 = scmp.eq.s32.totalorder %s86, 1
      %p686 = por %p684, %p685
      %p687 = scmp.ne.s32.totalorder %s678, %s679
      %p688 = scmp.eq.s32.totalorder %s86, 0
      %p689 = por %p687, %p688
      %p690 = scmp.ne.s32.totalorder %s678, %s679
      %p691 = scmp.eq.s32.totalorder %s87, 1
      %p692 = por %p690, %p691
      %p694 = scmp.ne.s32.totalorder %s679, %s693
      %p695 = scmp.eq.s32.totalorder %s87, 0
      %p696 = por %p694, %p695
      %s698 = sadd.s32 %s697, 1
      %p701 = scmp.eq.s32.totalorder %s81, 1
      %p702 = scmp.ne.s32.totalorder %s697, %s699
      %p703 = scmp.eq.s32.totalorder %s81, 0
      %p704 = por %p702, %p703
      %p705 = scmp.ne.s32.totalorder %s697, %s699
      %p706 = scmp.eq.s32.totalorder %s86, 1
      %p707 = por %p705, %p706
      %p708 = scmp.ne.s32.totalorder %s699, %s700
      %p709 = scmp.eq.s32.totalorder %s86, 0
      %p710 = por %p708, %p709
      %p711 = scmp.ne.s32.totalorder %s699, %s700
      %p712 = scmp.eq.s32.totalorder %s87, 1
      %p713 = por %p711, %p712
      %p715 = scmp.ne.s32.totalorder %s700, %s714
      %p716 = scmp.eq.s32.totalorder %s87, 0
      %p717 = por %p715, %p716
      %s719 = sadd.s32 %s718, 1
      %p722 = scmp.eq.s32.totalorder %s81, 1
      %p723 = scmp.ne.s32.totalorder %s718, %s720
      %p724 = scmp.eq.s32.totalorder %s81, 0
      %p725 = por %p723, %p724
      %p726 = scmp.ne.s32.totalorder %s718, %s720
      %p727 = scmp.eq.s32.totalorder %s86, 1
      %p728 = por %p726, %p727
      %p729 = scmp.ne.s32.totalorder %s720, %s721
      %p730 = scmp.eq.s32.totalorder %s86, 0
      %p731 = por %p729, %p730
      %p732 = scmp.ne.s32.totalorder %s720, %s721
      %p733 = scmp.eq.s32.totalorder %s87, 1
      %p734 = por %p732, %p733
      %p736 = scmp.ne.s32.totalorder %s721, %s735
      %p737 = scmp.eq.s32.totalorder %s87, 0
      %p738 = por %p736, %p737
      %s740 = sadd.s32 %s739, 1
      %p743 = scmp.eq.s32.totalorder %s81, 1
      %p744 = scmp.ne.s32.totalorder %s739, %s741
      %p745 = scmp.eq.s32.totalorder %s81, 0
      %p746 = por %p744, %p745
      %p747 = scmp.ne.s32.totalorder %s739, %s741
      %p748 = scmp.eq.s32.totalorder %s86, 1
      %p749 = por %p747, %p748
      %p750 = scmp.ne.s32.totalorder %s741, %s742
      %p751 = scmp.eq.s32.totalorder %s86, 0
      %p752 = por %p750, %p751
      %p753 = scmp.ne.s32.totalorder %s741, %s742
      %p754 = scmp.eq.s32.totalorder %s87, 1
      %p755 = por %p753, %p754
      %p757 = scmp.ne.s32.totalorder %s742, %s756
      %p758 = scmp.eq.s32.totalorder %s87, 0
      %p759 = por %p757, %p758
      %s761 = sadd.s32 %s760, 1
      %p764 = scmp.eq.s32.totalorder %s81, 1
      %p765 = scmp.ne.s32.totalorder %s760, %s762
      %p766 = scmp.eq.s32.totalorder %s81, 0
      %p767 = por %p765, %p766
      %p768 = scmp.ne.s32.totalorder %s760, %s762
      %p769 = scmp.eq.s32.totalorder %s86, 1
      %p770 = por %p768, %p769
      %p771 = scmp.ne.s32.totalorder %s762, %s763
      %p772 = scmp.eq.s32.totalorder %s86, 0
      %p773 = por %p771, %p772
      %p774 = scmp.ne.s32.totalorder %s762, %s763
      %p775 = scmp.eq.s32.totalorder %s87, 1
      %p776 = por %p774, %p775
      %p778 = scmp.ne.s32.totalorder %s763, %s777
      %p779 = scmp.eq.s32.totalorder %s87, 0
      %p780 = por %p778, %p779
      %s781 = ssub.s32 %s88, %s100
      %s782 = ssub.s32 %s89, %s96
      %s783 = sor.u32 %s781, %s782
      %p784 = scmp.eq.s32.totalorder %s783, 0
      %s786 = sadd.s32 %s785, 1
      %s787 = scalar_select %p784, %s785, %s786
      %p790 = pneg %p784
      %p791 = scmp.eq.s32.totalorder %s81, 1
      %p792 = por %p790, %p791
      %p793 = scmp.ne.s32.totalorder %s785, %s788
      %p794 = scmp.eq.s32.totalorder %s81, 0
      %p795 = por %p793, %p794
      %p796 = scmp.ne.s32.totalorder %s785, %s788
      %p797 = scmp.eq.s32.totalorder %s86, 1
      %p798 = por %p796, %p797
      %p799 = scmp.ne.s32.totalorder %s788, %s789
      %p800 = scmp.eq.s32.totalorder %s86, 0
      %p801 = por %p799, %p800
      %p802 = scmp.ne.s32.totalorder %s788, %s789
      %p803 = scmp.eq.s32.totalorder %s87, 1
      %p804 = por %p802, %p803
      %p806 = scmp.ne.s32.totalorder %s789, %s805
      %p807 = scmp.eq.s32.totalorder %s87, 0
      %p808 = por %p806, %p807
      %p809 = scmp.le.s32.totalorder 1, %s81
      %p810 = scmp.lt.s32.totalorder %s81, 3
      %p811 = pnand %p809, %p810
      %p812 = pneg %p811
      // Predicated region
      $region9: #{tpu_custom_call.1} parent=5 // pred_check
        _
      $region10: #{tpu_custom_call.1} parent=5 // pred_check_branch
        %814 = sbr.rel (%p811) target = $region12
      $region11: #{tpu_custom_call.1} parent=5 // pred_region
        %s815 = ssub.s32 %s81, 1
        // Predicated region
        $region13: #{tpu_custom_call.1} parent=11 // pred_check
          %p816 = pneg %p199
        $region14: #{tpu_custom_call.1} parent=11 // pred_check_branch
          %818 = sbr.rel (%p816) target = $region16
        $region15: #{tpu_custom_call.1} parent=11 // pred_region
          %s820 = ssub.s32 32, 32
          %821 = vsyncadd [#allocation7], %s820
          %s822 = smul.addr %s91, 32
          %s823 = scalar_lea.hbm %s7, %s822
          %s825 = sshll.u32 [#allocation6], 4
          %s826 = int_to_ptr.vmem [resolvable:$true] %s825
          %828 = dma.hbm_to_vmem [thread:$0]  %s823, 32, %s826, [#allocation7]
        $region16: #{tpu_custom_call.1} parent=11 // pred_fallthru
          _
        // Predicated region
        $region17: #{tpu_custom_call.1} parent=11 // pred_check
          %p829 = pneg %p248
        $region18: #{tpu_custom_call.1} parent=11 // pred_check_branch
          %831 = sbr.rel (%p829) target = $region20
        $region19: #{tpu_custom_call.1} parent=11 // pred_region
          _
        $region20: #{tpu_custom_call.1} parent=11 // pred_fallthru
          _
        // Predicated region
        $region21: #{tpu_custom_call.1} parent=11 // pred_check
          %p832 = pneg %p269
        $region22: #{tpu_custom_call.1} parent=11 // pred_check_branch
          %834 = sbr.rel (%p832) target = $region24
        $region23: #{tpu_custom_call.1} parent=11 // pred_region
          %s836 = ssub.s32 16, 16
          %837 = vsyncadd [#allocation10], %s836
          %s839 = sshll.u32 [#allocation11], 4
          %s840 = int_to_ptr.vmem [resolvable:$true] %s839
          %842 = dma.hbm_to_vmem [thread:$0]  %s13, 16, %s840, [#allocation10]
        $region24: #{tpu_custom_call.1} parent=11 // pred_fallthru
          _
        // Predicated region
        $region25: #{tpu_custom_call.1} parent=11 // pred_check
          %p843 = pneg %p290
        $region26: #{tpu_custom_call.1} parent=11 // pred_check_branch
          %845 = sbr.rel (%p843) target = $region28
        $region27: #{tpu_custom_call.1} parent=11 // pred_region
          %s847 = ssub.s32 256, 256
          %848 = vsyncadd [#allocation13], %s847
          %s849 = sshll.u32 [#allocation12], 4
          %s850 = int_to_ptr.vmem [resolvable:$true] %s849
          %855 = dma.hbm_to_vmem [thread:$0]  %s15, 256, %s850, [#allocation13], 64, 64, 4
        $region28: #{tpu_custom_call.1} parent=11 // pred_fallthru
          _
        // Predicated region
        $region29: #{tpu_custom_call.1} parent=11 // pred_check
          %p856 = pneg %p311
        $region30: #{tpu_custom_call.1} parent=11 // pred_check_branch
          %858 = sbr.rel (%p856) target = $region32
        $region31: #{tpu_custom_call.1} parent=11 // pred_region
          %s860 = ssub.s32 16, 16
          %861 = vsyncadd [#allocation13], %s860
          %s863 = sshll.u32 [#allocation14], 4
          %s864 = int_to_ptr.vmem [resolvable:$true] %s863
          %866 = dma.hbm_to_vmem [thread:$0]  %s17, 16, %s864, [#allocation13]
        $region32: #{tpu_custom_call.1} parent=11 // pred_fallthru
          _
        // Predicated region
        $region33: #{tpu_custom_call.1} parent=11 // pred_check
          %p867 = pneg %p332
        $region34: #{tpu_custom_call.1} parent=11 // pred_check_branch
          %869 = sbr.rel (%p867) target = $region36
        $region35: #{tpu_custom_call.1} parent=11 // pred_region
          _
        $region36: #{tpu_custom_call.1} parent=11 // pred_fallthru
          _
        // Predicated region
        $region37: #{tpu_custom_call.1} parent=11 // pred_check
          %p870 = pneg %p353
        $region38: #{tpu_custom_call.1} parent=11 // pred_check_branch
          %872 = sbr.rel (%p870) target = $region40
        $region39: #{tpu_custom_call.1} parent=11 // pred_region
          %s874 = ssub.s32 16, 16
          %875 = vsyncadd [#allocation16], %s874
          %s877 = sshll.u32 [#allocation15], 4
          %s878 = int_to_ptr.vmem [resolvable:$true] %s877
          %880 = dma.hbm_to_vmem [thread:$0]  %s21, 16, %s878, [#allocation16]
        $region40: #{tpu_custom_call.1} parent=11 // pred_fallthru
          _
        // Predicated region
        $region41: #{tpu_custom_call.1} parent=11 // pred_check
          %p881 = pneg %p374
        $region42: #{tpu_custom_call.1} parent=11 // pred_check_branch
          %883 = sbr.rel (%p881) target = $region44
        $region43: #{tpu_custom_call.1} parent=11 // pred_region
          %s885 = ssub.s32 256, 256
          %886 = vsyncadd [#allocation16], %s885
          %s887 = sshll.u32 [#allocation17], 4
          %s888 = int_to_ptr.vmem [resolvable:$true] %s887
          %893 = dma.hbm_to_vmem [thread:$0]  %s23, 256, %s888, [#allocation16], 64, 64, 4
        $region44: #{tpu_custom_call.1} parent=11 // pred_fallthru
          _
        // Predicated region
        $region45: #{tpu_custom_call.1} parent=11 // pred_check
          %p894 = pneg %p395
        $region46: #{tpu_custom_call.1} parent=11 // pred_check_branch
          %896 = sbr.rel (%p894) target = $region48
        $region47: #{tpu_custom_call.1} parent=11 // pred_region
          %s898 = ssub.s32 16, 16
          %899 = vsyncadd [#allocation19], %s898
          %s901 = sshll.u32 [#allocation18], 4
          %s902 = int_to_ptr.vmem [resolvable:$true] %s901
          %904 = dma.hbm_to_vmem [thread:$0]  %s25, 16, %s902, [#allocation19]
        $region48: #{tpu_custom_call.1} parent=11 // pred_fallthru
          _
        // Predicated region
        $region49: #{tpu_custom_call.1} parent=11 // pred_check
          %p905 = pneg %p416
        $region50: #{tpu_custom_call.1} parent=11 // pred_check_branch
          %907 = sbr.rel (%p905) target = $region52
        $region51: #{tpu_custom_call.1} parent=11 // pred_region
          %s909 = ssub.s32 16, 16
          %910 = vsyncadd [#allocation19], %s909
          %s912 = sshll.u32 [#allocation20], 4
          %s913 = int_to_ptr.vmem [resolvable:$true] %s912
          %915 = dma.hbm_to_vmem [thread:$0]  %s27, 16, %s913, [#allocation19]
        $region52: #{tpu_custom_call.1} parent=11 // pred_fallthru
          _
        // Predicated region
        $region53: #{tpu_custom_call.1} parent=11 // pred_check
          %p916 = pneg %p437
        $region54: #{tpu_custom_call.1} parent=11 // pred_check_branch
          %918 = sbr.rel (%p916) target = $region56
        $region55: #{tpu_custom_call.1} parent=11 // pred_region
          %s920 = ssub.s32 16, 16
          %921 = vsyncadd [#allocation22], %s920
          %s923 = sshll.u32 [#allocation21], 4
          %s924 = int_to_ptr.vmem [resolvable:$true] %s923
          %926 = dma.hbm_to_vmem [thread:$0]  %s29, 16, %s924, [#allocation22]
        $region56: #{tpu_custom_call.1} parent=11 // pred_fallthru
          _
        // Predicated region
        $region57: #{tpu_custom_call.1} parent=11 // pred_check
          %p927 = pneg %p458
        $region58: #{tpu_custom_call.1} parent=11 // pred_check_branch
          %929 = sbr.rel (%p927) target = $region60
        $region59: #{tpu_custom_call.1} parent=11 // pred_region
          _
        $region60: #{tpu_custom_call.1} parent=11 // pred_fallthru
          _
        // Predicated region
        $region61: #{tpu_custom_call.1} parent=11 // pred_check
          %p930 = pneg %p479
        $region62: #{tpu_custom_call.1} parent=11 // pred_check_branch
          %932 = sbr.rel (%p930) target = $region64
        $region63: #{tpu_custom_call.1} parent=11 // pred_region
          %s934 = ssub.s32 16, 16
          %935 = vsyncadd [#allocation22], %s934
          %s937 = sshll.u32 [#allocation23], 4
          %s938 = int_to_ptr.vmem [resolvable:$true] %s937
          %940 = dma.hbm_to_vmem [thread:$0]  %s33, 16, %s938, [#allocation22]
        $region64: #{tpu_custom_call.1} parent=11 // pred_fallthru
          _
        // Predicated region
        $region65: #{tpu_custom_call.1} parent=11 // pred_check
          %p941 = pneg %p500
        $region66: #{tpu_custom_call.1} parent=11 // pred_check_branch
          %943 = sbr.rel (%p941) target = $region68
        $region67: #{tpu_custom_call.1} parent=11 // pred_region
          _
        $region68: #{tpu_custom_call.1} parent=11 // pred_fallthru
          _
        // Predicated region
        $region69: #{tpu_custom_call.1} parent=11 // pred_check
          %p944 = pneg %p521
        $region70: #{tpu_custom_call.1} parent=11 // pred_check_branch
          %946 = sbr.rel (%p944) target = $region72
        $region71: #{tpu_custom_call.1} parent=11 // pred_region
          _
        $region72: #{tpu_custom_call.1} parent=11 // pred_fallthru
          _
        // Predicated region
        $region73: #{tpu_custom_call.1} parent=11 // pred_check
          %p947 = pneg %p542
        $region74: #{tpu_custom_call.1} parent=11 // pred_check_branch
          %949 = sbr.rel (%p947) target = $region76
        $region75: #{tpu_custom_call.1} parent=11 // pred_region
          %s951 = ssub.s32 256, 256
          %952 = vsyncadd [#allocation25], %s951
          %s953 = sshll.u32 [#allocation24], 4
          %s954 = int_to_ptr.vmem [resolvable:$true] %s953
          %959 = dma.hbm_to_vmem [thread:$0]  %s39, 256, %s954, [#allocation25], 64, 64, 4
        $region76: #{tpu_custom_call.1} parent=11 // pred_fallthru
          _
        // Predicated region
        $region77: #{tpu_custom_call.1} parent=11 // pred_check
          %p960 = pneg %p563
        $region78: #{tpu_custom_call.1} parent=11 // pred_check_branch
          %962 = sbr.rel (%p960) target = $region80
        $region79: #{tpu_custom_call.1} parent=11 // pred_region
          _
        $region80: #{tpu_custom_call.1} parent=11 // pred_fallthru
          _
        // Predicated region
        $region81: #{tpu_custom_call.1} parent=11 // pred_check
          %p963 = pneg %p584
        $region82: #{tpu_custom_call.1} parent=11 // pred_check_branch
          %965 = sbr.rel (%p963) target = $region84
        $region83: #{tpu_custom_call.1} parent=11 // pred_region
          %s967 = ssub.s32 256, 256
          %968 = vsyncadd [#allocation25], %s967
          %s969 = sshll.u32 [#allocation26], 4
          %s970 = int_to_ptr.vmem [resolvable:$true] %s969
          %975 = dma.hbm_to_vmem [thread:$0]  %s43, 256, %s970, [#allocation25], 64, 64, 4
        $region84: #{tpu_custom_call.1} parent=11 // pred_fallthru
          _
        // Predicated region
        $region85: #{tpu_custom_call.1} parent=11 // pred_check
          %p976 = pneg %p605
        $region86: #{tpu_custom_call.1} parent=11 // pred_check_branch
          %978 = sbr.rel (%p976) target = $region88
        $region87: #{tpu_custom_call.1} parent=11 // pred_region
          _
        $region88: #{tpu_custom_call.1} parent=11 // pred_fallthru
          _
        // Predicated region
        $region89: #{tpu_custom_call.1} parent=11 // pred_check
          %p979 = pneg %p626
        $region90: #{tpu_custom_call.1} parent=11 // pred_check_branch
          %981 = sbr.rel (%p979) target = $region92
        $region91: #{tpu_custom_call.1} parent=11 // pred_region
          _
        $region92: #{tpu_custom_call.1} parent=11 // pred_fallthru
          _
        // Predicated region
        $region93: #{tpu_custom_call.1} parent=11 // pred_check
          %p982 = pneg %p647
        $region94: #{tpu_custom_call.1} parent=11 // pred_check_branch
          %984 = sbr.rel (%p982) target = $region96
        $region95: #{tpu_custom_call.1} parent=11 // pred_region
          _
        $region96: #{tpu_custom_call.1} parent=11 // pred_fallthru
          _
        // Predicated region
        $region97: #{tpu_custom_call.1} parent=11 // pred_check
          %p985 = pneg %p668
        $region98: #{tpu_custom_call.1} parent=11 // pred_check_branch
          %987 = sbr.rel (%p985) target = $region100
        $region99: #{tpu_custom_call.1} parent=11 // pred_region
          _
        $region100: #{tpu_custom_call.1} parent=11 // pred_fallthru
          _
        // Predicated region
        $region101: #{tpu_custom_call.1} parent=11 // pred_check
          %p988 = pneg %p689
        $region102: #{tpu_custom_call.1} parent=11 // pred_check_branch
          %990 = sbr.rel (%p988) target = $region104
        $region103: #{tpu_custom_call.1} parent=11 // pred_region
          _
        $region104: #{tpu_custom_call.1} parent=11 // pred_fallthru
          _
        // Predicated region
        $region105: #{tpu_custom_call.1} parent=11 // pred_check
          %p991 = pneg %p710
        $region106: #{tpu_custom_call.1} parent=11 // pred_check_branch
          %993 = sbr.rel (%p991) target = $region108
        $region107: #{tpu_custom_call.1} parent=11 // pred_region
          _
        $region108: #{tpu_custom_call.1} parent=11 // pred_fallthru
          _
        // Predicated region
        $region109: #{tpu_custom_call.1} parent=11 // pred_check
          %p994 = pneg %p731
        $region110: #{tpu_custom_call.1} parent=11 // pred_check_branch
          %996 = sbr.rel (%p994) target = $region112
        $region111: #{tpu_custom_call.1} parent=11 // pred_region
          _
        $region112: #{tpu_custom_call.1} parent=11 // pred_fallthru
          _
        // Predicated region
        $region113: #{tpu_custom_call.1} parent=11 // pred_check
          %p997 = pneg %p752
        $region114: #{tpu_custom_call.1} parent=11 // pred_check_branch
          %999 = sbr.rel (%p997) target = $region116
        $region115: #{tpu_custom_call.1} parent=11 // pred_region
          _
        $region116: #{tpu_custom_call.1} parent=11 // pred_fallthru
          _
        // Predicated region
        $region117: #{tpu_custom_call.1} parent=11 // pred_check
          %p1000 = pneg %p773
        $region118: #{tpu_custom_call.1} parent=11 // pred_check_branch
          %1002 = sbr.rel (%p1000) target = $region120
        $region119: #{tpu_custom_call.1} parent=11 // pred_region
          _
        $region120: #{tpu_custom_call.1} parent=11 // pred_fallthru
          _
      $region12: #{tpu_custom_call.1} parent=5 // pred_fallthru
        _
      %p1003 = scmp.lt.s32.totalorder %s81, 2
      // Predicated region
      $region121: #{tpu_custom_call.1} parent=5 // pred_check
        %p1004 = pneg %p1003
      $region122: #{tpu_custom_call.1} parent=5 // pred_check_branch
        %1006 = sbr.rel (%p1004) target = $region124
      $region123: #{tpu_custom_call.1} parent=5 // pred_region
        // Predicated region
        $region125: #{tpu_custom_call.1} parent=123 // pred_check
          %p1007 = pneg %p115
        $region126: #{tpu_custom_call.1} parent=123 // pred_check_branch
          %1009 = sbr.rel (%p1007) target = $region128
        $region127: #{tpu_custom_call.1} parent=123 // pred_region
          %p1010 = scmp.lt.s32.totalorder %s88, 1
          %s1011 = scalar_select %p1010, %s88, 1
          %p1012 = scmp.lt.s32.totalorder %s89, 0
          %s1013 = scalar_select %p1012, %s89, 0
          %s1014 = sadd.s32 %s1013, %s1011
          %s1015 = smul.addr %s1014, 8
          %s1016 = scalar_lea.vmem %s1, %s1015
        $region128: #{tpu_custom_call.1} parent=123 // pred_fallthru
          _
        // Predicated region
        $region129: #{tpu_custom_call.1} parent=123 // pred_check
          %p1017 = pneg %p141
        $region130: #{tpu_custom_call.1} parent=123 // pred_check_branch
          %1019 = sbr.rel (%p1017) target = $region132
        $region131: #{tpu_custom_call.1} parent=123 // pred_region
          %p1020 = scmp.lt.s32.totalorder %s88, 1
          %s1021 = scalar_select %p1020, %s88, 1
          %s1022 = smul.addr %s1021, 8
          %s1023 = scalar_lea.vmem %s3, %s1022
        $region132: #{tpu_custom_call.1} parent=123 // pred_fallthru
          _
        // Predicated region
        $region133: #{tpu_custom_call.1} parent=123 // pred_check
          %p1024 = pneg %p167
        $region134: #{tpu_custom_call.1} parent=123 // pred_check_branch
          %1026 = sbr.rel (%p1024) target = $region136
        $region135: #{tpu_custom_call.1} parent=123 // pred_region
          %p1027 = scmp.lt.s32.totalorder %s88, 1
          %s1028 = scalar_select %p1027, %s88, 1
          %s1029 = smul.addr %s1028, 2
          %s1030 = smul.addr %s1029, 8
          %s1031 = scalar_lea.vmem %s5, %s1030
        $region136: #{tpu_custom_call.1} parent=123 // pred_fallthru
          _
        // Predicated region
        $region137: #{tpu_custom_call.1} parent=123 // pred_check
          %p1032 = pneg %p221
        $region138: #{tpu_custom_call.1} parent=123 // pred_check_branch
          %1034 = sbr.rel (%p1032) target = $region140
        $region139: #{tpu_custom_call.1} parent=123 // pred_region
          %s1035 = sand.u32 %s81, 1
          %s1036 = scalar_lea.sflag [#allocation10], %s1035
          %s1037 = sand.u32 %s211, 1
          %s1038 = smul.addr %s1037, 2
          %s1039 = scalar_lea.vmem [#allocation9], %s1038
          %s1041 = ssub.s32 32, 32
          %1042 = vsyncadd %s1036, %s1041
          %s1043 = sadd.s32 %s89, %s88
          %s1044 = smul.addr %s1043, 32
          %s1045 = scalar_lea.hbm %s9, %s1044
          %s1047 = sshll.u32 %s1039, 4
          %s1048 = int_to_ptr.vmem [resolvable:$true] %s1047
          %1050 = dma.hbm_to_vmem [thread:$0]  %s1045, 32, %s1048, %s1036
        $region140: #{tpu_custom_call.1} parent=123 // pred_fallthru
          _
      $region124: #{tpu_custom_call.1} parent=5 // pred_fallthru
        _
      %p1051 = scmp.le.s32.totalorder 1, %s81
      %p1052 = scmp.lt.s32.totalorder %s81, 3
      %p1053 = pnand %p1051, %p1052
      %p1054 = pneg %p1053
      // Predicated region
      $region141: #{tpu_custom_call.1} parent=5 // pred_check
        _
      $region142: #{tpu_custom_call.1} parent=5 // pred_check_branch
        %1056 = sbr.rel (%p1053) target = $region144
      $region143: #{tpu_custom_call.1} parent=5 // pred_region
        %s1057 = ssub.s32 %s81, 1
        // Predicated region
        $region145: #{tpu_custom_call.1} parent=143 // pred_check
          %p1058 = pneg %p199
        $region146: #{tpu_custom_call.1} parent=143 // pred_check_branch
          %1060 = sbr.rel (%p1058) target = $region148
        $region147: #{tpu_custom_call.1} parent=143 // pred_region
          %1061 = dma.done [#allocation7], 32
        $region148: #{tpu_custom_call.1} parent=143 // pred_fallthru
          _
        %s1062 = sand.u32 %s86, 1
        %s1063 = scalar_lea.sflag [#allocation10], %s1062
        %s1064 = sand.u32 %s214, 1
        %s1065 = smul.addr %s1064, 2
        %s1066 = scalar_lea.vmem [#allocation9], %s1065
        // Predicated region
        $region149: #{tpu_custom_call.1} parent=143 // pred_check
          %p1067 = pneg %p227
        $region150: #{tpu_custom_call.1} parent=143 // pred_check_branch
          %1069 = sbr.rel (%p1067) target = $region152
        $region151: #{tpu_custom_call.1} parent=143 // pred_region
          %1070 = dma.done %s1063, 32
        $region152: #{tpu_custom_call.1} parent=143 // pred_fallthru
          _
        // Predicated region
        $region153: #{tpu_custom_call.1} parent=143 // pred_check
          %p1071 = pneg %p269
        $region154: #{tpu_custom_call.1} parent=143 // pred_check_branch
          %1073 = sbr.rel (%p1071) target = $region156
        $region155: #{tpu_custom_call.1} parent=143 // pred_region
          %1074 = dma.done [#allocation10], 16
        $region156: #{tpu_custom_call.1} parent=143 // pred_fallthru
          _
        // Predicated region
        $region157: #{tpu_custom_call.1} parent=143 // pred_check
          %p1075 = pneg %p290
        $region158: #{tpu_custom_call.1} parent=143 // pred_check_branch
          %1077 = sbr.rel (%p1075) target = $region160
        $region159: #{tpu_custom_call.1} parent=143 // pred_region
          %1078 = dma.done [#allocation13], 256
        $region160: #{tpu_custom_call.1} parent=143 // pred_fallthru
          _
        // Predicated region
        $region161: #{tpu_custom_call.1} parent=143 // pred_check
          %p1079 = pneg %p311
        $region162: #{tpu_custom_call.1} parent=143 // pred_check_branch
          %1081 = sbr.rel (%p1079) target = $region164
        $region163: #{tpu_custom_call.1} parent=143 // pred_region
          %1082 = dma.done [#allocation13], 16
        $region164: #{tpu_custom_call.1} parent=143 // pred_fallthru
          _
        // Predicated region
        $region165: #{tpu_custom_call.1} parent=143 // pred_check
          %p1083 = pneg %p353
        $region166: #{tpu_custom_call.1} parent=143 // pred_check_branch
          %1085 = sbr.rel (%p1083) target = $region168
        $region167: #{tpu_custom_call.1} parent=143 // pred_region
          %1086 = dma.done [#allocation16], 16
        $region168: #{tpu_custom_call.1} parent=143 // pred_fallthru
          _
        // Predicated region
        $region169: #{tpu_custom_call.1} parent=143 // pred_check
          %p1087 = pneg %p374
        $region170: #{tpu_custom_call.1} parent=143 // pred_check_branch
          %1089 = sbr.rel (%p1087) target = $region172
        $region171: #{tpu_custom_call.1} parent=143 // pred_region
          %1090 = dma.done [#allocation16], 256
        $region172: #{tpu_custom_call.1} parent=143 // pred_fallthru
          _
        // Predicated region
        $region173: #{tpu_custom_call.1} parent=143 // pred_check
          %p1091 = pneg %p395
        $region174: #{tpu_custom_call.1} parent=143 // pred_check_branch
          %1093 = sbr.rel (%p1091) target = $region176
        $region175: #{tpu_custom_call.1} parent=143 // pred_region
          %1094 = dma.done [#allocation19], 16
        $region176: #{tpu_custom_call.1} parent=143 // pred_fallthru
          _
        // Predicated region
        $region177: #{tpu_custom_call.1} parent=143 // pred_check
          %p1095 = pneg %p416
        $region178: #{tpu_custom_call.1} parent=143 // pred_check_branch
          %1097 = sbr.rel (%p1095) target = $region180
        $region179: #{tpu_custom_call.1} parent=143 // pred_region
          %1098 = dma.done [#allocation19], 16
        $region180: #{tpu_custom_call.1} parent=143 // pred_fallthru
          _
        // Predicated region
        $region181: #{tpu_custom_call.1} parent=143 // pred_check
          %p1099 = pneg %p437
        $region182: #{tpu_custom_call.1} parent=143 // pred_check_branch
          %1101 = sbr.rel (%p1099) target = $region184
        $region183: #{tpu_custom_call.1} parent=143 // pred_region
          %1102 = dma.done [#allocation22], 16
        $region184: #{tpu_custom_call.1} parent=143 // pred_fallthru
          _
        // Predicated region
        $region185: #{tpu_custom_call.1} parent=143 // pred_check
          %p1103 = pneg %p479
        $region186: #{tpu_custom_call.1} parent=143 // pred_check_branch
          %1105 = sbr.rel (%p1103) target = $region188
        $region187: #{tpu_custom_call.1} parent=143 // pred_region
          %1106 = dma.done [#allocation22], 16
        $region188: #{tpu_custom_call.1} parent=143 // pred_fallthru
          _
        // Predicated region
        $region189: #{tpu_custom_call.1} parent=143 // pred_check
          %p1107 = pneg %p542
        $region190: #{tpu_custom_call.1} parent=143 // pred_check_branch
          %1109 = sbr.rel (%p1107) target = $region192
        $region191: #{tpu_custom_call.1} parent=143 // pred_region
          %1110 = dma.done [#allocation25], 256
        $region192: #{tpu_custom_call.1} parent=143 // pred_fallthru
          _
        // Predicated region
        $region193: #{tpu_custom_call.1} parent=143 // pred_check
          %p1111 = pneg %p584
        $region194: #{tpu_custom_call.1} parent=143 // pred_check_branch
          %1113 = sbr.rel (%p1111) target = $region196
        $region195: #{tpu_custom_call.1} parent=143 // pred_region
          %1114 = dma.done [#allocation25], 256
        $region196: #{tpu_custom_call.1} parent=143 // pred_fallthru
          _
        %p1115 = scmp.lt.s32.totalorder %s90, 1
        %s1116 = scalar_select %p1115, %s90, 1
        %p1117 = scmp.lt.s32.totalorder %s91, 0
        %s1118 = scalar_select %p1117, %s91, 0
        %s1119 = sadd.s32 %s1118, %s1116
        %s1120 = smul.addr %s1119, 8
        %s1121 = scalar_lea.vmem %s1, %s1120
        %p1122 = pneg %p121
        %p1123 = pneg %p118
        %p1124 = scmp.lt.s32.totalorder %s90, 1
        %s1125 = scalar_select %p1124, %s90, 1
        %s1126 = smul.addr %s1125, 8
        %s1127 = scalar_lea.vmem %s3, %s1126
        %p1128 = pneg %p147
        %p1129 = pneg %p144
        %p1130 = scmp.lt.s32.totalorder %s90, 1
        %s1131 = scalar_select %p1130, %s90, 1
        %s1132 = smul.addr %s1131, 2
        %s1133 = smul.addr %s1132, 8
        %s1134 = scalar_lea.vmem %s5, %s1133
        %p1135 = pneg %p173
        %p1136 = pneg %p170
        %p1137 = pneg %p199
        %p1138 = pneg %p196
        %s1139 = sand.u32 %s86, 1
        %s1140 = scalar_lea.sflag [#allocation10], %s1139
        %s1141 = sand.u32 %s214, 1
        %s1142 = smul.addr %s1141, 2
        %s1143 = scalar_lea.vmem [#allocation9], %s1142
        %p1144 = pneg %p227
        %p1145 = pneg %p224
        %p1146 = pneg %p248
        %p1147 = pneg %p245
        %p1148 = pneg %p269
        %p1149 = pneg %p266
        %p1150 = pneg %p290
        %p1151 = pneg %p287
        %p1152 = pneg %p311
        %p1153 = pneg %p308
        %p1154 = pneg %p332
        %p1155 = pneg %p329
        %p1156 = pneg %p353
        %p1157 = pneg %p350
        %p1158 = pneg %p374
        %p1159 = pneg %p371
        %p1160 = pneg %p395
        %p1161 = pneg %p392
        %p1162 = pneg %p416
        %p1163 = pneg %p413
        %p1164 = pneg %p437
        %p1165 = pneg %p434
        %p1166 = pneg %p458
        %p1167 = pneg %p455
        %p1168 = pneg %p479
        %p1169 = pneg %p476
        %p1170 = pneg %p500
        %p1171 = pneg %p497
        %p1172 = pneg %p521
        %p1173 = pneg %p518
        %p1174 = pneg %p542
        %p1175 = pneg %p539
        %p1176 = pneg %p563
        %p1177 = pneg %p560
        %p1178 = pneg %p584
        %p1179 = pneg %p581
        %p1180 = pneg %p605
        %p1181 = pneg %p602
        %p1182 = pneg %p626
        %p1183 = pneg %p623
        %p1184 = pneg %p647
        %p1185 = pneg %p644
        %p1186 = pneg %p668
        %p1187 = pneg %p665
        %p1188 = pneg %p689
        %p1189 = pneg %p686
        %p1190 = pneg %p710
        %p1191 = pneg %p707
        %p1192 = pneg %p731
        %p1193 = pneg %p728
        %p1194 = pneg %p752
        %p1195 = pneg %p749
        %p1196 = pneg %p773
        %p1197 = pneg %p770
        %p1198 = pneg %p801
        %p1199 = pneg %p798
        %s1200 = sand.u32 %s788, 1
        %s1201 = scalar_lea.sflag [#allocation8], %s1200
        %s1202 = sand.u32 %s788, 1
        %s1203 = smul.addr %s1202, 8
        %s1204 = scalar_lea.vmem [#allocation27], %s1203
        %p1205 = scmp.lt.s32.totalorder %s90, 1
        %s1206 = scalar_select %p1205, %s90, 1
        %p1207 = scmp.lt.s32.totalorder %s91, 0
        %s1208 = scalar_select %p1207, %s91, 0
        %s1209 = sadd.s32 %s1208, %s1206
        %s1210 = smul.addr %s1209, 8
        %s1211 = scalar_lea.vmem %s1, %s1210
        %p1212 = scmp.lt.s32.totalorder %s90, 1
        %s1213 = scalar_select %p1212, %s90, 1
        %s1214 = smul.addr %s1213, 8
        %s1215 = scalar_lea.vmem %s3, %s1214
        %p1216 = scmp.lt.s32.totalorder %s90, 1
        %s1217 = scalar_select %p1216, %s90, 1
        %s1218 = smul.addr %s1217, 2
        %s1219 = smul.addr %s1218, 8
        %s1220 = scalar_lea.vmem %s5, %s1219
        %p1224 = scmp.eq.s32.totalorder %s91, 0
        // Predicated region
        $region197: #{tpu_custom_call.1} parent=143 // pred_check
          %p1225 = pneg %p1224
        $region198: #{tpu_custom_call.1} parent=143 // pred_check_branch
          %1227 = sbr.rel (%p1225) target = $region200
        $region199: #{tpu_custom_call.1} parent=143 // pred_region
          %v1228 = vld [vmem:[%s1215] sm:$0xff]
          %v1229 = vpack.c.bf16 %v1228, %v1228
          %v1230 = vld [vmem:[#allocation12] sm:$0xf]
          %v1231 = vld [vmem:[#allocation12 + $0x4] sm:$0xf]
          %v1232 = vld [vmem:[#allocation12 + $0x8] sm:$0xf]
          %v1233 = vld [vmem:[#allocation12 + $0xc] sm:$0xf]
          %v1234 = vld [vmem:[#allocation14] sm:$0x1]
          %v1235 = vld [vmem:[%s19] sm:$0xf]
          %v1236 = vld [vmem:[%s19 + $0x4] sm:$0xf]
          %v1237 = vld [vmem:[%s19 + $0x8] sm:$0xf]
          %v1238 = vld [vmem:[%s19 + $0xc] sm:$0xf]
          %v1239 = vld [vmem:[#allocation15] sm:$0x1]
          %v1241 = vlaneseq
          %v1242 = vshrl.u32 %v1241, 7
          %v1243 = vsub.s32 0, %v1242
          %v1244 = vrot.slane %v1234, %v1243
          %v1250 = vunpack.c.l.b16 %v1230
          %v1251 = vunpack.c.l.b16 %v1231
          %v1252 = vunpack.c.l.b16 %v1232
          %v1253 = vunpack.c.l.b16 %v1233
          %v1254 = vpack.c.b16 %v1251, %v1250
          %v1255 = vpack.c.b16 %v1253, %v1252
          %vm1258 = vcmask 261120
          %v1260 = vsel %vm1258, %v1229, 0
          %1262 = vmatprep.subr.bf16.mxu0 0
          %1263 = vmatpush1.bf16.msra.mxu0 %v1254
          %1264 = vmatprep.subr.bf16.mxu0 0
          %1265 = vmatpush1.bf16.msra.mxu0 %v1255
          %1266 = vmatprep.subr.bf16.mxu0 0
          %1267 = vmatpush1.bf16.msra.mxu0 0
          %1268 = vmatprep.subr.bf16.mxu0 0
          %1269 = vmatpush1.bf16.msra.mxu0 0
          %1270 = vmatprep.subr.bf16.mxu0 0
          %1271 = vmatpush1.bf16.msra.mxu0 0
          %1272 = vmatprep.subr.bf16.mxu0 0
          %1273 = vmatpush1.bf16.msra.mxu0 0
          %1274 = vmatprep.subr.bf16.mxu0 0
          %1275 = vmatpush1.bf16.msra.mxu0 0
          %1276 = vmatprep.subr.bf16.mxu0 0
          %1277 = vmatpush1.bf16.msra.mxu0 0
          %1278 = vmatprep.subr.bf16.mxu0 0
          %1279 = vmatpush1.bf16.msra.mxu0 0
          %1280 = vmatprep.subr.bf16.mxu0 0
          %1281 = vmatpush1.bf16.msra.mxu0 0
          %1282 = vmatprep.subr.bf16.mxu0 0
          %1283 = vmatpush1.bf16.msra.mxu0 0
          %1284 = vmatprep.subr.bf16.mxu0 0
          %1285 = vmatpush1.bf16.msra.mxu0 0
          %1286 = vmatprep.subr.bf16.mxu0 0
          %1287 = vmatpush1.bf16.msra.mxu0 0
          %1288 = vmatprep.subr.bf16.mxu0 0
          %1289 = vmatpush1.bf16.msra.mxu0 0
          %1290 = vmatprep.subr.bf16.mxu0 0
          %1291 = vmatpush1.bf16.msra.mxu0 0
          %1292 = vmatprep.subr.bf16.mxu0 0
          %1293 = vmatpush1.bf16.msra.mxu0 0
          %1294 = vmatprep.mubr.bf16.mxu0 0
          %1295 = vmatmul.mubr.bf16.gmra.mrb[0].mxu0 %v1260
          %v1296 = vpop.f32.mrb[0].mxu0
          %v1297 = vadd.f32 %v1244, %v1296
          %v1298 = vpop.f32.mrb[0].mxu0
          %v1299 = vpop.f32.mrb[0].mxu0
          %v1300 = vpop.f32.mrb[0].mxu0
          %1301 = vdwg.mxu0
          %v1303 = vlaneseq
          %v1304 = vshrl.u32 %v1303, 7
          %v1305 = vsub.s32 0, %v1304
          %v1306 = vrot.slane %v1239, %v1305
          %v1312 = vunpack.c.l.b16 %v1235
          %v1313 = vunpack.c.l.b16 %v1236
          %v1314 = vunpack.c.l.b16 %v1237
          %v1315 = vunpack.c.l.b16 %v1238
          %v1316 = vpack.c.b16 %v1313, %v1312
          %v1317 = vpack.c.b16 %v1315, %v1314
          %1320 = vmatprep.subr.bf16.mxu0 0
          %1321 = vmatpush1.bf16.msra.mxu0 %v1316
          %1322 = vmatprep.subr.bf16.mxu0 0
          %1323 = vmatpush1.bf16.msra.mxu0 %v1317
          %1324 = vmatprep.subr.bf16.mxu0 0
          %1325 = vmatpush1.bf16.msra.mxu0 0
          %1326 = vmatprep.subr.bf16.mxu0 0
          %1327 = vmatpush1.bf16.msra.mxu0 0
          %1328 = vmatprep.subr.bf16.mxu0 0
          %1329 = vmatpush1.bf16.msra.mxu0 0
          %1330 = vmatprep.subr.bf16.mxu0 0
          %1331 = vmatpush1.bf16.msra.mxu0 0
          %1332 = vmatprep.subr.bf16.mxu0 0
          %1333 = vmatpush1.bf16.msra.mxu0 0
          %1334 = vmatprep.subr.bf16.mxu0 0
          %1335 = vmatpush1.bf16.msra.mxu0 0
          %1336 = vmatprep.subr.bf16.mxu0 0
          %1337 = vmatpush1.bf16.msra.mxu0 0
          %1338 = vmatprep.subr.bf16.mxu0 0
          %1339 = vmatpush1.bf16.msra.mxu0 0
          %1340 = vmatprep.subr.bf16.mxu0 0
          %1341 = vmatpush1.bf16.msra.mxu0 0
          %1342 = vmatprep.subr.bf16.mxu0 0
          %1343 = vmatpush1.bf16.msra.mxu0 0
          %1344 = vmatprep.subr.bf16.mxu0 0
          %1345 = vmatpush1.bf16.msra.mxu0 0
          %1346 = vmatprep.subr.bf16.mxu0 0
          %1347 = vmatpush1.bf16.msra.mxu0 0
          %1348 = vmatprep.subr.bf16.mxu0 0
          %1349 = vmatpush1.bf16.msra.mxu0 0
          %1350 = vmatprep.subr.bf16.mxu0 0
          %1351 = vmatpush1.bf16.msra.mxu0 0
          %1352 = vmatprep.mubr.bf16.mxu0 0
          %1353 = vmatmul.mubr.bf16.gmra.mrb[0].mxu0 %v1260
          %v1354 = vpop.f32.mrb[0].mxu0
          %v1355 = vadd.f32 %v1306, %v1354
          %v1356 = vpop.f32.mrb[0].mxu0
          %v1357 = vpop.f32.mrb[0].mxu0
          %v1358 = vpop.f32.mrb[0].mxu0
          %1359 = vdwg.mxu0
          %v1360 = vpack.c.bf16 %v1297, %v1297
          %1362 = vrot.lane.b32.xlu0 %v1360, 120
          %v1363 = vpop.permute.xlu0 %1362
          %1364 = vrot.lane.b32.xlu0 %v1360, 112
          %v1365 = vpop.permute.xlu0 %1364
          %1366 = vrot.lane.b32.xlu0 %v1360, 104
          %v1367 = vpop.permute.xlu0 %1366
          %v1369 = vunpack.c.l.s4 1983009808
          %v1370 = vunpack.c.0.s8 %v1369
          %v1371 = vlaneseq
          %v1372 = vshrl.u32 %v1371, 7
          %v1373 = vsub.s32 %v1370, %v1372
          %v1374 = vrot.slane %v1360, %v1373
          %v1377 = vunpack.c.l.s4 1983009808
          %v1378 = vunpack.c.0.s8 %v1377
          %v1379 = vlaneseq
          %v1380 = vshrl.u32 %v1379, 7
          %v1381 = vsub.s32 %v1378, %v1380
          %v1382 = vrot.slane %v1365, %v1381
          %v1383 = vcombine.low %v1374, %v1382
          %v1384 = vcombine.high %v1374, %v1382
          %v1386 = vunpack.c.l.s4 1934713408
          %v1387 = vunpack.c.0.s8 %v1386
          %v1388 = vlaneseq
          %v1389 = vshrl.u32 %v1388, 7
          %v1390 = vsub.s32 %v1387, %v1389
          %v1391 = vrot.slane %v1383, %v1390
          %v1393 = vunpack.c.l.s4 1934713408
          %v1394 = vunpack.c.0.s8 %v1393
          %v1395 = vlaneseq
          %v1396 = vshrl.u32 %v1395, 7
          %v1397 = vsub.s32 %v1394, %v1396
          %v1398 = vrot.slane %v1384, %v1397
          %v1399 = vcombine.high %v1391, 0
          %v1400 = vcombine.high %v1398, 0
          %v1403 = vunpack.c.l.s4 1983009808
          %v1404 = vunpack.c.0.s8 %v1403
          %v1405 = vlaneseq
          %v1406 = vshrl.u32 %v1405, 7
          %v1407 = vsub.s32 %v1404, %v1406
          %v1408 = vrot.slane %v1363, %v1407
          %v1411 = vunpack.c.l.s4 1983009808
          %v1412 = vunpack.c.0.s8 %v1411
          %v1413 = vlaneseq
          %v1414 = vshrl.u32 %v1413, 7
          %v1415 = vsub.s32 %v1412, %v1414
          %v1416 = vrot.slane %v1367, %v1415
          %v1417 = vcombine.low %v1408, %v1416
          %v1418 = vcombine.high %v1408, %v1416
          %v1420 = vunpack.c.l.s4 1934713408
          %v1421 = vunpack.c.0.s8 %v1420
          %v1422 = vlaneseq
          %v1423 = vshrl.u32 %v1422, 7
          %v1424 = vsub.s32 %v1421, %v1423
          %v1425 = vrot.slane %v1417, %v1424
          %v1427 = vunpack.c.l.s4 1934713408
          %v1428 = vunpack.c.0.s8 %v1427
          %v1429 = vlaneseq
          %v1430 = vshrl.u32 %v1429, 7
          %v1431 = vsub.s32 %v1428, %v1430
          %v1432 = vrot.slane %v1418, %v1431
          %v1433 = vcombine.high %v1425, 0
          %v1434 = vcombine.high %v1432, 0
          %v1437 = vpack.i.b16 %v1425, %v1391
          %v1439 = vshrl.u32 %v1391, 16
          %v1440 = vshrl.u32 %v1425, 16
          %v1441 = vpack.i.b16 %v1440, %v1439
          %v1445 = vpack.i.b16 %v1433, %v1399
          %v1447 = vshrl.u32 %v1399, 16
          %v1448 = vshrl.u32 %v1433, 16
          %v1449 = vpack.i.b16 %v1448, %v1447
          %v1453 = vpack.i.b16 %v1432, %v1398
          %v1455 = vshrl.u32 %v1398, 16
          %v1456 = vshrl.u32 %v1432, 16
          %v1457 = vpack.i.b16 %v1456, %v1455
          %v1461 = vpack.i.b16 %v1434, %v1400
          %v1463 = vshrl.u32 %v1400, 16
          %v1464 = vshrl.u32 %v1434, 16
          %v1465 = vpack.i.b16 %v1464, %v1463
          %v1467 = vcombine.low %v1437, %v1453
          %v1469 = vunpack.c.l.s4 1983009808
          %v1470 = vunpack.c.0.s8 %v1469
          %v1471 = vlaneseq
          %v1472 = vshrl.u32 %v1471, 7
          %v1473 = vsub.s32 %v1470, %v1472
          %v1474 = vrot.slane %v1467, %v1473
          %v1475 = vcombine.low %v1445, %v1461
          %v1477 = vunpack.c.l.s4 1983009808
          %v1478 = vunpack.c.0.s8 %v1477
          %v1479 = vlaneseq
          %v1480 = vshrl.u32 %v1479, 7
          %v1481 = vsub.s32 %v1478, %v1480
          %v1482 = vrot.slane %v1475, %v1481
          %v1483 = vcombine.low %v1474, %v1482
          %v1485 = vunpack.c.l.s4 1934713408
          %v1486 = vunpack.c.0.s8 %v1485
          %v1487 = vlaneseq
          %v1488 = vshrl.u32 %v1487, 7
          %v1489 = vsub.s32 %v1486, %v1488
          %v1490 = vrot.slane %v1483, %v1489
          %v1491 = vcombine.high %v1490, 0
          %v1492 = vcombine.low %v1441, %v1457
          %v1494 = vunpack.c.l.s4 1983009808
          %v1495 = vunpack.c.0.s8 %v1494
          %v1496 = vlaneseq
          %v1497 = vshrl.u32 %v1496, 7
          %v1498 = vsub.s32 %v1495, %v1497
          %v1499 = vrot.slane %v1492, %v1498
          %v1500 = vcombine.low %v1449, %v1465
          %v1502 = vunpack.c.l.s4 1983009808
          %v1503 = vunpack.c.0.s8 %v1502
          %v1504 = vlaneseq
          %v1505 = vshrl.u32 %v1504, 7
          %v1506 = vsub.s32 %v1503, %v1505
          %v1507 = vrot.slane %v1500, %v1506
          %v1508 = vcombine.low %v1499, %v1507
          %v1510 = vunpack.c.l.s4 1934713408
          %v1511 = vunpack.c.0.s8 %v1510
          %v1512 = vlaneseq
          %v1513 = vshrl.u32 %v1512, 7
          %v1514 = vsub.s32 %v1511, %v1513
          %v1515 = vrot.slane %v1508, %v1514
          %v1516 = vcombine.high %v1515, 0
          %v1519 = vpack.i.b16 %v1515, %v1490
          %v1521 = vshrl.u32 %v1490, 16
          %v1522 = vshrl.u32 %v1515, 16
          %v1523 = vpack.i.b16 %v1522, %v1521
          %v1527 = vpack.i.b16 %v1516, %v1491
          %v1529 = vshrl.u32 %v1491, 16
          %v1530 = vshrl.u32 %v1516, 16
          %v1531 = vpack.i.b16 %v1530, %v1529
          %v1533 = vpack.c.bf16 %v1355, %v1355
          %1535 = vrot.lane.b32.xlu0 %v1533, 120
          %v1536 = vpop.permute.xlu0 %1535
          %1537 = vrot.lane.b32.xlu0 %v1533, 112
          %v1538 = vpop.permute.xlu0 %1537
          %1539 = vrot.lane.b32.xlu0 %v1533, 104
          %v1540 = vpop.permute.xlu0 %1539
          %v1542 = vunpack.c.l.s4 1983009808
          %v1543 = vunpack.c.0.s8 %v1542
          %v1544 = vlaneseq
          %v1545 = vshrl.u32 %v1544, 7
          %v1546 = vsub.s32 %v1543, %v1545
          %v1547 = vrot.slane %v1533, %v1546
          %v1550 = vunpack.c.l.s4 1983009808
          %v1551 = vunpack.c.0.s8 %v1550
          %v1552 = vlaneseq
          %v1553 = vshrl.u32 %v1552, 7
          %v1554 = vsub.s32 %v1551, %v1553
          %v1555 = vrot.slane %v1538, %v1554
          %v1556 = vcombine.low %v1547, %v1555
          %v1557 = vcombine.high %v1547, %v1555
          %v1559 = vunpack.c.l.s4 1934713408
          %v1560 = vunpack.c.0.s8 %v1559
          %v1561 = vlaneseq
          %v1562 = vshrl.u32 %v1561, 7
          %v1563 = vsub.s32 %v1560, %v1562
          %v1564 = vrot.slane %v1556, %v1563
          %v1566 = vunpack.c.l.s4 1934713408
          %v1567 = vunpack.c.0.s8 %v1566
          %v1568 = vlaneseq
          %v1569 = vshrl.u32 %v1568, 7
          %v1570 = vsub.s32 %v1567, %v1569
          %v1571 = vrot.slane %v1557, %v1570
          %v1572 = vcombine.high %v1564, 0
          %v1573 = vcombine.high %v1571, 0
          %v1576 = vunpack.c.l.s4 1983009808
          %v1577 = vunpack.c.0.s8 %v1576
          %v1578 = vlaneseq
          %v1579 = vshrl.u32 %v1578, 7
          %v1580 = vsub.s32 %v1577, %v1579
          %v1581 = vrot.slane %v1536, %v1580
          %v1584 = vunpack.c.l.s4 1983009808
          %v1585 = vunpack.c.0.s8 %v1584
          %v1586 = vlaneseq
          %v1587 = vshrl.u32 %v1586, 7
          %v1588 = vsub.s32 %v1585, %v1587
          %v1589 = vrot.slane %v1540, %v1588
          %v1590 = vcombine.low %v1581, %v1589
          %v1591 = vcombine.high %v1581, %v1589
          %v1593 = vunpack.c.l.s4 1934713408
          %v1594 = vunpack.c.0.s8 %v1593
          %v1595 = vlaneseq
          %v1596 = vshrl.u32 %v1595, 7
          %v1597 = vsub.s32 %v1594, %v1596
          %v1598 = vrot.slane %v1590, %v1597
          %v1600 = vunpack.c.l.s4 1934713408
          %v1601 = vunpack.c.0.s8 %v1600
          %v1602 = vlaneseq
          %v1603 = vshrl.u32 %v1602, 7
          %v1604 = vsub.s32 %v1601, %v1603
          %v1605 = vrot.slane %v1591, %v1604
          %v1606 = vcombine.high %v1598, 0
          %v1607 = vcombine.high %v1605, 0
          %v1610 = vpack.i.b16 %v1598, %v1564
          %v1612 = vshrl.u32 %v1564, 16
          %v1613 = vshrl.u32 %v1598, 16
          %v1614 = vpack.i.b16 %v1613, %v1612
          %v1618 = vpack.i.b16 %v1606, %v1572
          %v1620 = vshrl.u32 %v1572, 16
          %v1621 = vshrl.u32 %v1606, 16
          %v1622 = vpack.i.b16 %v1621, %v1620
          %v1626 = vpack.i.b16 %v1605, %v1571
          %v1628 = vshrl.u32 %v1571, 16
          %v1629 = vshrl.u32 %v1605, 16
          %v1630 = vpack.i.b16 %v1629, %v1628
          %v1634 = vpack.i.b16 %v1607, %v1573
          %v1636 = vshrl.u32 %v1573, 16
          %v1637 = vshrl.u32 %v1607, 16
          %v1638 = vpack.i.b16 %v1637, %v1636
          %v1640 = vcombine.low %v1610, %v1626
          %v1642 = vunpack.c.l.s4 1983009808
          %v1643 = vunpack.c.0.s8 %v1642
          %v1644 = vlaneseq
          %v1645 = vshrl.u32 %v1644, 7
          %v1646 = vsub.s32 %v1643, %v1645
          %v1647 = vrot.slane %v1640, %v1646
          %v1648 = vcombine.low %v1618, %v1634
          %v1650 = vunpack.c.l.s4 1983009808
          %v1651 = vunpack.c.0.s8 %v1650
          %v1652 = vlaneseq
          %v1653 = vshrl.u32 %v1652, 7
          %v1654 = vsub.s32 %v1651, %v1653
          %v1655 = vrot.slane %v1648, %v1654
          %v1656 = vcombine.low %v1647, %v1655
          %v1658 = vunpack.c.l.s4 1934713408
          %v1659 = vunpack.c.0.s8 %v1658
          %v1660 = vlaneseq
          %v1661 = vshrl.u32 %v1660, 7
          %v1662 = vsub.s32 %v1659, %v1661
          %v1663 = vrot.slane %v1656, %v1662
          %v1664 = vcombine.high %v1663, 0
          %v1665 = vcombine.low %v1614, %v1630
          %v1667 = vunpack.c.l.s4 1983009808
          %v1668 = vunpack.c.0.s8 %v1667
          %v1669 = vlaneseq
          %v1670 = vshrl.u32 %v1669, 7
          %v1671 = vsub.s32 %v1668, %v1670
          %v1672 = vrot.slane %v1665, %v1671
          %v1673 = vcombine.low %v1622, %v1638
          %v1675 = vunpack.c.l.s4 1983009808
          %v1676 = vunpack.c.0.s8 %v1675
          %v1677 = vlaneseq
          %v1678 = vshrl.u32 %v1677, 7
          %v1679 = vsub.s32 %v1676, %v1678
          %v1680 = vrot.slane %v1673, %v1679
          %v1681 = vcombine.low %v1672, %v1680
          %v1683 = vunpack.c.l.s4 1934713408
          %v1684 = vunpack.c.0.s8 %v1683
          %v1685 = vlaneseq
          %v1686 = vshrl.u32 %v1685, 7
          %v1687 = vsub.s32 %v1684, %v1686
          %v1688 = vrot.slane %v1681, %v1687
          %v1689 = vcombine.high %v1688, 0
          %v1692 = vpack.i.b16 %v1688, %v1663
          %v1694 = vshrl.u32 %v1663, 16
          %v1695 = vshrl.u32 %v1688, 16
          %v1696 = vpack.i.b16 %v1695, %v1694
          %v1700 = vpack.i.b16 %v1689, %v1664
          %v1702 = vshrl.u32 %v1664, 16
          %v1703 = vshrl.u32 %v1689, 16
          %v1704 = vpack.i.b16 %v1703, %v1702
          %vm1706 = vcmask 60416
          %1707 = vst.msk [vmem:[#allocation2] sm:$0xf] %vm1706, %v1519
          %1708 = vst.msk [vmem:[#allocation2 + $0x4] sm:$0xf] %vm1706, %v1523
          %1709 = vst.msk [vmem:[#allocation2 + $0x8] sm:$0xf] %vm1706, %v1527
          %1710 = vst.msk [vmem:[#allocation2 + $0xc] sm:$0xf] %vm1706, %v1531
          %1711 = vst.msk [vmem:[#allocation3] sm:$0xf] %vm1706, %v1692
          %1712 = vst.msk [vmem:[#allocation3 + $0x4] sm:$0xf] %vm1706, %v1696
          %1713 = vst.msk [vmem:[#allocation3 + $0x8] sm:$0xf] %vm1706, %v1700
          %1714 = vst.msk [vmem:[#allocation3 + $0xc] sm:$0xf] %vm1706, %v1704
          %v1715 = vld [vmem:[%s1220] sm:$0xff]
          %v1716 = vld [vmem:[%s1220 + $0x8] sm:$0xff]
          %v1717 = vpack.c.bf16 %v1716, %v1715
          %v1718 = vld [vmem:[%s35] sm:$0xf]
          %v1719 = vld [vmem:[%s35 + $0x4] sm:$0xf]
          %v1720 = vld [vmem:[%s35 + $0x8] sm:$0xf]
          %v1721 = vld [vmem:[%s35 + $0xc] sm:$0xf]
          %v1722 = vld [vmem:[%s37] sm:$0x1]
          %v1723 = vld [vmem:[#allocation24] sm:$0xf]
          %v1724 = vld [vmem:[#allocation24 + $0x4] sm:$0xf]
          %v1725 = vld [vmem:[#allocation24 + $0x8] sm:$0xf]
          %v1726 = vld [vmem:[#allocation24 + $0xc] sm:$0xf]
          %v1727 = vld [vmem:[%s41] sm:$0x1]
          %v1729 = vlaneseq
          %v1730 = vshrl.u32 %v1729, 7
          %v1731 = vsub.s32 0, %v1730
          %v1732 = vrot.slane %v1722, %v1731
          %v1738 = vunpack.c.l.b16 %v1718
          %v1739 = vunpack.c.l.b16 %v1719
          %v1740 = vunpack.c.l.b16 %v1720
          %v1741 = vunpack.c.l.b16 %v1721
          %v1742 = vpack.c.b16 %v1739, %v1738
          %v1743 = vpack.c.b16 %v1741, %v1740
          %v1747 = vsel %vm1258, %v1717, 0
          %1749 = vmatprep.subr.bf16.mxu0 0
          %1750 = vmatpush1.bf16.msra.mxu0 %v1742
          %1751 = vmatprep.subr.bf16.mxu0 0
          %1752 = vmatpush1.bf16.msra.mxu0 %v1743
          %1753 = vmatprep.subr.bf16.mxu0 0
          %1754 = vmatpush1.bf16.msra.mxu0 0
          %1755 = vmatprep.subr.bf16.mxu0 0
          %1756 = vmatpush1.bf16.msra.mxu0 0
          %1757 = vmatprep.subr.bf16.mxu0 0
          %1758 = vmatpush1.bf16.msra.mxu0 0
          %1759 = vmatprep.subr.bf16.mxu0 0
          %1760 = vmatpush1.bf16.msra.mxu0 0
          %1761 = vmatprep.subr.bf16.mxu0 0
          %1762 = vmatpush1.bf16.msra.mxu0 0
          %1763 = vmatprep.subr.bf16.mxu0 0
          %1764 = vmatpush1.bf16.msra.mxu0 0
          %1765 = vmatprep.subr.bf16.mxu0 0
          %1766 = vmatpush1.bf16.msra.mxu0 0
          %1767 = vmatprep.subr.bf16.mxu0 0
          %1768 = vmatpush1.bf16.msra.mxu0 0
          %1769 = vmatprep.subr.bf16.mxu0 0
          %1770 = vmatpush1.bf16.msra.mxu0 0
          %1771 = vmatprep.subr.bf16.mxu0 0
          %1772 = vmatpush1.bf16.msra.mxu0 0
          %1773 = vmatprep.subr.bf16.mxu0 0
          %1774 = vmatpush1.bf16.msra.mxu0 0
          %1775 = vmatprep.subr.bf16.mxu0 0
          %1776 = vmatpush1.bf16.msra.mxu0 0
          %1777 = vmatprep.subr.bf16.mxu0 0
          %1778 = vmatpush1.bf16.msra.mxu0 0
          %1779 = vmatprep.subr.bf16.mxu0 0
          %1780 = vmatpush1.bf16.msra.mxu0 0
          %1781 = vmatprep.mubr.bf16.mxu0 0
          %1782 = vmatmul.mubr.bf16.gmra.mrb[0].mxu0 %v1747
          %v1783 = vpop.f32.mrb[0].mxu0
          %v1784 = vadd.f32 %v1732, %v1783
          %v1785 = vpop.f32.mrb[0].mxu0
          %v1786 = vpop.f32.mrb[0].mxu0
          %v1787 = vadd.f32 %v1732, %v1786
          %v1788 = vpop.f32.mrb[0].mxu0
          %1789 = vdwg.mxu0
          %v1791 = vlaneseq
          %v1792 = vshrl.u32 %v1791, 7
          %v1793 = vsub.s32 0, %v1792
          %v1794 = vrot.slane %v1727, %v1793
          %v1800 = vunpack.c.l.b16 %v1723
          %v1801 = vunpack.c.l.b16 %v1724
          %v1802 = vunpack.c.l.b16 %v1725
          %v1803 = vunpack.c.l.b16 %v1726
          %v1804 = vpack.c.b16 %v1801, %v1800
          %v1805 = vpack.c.b16 %v1803, %v1802
          %1808 = vmatprep.subr.bf16.mxu0 0
          %1809 = vmatpush1.bf16.msra.mxu0 %v1804
          %1810 = vmatprep.subr.bf16.mxu0 0
          %1811 = vmatpush1.bf16.msra.mxu0 %v1805
          %1812 = vmatprep.subr.bf16.mxu0 0
          %1813 = vmatpush1.bf16.msra.mxu0 0
          %1814 = vmatprep.subr.bf16.mxu0 0
          %1815 = vmatpush1.bf16.msra.mxu0 0
          %1816 = vmatprep.subr.bf16.mxu0 0
          %1817 = vmatpush1.bf16.msra.mxu0 0
          %1818 = vmatprep.subr.bf16.mxu0 0
          %1819 = vmatpush1.bf16.msra.mxu0 0
          %1820 = vmatprep.subr.bf16.mxu0 0
          %1821 = vmatpush1.bf16.msra.mxu0 0
          %1822 = vmatprep.subr.bf16.mxu0 0
          %1823 = vmatpush1.bf16.msra.mxu0 0
          %1824 = vmatprep.subr.bf16.mxu0 0
          %1825 = vmatpush1.bf16.msra.mxu0 0
          %1826 = vmatprep.subr.bf16.mxu0 0
          %1827 = vmatpush1.bf16.msra.mxu0 0
          %1828 = vmatprep.subr.bf16.mxu0 0
          %1829 = vmatpush1.bf16.msra.mxu0 0
          %1830 = vmatprep.subr.bf16.mxu0 0
          %1831 = vmatpush1.bf16.msra.mxu0 0
          %1832 = vmatprep.subr.bf16.mxu0 0
          %1833 = vmatpush1.bf16.msra.mxu0 0
          %1834 = vmatprep.subr.bf16.mxu0 0
          %1835 = vmatpush1.bf16.msra.mxu0 0
          %1836 = vmatprep.subr.bf16.mxu0 0
          %1837 = vmatpush1.bf16.msra.mxu0 0
          %1838 = vmatprep.subr.bf16.mxu0 0
          %1839 = vmatpush1.bf16.msra.mxu0 0
          %1840 = vmatprep.mubr.bf16.mxu0 0
          %1841 = vmatmul.mubr.bf16.gmra.mrb[0].mxu0 %v1747
          %v1842 = vpop.f32.mrb[0].mxu0
          %v1843 = vadd.f32 %v1794, %v1842
          %v1844 = vpop.f32.mrb[0].mxu0
          %v1845 = vpop.f32.mrb[0].mxu0
          %v1846 = vadd.f32 %v1794, %v1845
          %v1847 = vpop.f32.mrb[0].mxu0
          %1848 = vdwg.mxu0
          %v1849 = vpack.c.bf16 %v1787, %v1784
          %1851 = vrot.lane.b32.xlu0 %v1849, 120
          %v1852 = vpop.permute.xlu0 %1851
          %1853 = vrot.lane.b32.xlu0 %v1849, 112
          %v1854 = vpop.permute.xlu0 %1853
          %1855 = vrot.lane.b32.xlu0 %v1849, 104
          %v1856 = vpop.permute.xlu0 %1855
          %v1859 = vpack.i.b16 %v1852, %v1849
          %v1861 = vshrl.u32 %v1849, 16
          %v1862 = vshrl.u32 %v1852, 16
          %v1863 = vpack.i.b16 %v1862, %v1861
          %v1867 = vpack.i.b16 %v1856, %v1854
          %v1869 = vshrl.u32 %v1854, 16
          %v1870 = vshrl.u32 %v1856, 16
          %v1871 = vpack.i.b16 %v1870, %v1869
          %v1874 = vpack.i.b16 0, 0
          %v1876 = vshrl.u32 0, 16
          %v1877 = vpack.i.b16 %v1876, %v1876
          %v1879 = vcombine.high %v1859, %v1874
          %v1881 = vunpack.c.l.s4 1983009808
          %v1882 = vunpack.c.0.s8 %v1881
          %v1883 = vlaneseq
          %v1884 = vshrl.u32 %v1883, 7
          %v1885 = vsub.s32 %v1882, %v1884
          %v1886 = vrot.slane %v1859, %v1885
          %v1888 = vunpack.c.l.s4 1983009808
          %v1889 = vunpack.c.0.s8 %v1888
          %v1890 = vlaneseq
          %v1891 = vshrl.u32 %v1890, 7
          %v1892 = vsub.s32 %v1889, %v1891
          %v1893 = vrot.slane %v1879, %v1892
          %v1894 = vcombine.high %v1867, %v1874
          %v1896 = vunpack.c.l.s4 1983009808
          %v1897 = vunpack.c.0.s8 %v1896
          %v1898 = vlaneseq
          %v1899 = vshrl.u32 %v1898, 7
          %v1900 = vsub.s32 %v1897, %v1899
          %v1901 = vrot.slane %v1867, %v1900
          %v1903 = vunpack.c.l.s4 1983009808
          %v1904 = vunpack.c.0.s8 %v1903
          %v1905 = vlaneseq
          %v1906 = vshrl.u32 %v1905, 7
          %v1907 = vsub.s32 %v1904, %v1906
          %v1908 = vrot.slane %v1894, %v1907
          %v1909 = vcombine.low %v1886, %v1901
          %v1910 = vcombine.high %v1886, %v1901
          %v1912 = vunpack.c.l.s4 1934713408
          %v1913 = vunpack.c.0.s8 %v1912
          %v1914 = vlaneseq
          %v1915 = vshrl.u32 %v1914, 7
          %v1916 = vsub.s32 %v1913, %v1915
          %v1917 = vrot.slane %v1909, %v1916
          %v1919 = vunpack.c.l.s4 1934713408
          %v1920 = vunpack.c.0.s8 %v1919
          %v1921 = vlaneseq
          %v1922 = vshrl.u32 %v1921, 7
          %v1923 = vsub.s32 %v1920, %v1922
          %v1924 = vrot.slane %v1910, %v1923
          %v1925 = vcombine.low %v1893, %v1908
          %v1926 = vcombine.high %v1893, %v1908
          %v1928 = vunpack.c.l.s4 1934713408
          %v1929 = vunpack.c.0.s8 %v1928
          %v1930 = vlaneseq
          %v1931 = vshrl.u32 %v1930, 7
          %v1932 = vsub.s32 %v1929, %v1931
          %v1933 = vrot.slane %v1925, %v1932
          %v1935 = vunpack.c.l.s4 1934713408
          %v1936 = vunpack.c.0.s8 %v1935
          %v1937 = vlaneseq
          %v1938 = vshrl.u32 %v1937, 7
          %v1939 = vsub.s32 %v1936, %v1938
          %v1940 = vrot.slane %v1926, %v1939
          %v1941 = vcombine.high %v1917, 0
          %v1942 = vcombine.high %v1924, 0
          %v1943 = vcombine.high %v1933, 0
          %v1944 = vcombine.high %v1940, 0
          %v1945 = vcombine.high %v1863, %v1877
          %v1947 = vunpack.c.l.s4 1983009808
          %v1948 = vunpack.c.0.s8 %v1947
          %v1949 = vlaneseq
          %v1950 = vshrl.u32 %v1949, 7
          %v1951 = vsub.s32 %v1948, %v1950
          %v1952 = vrot.slane %v1863, %v1951
          %v1954 = vunpack.c.l.s4 1983009808
          %v1955 = vunpack.c.0.s8 %v1954
          %v1956 = vlaneseq
          %v1957 = vshrl.u32 %v1956, 7
          %v1958 = vsub.s32 %v1955, %v1957
          %v1959 = vrot.slane %v1945, %v1958
          %v1960 = vcombine.high %v1871, %v1877
          %v1962 = vunpack.c.l.s4 1983009808
          %v1963 = vunpack.c.0.s8 %v1962
          %v1964 = vlaneseq
          %v1965 = vshrl.u32 %v1964, 7
          %v1966 = vsub.s32 %v1963, %v1965
          %v1967 = vrot.slane %v1871, %v1966
          %v1969 = vunpack.c.l.s4 1983009808
          %v1970 = vunpack.c.0.s8 %v1969
          %v1971 = vlaneseq
          %v1972 = vshrl.u32 %v1971, 7
          %v1973 = vsub.s32 %v1970, %v1972
          %v1974 = vrot.slane %v1960, %v1973
          %v1975 = vcombine.low %v1952, %v1967
          %v1976 = vcombine.high %v1952, %v1967
          %v1978 = vunpack.c.l.s4 1934713408
          %v1979 = vunpack.c.0.s8 %v1978
          %v1980 = vlaneseq
          %v1981 = vshrl.u32 %v1980, 7
          %v1982 = vsub.s32 %v1979, %v1981
          %v1983 = vrot.slane %v1975, %v1982
          %v1985 = vunpack.c.l.s4 1934713408
          %v1986 = vunpack.c.0.s8 %v1985
          %v1987 = vlaneseq
          %v1988 = vshrl.u32 %v1987, 7
          %v1989 = vsub.s32 %v1986, %v1988
          %v1990 = vrot.slane %v1976, %v1989
          %v1991 = vcombine.low %v1959, %v1974
          %v1992 = vcombine.high %v1959, %v1974
          %v1994 = vunpack.c.l.s4 1934713408
          %v1995 = vunpack.c.0.s8 %v1994
          %v1996 = vlaneseq
          %v1997 = vshrl.u32 %v1996, 7
          %v1998 = vsub.s32 %v1995, %v1997
          %v1999 = vrot.slane %v1991, %v1998
          %v2001 = vunpack.c.l.s4 1934713408
          %v2002 = vunpack.c.0.s8 %v2001
          %v2003 = vlaneseq
          %v2004 = vshrl.u32 %v2003, 7
          %v2005 = vsub.s32 %v2002, %v2004
          %v2006 = vrot.slane %v1992, %v2005
          %v2007 = vcombine.high %v1983, 0
          %v2008 = vcombine.high %v1990, 0
          %v2009 = vcombine.high %v1999, 0
          %v2010 = vcombine.high %v2006, 0
          %v2011 = vcombine.low %v1917, %v1924
          %v2013 = vunpack.c.l.s4 1983009808
          %v2014 = vunpack.c.0.s8 %v2013
          %v2015 = vlaneseq
          %v2016 = vshrl.u32 %v2015, 7
          %v2017 = vsub.s32 %v2014, %v2016
          %v2018 = vrot.slane %v2011, %v2017
          %v2019 = vcombine.low %v1941, %v1942
          %v2021 = vunpack.c.l.s4 1983009808
          %v2022 = vunpack.c.0.s8 %v2021
          %v2023 = vlaneseq
          %v2024 = vshrl.u32 %v2023, 7
          %v2025 = vsub.s32 %v2022, %v2024
          %v2026 = vrot.slane %v2019, %v2025
          %v2027 = vcombine.low %v1933, %v1940
          %v2029 = vunpack.c.l.s4 1983009808
          %v2030 = vunpack.c.0.s8 %v2029
          %v2031 = vlaneseq
          %v2032 = vshrl.u32 %v2031, 7
          %v2033 = vsub.s32 %v2030, %v2032
          %v2034 = vrot.slane %v2027, %v2033
          %v2035 = vcombine.low %v1943, %v1944
          %v2037 = vunpack.c.l.s4 1983009808
          %v2038 = vunpack.c.0.s8 %v2037
          %v2039 = vlaneseq
          %v2040 = vshrl.u32 %v2039, 7
          %v2041 = vsub.s32 %v2038, %v2040
          %v2042 = vrot.slane %v2035, %v2041
          %v2043 = vcombine.low %v2018, %v2026
          %v2045 = vunpack.c.l.s4 1934713408
          %v2046 = vunpack.c.0.s8 %v2045
          %v2047 = vlaneseq
          %v2048 = vshrl.u32 %v2047, 7
          %v2049 = vsub.s32 %v2046, %v2048
          %v2050 = vrot.slane %v2043, %v2049
          %v2051 = vcombine.low %v2034, %v2042
          %v2053 = vunpack.c.l.s4 1934713408
          %v2054 = vunpack.c.0.s8 %v2053
          %v2055 = vlaneseq
          %v2056 = vshrl.u32 %v2055, 7
          %v2057 = vsub.s32 %v2054, %v2056
          %v2058 = vrot.slane %v2051, %v2057
          %v2059 = vcombine.low %v2050, %v2058
          %v2060 = vcombine.high %v2050, %v2058
          %v2061 = vcombine.low %v1983, %v1990
          %v2063 = vunpack.c.l.s4 1983009808
          %v2064 = vunpack.c.0.s8 %v2063
          %v2065 = vlaneseq
          %v2066 = vshrl.u32 %v2065, 7
          %v2067 = vsub.s32 %v2064, %v2066
          %v2068 = vrot.slane %v2061, %v2067
          %v2069 = vcombine.low %v2007, %v2008
          %v2071 = vunpack.c.l.s4 1983009808
          %v2072 = vunpack.c.0.s8 %v2071
          %v2073 = vlaneseq
          %v2074 = vshrl.u32 %v2073, 7
          %v2075 = vsub.s32 %v2072, %v2074
          %v2076 = vrot.slane %v2069, %v2075
          %v2077 = vcombine.low %v1999, %v2006
          %v2079 = vunpack.c.l.s4 1983009808
          %v2080 = vunpack.c.0.s8 %v2079
          %v2081 = vlaneseq
          %v2082 = vshrl.u32 %v2081, 7
          %v2083 = vsub.s32 %v2080, %v2082
          %v2084 = vrot.slane %v2077, %v2083
          %v2085 = vcombine.low %v2009, %v2010
          %v2087 = vunpack.c.l.s4 1983009808
          %v2088 = vunpack.c.0.s8 %v2087
          %v2089 = vlaneseq
          %v2090 = vshrl.u32 %v2089, 7
          %v2091 = vsub.s32 %v2088, %v2090
          %v2092 = vrot.slane %v2085, %v2091
          %v2093 = vcombine.low %v2068, %v2076
          %v2095 = vunpack.c.l.s4 1934713408
          %v2096 = vunpack.c.0.s8 %v2095
          %v2097 = vlaneseq
          %v2098 = vshrl.u32 %v2097, 7
          %v2099 = vsub.s32 %v2096, %v2098
          %v2100 = vrot.slane %v2093, %v2099
          %v2101 = vcombine.low %v2084, %v2092
          %v2103 = vunpack.c.l.s4 1934713408
          %v2104 = vunpack.c.0.s8 %v2103
          %v2105 = vlaneseq
          %v2106 = vshrl.u32 %v2105, 7
          %v2107 = vsub.s32 %v2104, %v2106
          %v2108 = vrot.slane %v2101, %v2107
          %v2109 = vcombine.low %v2100, %v2108
          %v2110 = vcombine.high %v2100, %v2108
          %v2113 = vpack.i.b16 %v2109, %v2059
          %v2115 = vshrl.u32 %v2059, 16
          %v2116 = vshrl.u32 %v2109, 16
          %v2117 = vpack.i.b16 %v2116, %v2115
          %v2121 = vpack.i.b16 %v2110, %v2060
          %v2123 = vshrl.u32 %v2060, 16
          %v2124 = vshrl.u32 %v2110, 16
          %v2125 = vpack.i.b16 %v2124, %v2123
          %v2127 = vpack.c.bf16 %v1846, %v1843
          %2129 = vrot.lane.b32.xlu0 %v2127, 120
          %v2130 = vpop.permute.xlu0 %2129
          %2131 = vrot.lane.b32.xlu0 %v2127, 112
          %v2132 = vpop.permute.xlu0 %2131
          %2133 = vrot.lane.b32.xlu0 %v2127, 104
          %v2134 = vpop.permute.xlu0 %2133
          %v2137 = vpack.i.b16 %v2130, %v2127
          %v2139 = vshrl.u32 %v2127, 16
          %v2140 = vshrl.u32 %v2130, 16
          %v2141 = vpack.i.b16 %v2140, %v2139
          %v2145 = vpack.i.b16 %v2134, %v2132
          %v2147 = vshrl.u32 %v2132, 16
          %v2148 = vshrl.u32 %v2134, 16
          %v2149 = vpack.i.b16 %v2148, %v2147
          %v2151 = vcombine.high %v2137, %v1874
          %v2153 = vunpack.c.l.s4 1983009808
          %v2154 = vunpack.c.0.s8 %v2153
          %v2155 = vlaneseq
          %v2156 = vshrl.u32 %v2155, 7
          %v2157 = vsub.s32 %v2154, %v2156
          %v2158 = vrot.slane %v2137, %v2157
          %v2160 = vunpack.c.l.s4 1983009808
          %v2161 = vunpack.c.0.s8 %v2160
          %v2162 = vlaneseq
          %v2163 = vshrl.u32 %v2162, 7
          %v2164 = vsub.s32 %v2161, %v2163
          %v2165 = vrot.slane %v2151, %v2164
          %v2166 = vcombine.high %v2145, %v1874
          %v2168 = vunpack.c.l.s4 1983009808
          %v2169 = vunpack.c.0.s8 %v2168
          %v2170 = vlaneseq
          %v2171 = vshrl.u32 %v2170, 7
          %v2172 = vsub.s32 %v2169, %v2171
          %v2173 = vrot.slane %v2145, %v2172
          %v2175 = vunpack.c.l.s4 1983009808
          %v2176 = vunpack.c.0.s8 %v2175
          %v2177 = vlaneseq
          %v2178 = vshrl.u32 %v2177, 7
          %v2179 = vsub.s32 %v2176, %v2178
          %v2180 = vrot.slane %v2166, %v2179
          %v2181 = vcombine.low %v2158, %v2173
          %v2182 = vcombine.high %v2158, %v2173
          %v2184 = vunpack.c.l.s4 1934713408
          %v2185 = vunpack.c.0.s8 %v2184
          %v2186 = vlaneseq
          %v2187 = vshrl.u32 %v2186, 7
          %v2188 = vsub.s32 %v2185, %v2187
          %v2189 = vrot.slane %v2181, %v2188
          %v2191 = vunpack.c.l.s4 1934713408
          %v2192 = vunpack.c.0.s8 %v2191
          %v2193 = vlaneseq
          %v2194 = vshrl.u32 %v2193, 7
          %v2195 = vsub.s32 %v2192, %v2194
          %v2196 = vrot.slane %v2182, %v2195
          %v2197 = vcombine.low %v2165, %v2180
          %v2198 = vcombine.high %v2165, %v2180
          %v2200 = vunpack.c.l.s4 1934713408
          %v2201 = vunpack.c.0.s8 %v2200
          %v2202 = vlaneseq
          %v2203 = vshrl.u32 %v2202, 7
          %v2204 = vsub.s32 %v2201, %v2203
          %v2205 = vrot.slane %v2197, %v2204
          %v2207 = vunpack.c.l.s4 1934713408
          %v2208 = vunpack.c.0.s8 %v2207
          %v2209 = vlaneseq
          %v2210 = vshrl.u32 %v2209, 7
          %v2211 = vsub.s32 %v2208, %v2210
          %v2212 = vrot.slane %v2198, %v2211
          %v2213 = vcombine.high %v2189, 0
          %v2214 = vcombine.high %v2196, 0
          %v2215 = vcombine.high %v2205, 0
          %v2216 = vcombine.high %v2212, 0
          %v2217 = vcombine.high %v2141, %v1877
          %v2219 = vunpack.c.l.s4 1983009808
          %v2220 = vunpack.c.0.s8 %v2219
          %v2221 = vlaneseq
          %v2222 = vshrl.u32 %v2221, 7
          %v2223 = vsub.s32 %v2220, %v2222
          %v2224 = vrot.slane %v2141, %v2223
          %v2226 = vunpack.c.l.s4 1983009808
          %v2227 = vunpack.c.0.s8 %v2226
          %v2228 = vlaneseq
          %v2229 = vshrl.u32 %v2228, 7
          %v2230 = vsub.s32 %v2227, %v2229
          %v2231 = vrot.slane %v2217, %v2230
          %v2232 = vcombine.high %v2149, %v1877
          %v2234 = vunpack.c.l.s4 1983009808
          %v2235 = vunpack.c.0.s8 %v2234
          %v2236 = vlaneseq
          %v2237 = vshrl.u32 %v2236, 7
          %v2238 = vsub.s32 %v2235, %v2237
          %v2239 = vrot.slane %v2149, %v2238
          %v2241 = vunpack.c.l.s4 1983009808
          %v2242 = vunpack.c.0.s8 %v2241
          %v2243 = vlaneseq
          %v2244 = vshrl.u32 %v2243, 7
          %v2245 = vsub.s32 %v2242, %v2244
          %v2246 = vrot.slane %v2232, %v2245
          %v2247 = vcombine.low %v2224, %v2239
          %v2248 = vcombine.high %v2224, %v2239
          %v2250 = vunpack.c.l.s4 1934713408
          %v2251 = vunpack.c.0.s8 %v2250
          %v2252 = vlaneseq
          %v2253 = vshrl.u32 %v2252, 7
          %v2254 = vsub.s32 %v2251, %v2253
          %v2255 = vrot.slane %v2247, %v2254
          %v2257 = vunpack.c.l.s4 1934713408
          %v2258 = vunpack.c.0.s8 %v2257
          %v2259 = vlaneseq
          %v2260 = vshrl.u32 %v2259, 7
          %v2261 = vsub.s32 %v2258, %v2260
          %v2262 = vrot.slane %v2248, %v2261
          %v2263 = vcombine.low %v2231, %v2246
          %v2264 = vcombine.high %v2231, %v2246
          %v2266 = vunpack.c.l.s4 1934713408
          %v2267 = vunpack.c.0.s8 %v2266
          %v2268 = vlaneseq
          %v2269 = vshrl.u32 %v2268, 7
          %v2270 = vsub.s32 %v2267, %v2269
          %v2271 = vrot.slane %v2263, %v2270
          %v2273 = vunpack.c.l.s4 1934713408
          %v2274 = vunpack.c.0.s8 %v2273
          %v2275 = vlaneseq
          %v2276 = vshrl.u32 %v2275, 7
          %v2277 = vsub.s32 %v2274, %v2276
          %v2278 = vrot.slane %v2264, %v2277
          %v2279 = vcombine.high %v2255, 0
          %v2280 = vcombine.high %v2262, 0
          %v2281 = vcombine.high %v2271, 0
          %v2282 = vcombine.high %v2278, 0
          %v2283 = vcombine.low %v2189, %v2196
          %v2285 = vunpack.c.l.s4 1983009808
          %v2286 = vunpack.c.0.s8 %v2285
          %v2287 = vlaneseq
          %v2288 = vshrl.u32 %v2287, 7
          %v2289 = vsub.s32 %v2286, %v2288
          %v2290 = vrot.slane %v2283, %v2289
          %v2291 = vcombine.low %v2213, %v2214
          %v2293 = vunpack.c.l.s4 1983009808
          %v2294 = vunpack.c.0.s8 %v2293
          %v2295 = vlaneseq
          %v2296 = vshrl.u32 %v2295, 7
          %v2297 = vsub.s32 %v2294, %v2296
          %v2298 = vrot.slane %v2291, %v2297
          %v2299 = vcombine.low %v2205, %v2212
          %v2301 = vunpack.c.l.s4 1983009808
          %v2302 = vunpack.c.0.s8 %v2301
          %v2303 = vlaneseq
          %v2304 = vshrl.u32 %v2303, 7
          %v2305 = vsub.s32 %v2302, %v2304
          %v2306 = vrot.slane %v2299, %v2305
          %v2307 = vcombine.low %v2215, %v2216
          %v2309 = vunpack.c.l.s4 1983009808
          %v2310 = vunpack.c.0.s8 %v2309
          %v2311 = vlaneseq
          %v2312 = vshrl.u32 %v2311, 7
          %v2313 = vsub.s32 %v2310, %v2312
          %v2314 = vrot.slane %v2307, %v2313
          %v2315 = vcombine.low %v2290, %v2298
          %v2317 = vunpack.c.l.s4 1934713408
          %v2318 = vunpack.c.0.s8 %v2317
          %v2319 = vlaneseq
          %v2320 = vshrl.u32 %v2319, 7
          %v2321 = vsub.s32 %v2318, %v2320
          %v2322 = vrot.slane %v2315, %v2321
          %v2323 = vcombine.low %v2306, %v2314
          %v2325 = vunpack.c.l.s4 1934713408
          %v2326 = vunpack.c.0.s8 %v2325
          %v2327 = vlaneseq
          %v2328 = vshrl.u32 %v2327, 7
          %v2329 = vsub.s32 %v2326, %v2328
          %v2330 = vrot.slane %v2323, %v2329
          %v2331 = vcombine.low %v2322, %v2330
          %v2332 = vcombine.high %v2322, %v2330
          %v2333 = vcombine.low %v2255, %v2262
          %v2335 = vunpack.c.l.s4 1983009808
          %v2336 = vunpack.c.0.s8 %v2335
          %v2337 = vlaneseq
          %v2338 = vshrl.u32 %v2337, 7
          %v2339 = vsub.s32 %v2336, %v2338
          %v2340 = vrot.slane %v2333, %v2339
          %v2341 = vcombine.low %v2279, %v2280
          %v2343 = vunpack.c.l.s4 1983009808
          %v2344 = vunpack.c.0.s8 %v2343
          %v2345 = vlaneseq
          %v2346 = vshrl.u32 %v2345, 7
          %v2347 = vsub.s32 %v2344, %v2346
          %v2348 = vrot.slane %v2341, %v2347
          %v2349 = vcombine.low %v2271, %v2278
          %v2351 = vunpack.c.l.s4 1983009808
          %v2352 = vunpack.c.0.s8 %v2351
          %v2353 = vlaneseq
          %v2354 = vshrl.u32 %v2353, 7
          %v2355 = vsub.s32 %v2352, %v2354
          %v2356 = vrot.slane %v2349, %v2355
          %v2357 = vcombine.low %v2281, %v2282
          %v2359 = vunpack.c.l.s4 1983009808
          %v2360 = vunpack.c.0.s8 %v2359
          %v2361 = vlaneseq
          %v2362 = vshrl.u32 %v2361, 7
          %v2363 = vsub.s32 %v2360, %v2362
          %v2364 = vrot.slane %v2357, %v2363
          %v2365 = vcombine.low %v2340, %v2348
          %v2367 = vunpack.c.l.s4 1934713408
          %v2368 = vunpack.c.0.s8 %v2367
          %v2369 = vlaneseq
          %v2370 = vshrl.u32 %v2369, 7
          %v2371 = vsub.s32 %v2368, %v2370
          %v2372 = vrot.slane %v2365, %v2371
          %v2373 = vcombine.low %v2356, %v2364
          %v2375 = vunpack.c.l.s4 1934713408
          %v2376 = vunpack.c.0.s8 %v2375
          %v2377 = vlaneseq
          %v2378 = vshrl.u32 %v2377, 7
          %v2379 = vsub.s32 %v2376, %v2378
          %v2380 = vrot.slane %v2373, %v2379
          %v2381 = vcombine.low %v2372, %v2380
          %v2382 = vcombine.high %v2372, %v2380
          %v2385 = vpack.i.b16 %v2381, %v2331
          %v2387 = vshrl.u32 %v2331, 16
          %v2388 = vshrl.u32 %v2381, 16
          %v2389 = vpack.i.b16 %v2388, %v2387
          %v2393 = vpack.i.b16 %v2382, %v2332
          %v2395 = vshrl.u32 %v2332, 16
          %v2396 = vshrl.u32 %v2382, 16
          %v2397 = vpack.i.b16 %v2396, %v2395
          %vm2399 = vcmask 64512
          %2400 = vst.msk [vmem:[#allocation4] sm:$0xff] %vm2399, %v2113
          %2401 = vst.msk [vmem:[#allocation4 + $0x8] sm:$0xff] %vm2399, %v2117
          %2402 = vst.msk [vmem:[#allocation4 + $0x10] sm:$0xff] %vm2399, %v2121
          %2403 = vst.msk [vmem:[#allocation4 + $0x18] sm:$0xff] %vm2399, %v2125
          %2404 = vst.msk [vmem:[#allocation5] sm:$0xff] %vm2399, %v2385
          %2405 = vst.msk [vmem:[#allocation5 + $0x8] sm:$0xff] %vm2399, %v2389
          %2406 = vst.msk [vmem:[#allocation5 + $0x10] sm:$0xff] %vm2399, %v2393
          %2407 = vst.msk [vmem:[#allocation5 + $0x18] sm:$0xff] %vm2399, %v2397
        $region200: #{tpu_custom_call.1} parent=143 // pred_fallthru
          _
        %v2408 = vld [vmem:[%s1211] sm:$0xff]
        %v2409 = vld [vmem:[#allocation2] sm:$0xf]
        %v2410 = vld [vmem:[#allocation2 + $0x4] sm:$0xf]
        %v2411 = vld [vmem:[#allocation2 + $0x8] sm:$0xf]
        %v2412 = vld [vmem:[#allocation2 + $0xc] sm:$0xf]
        %v2413 = vld [vmem:[#allocation3] sm:$0xf]
        %v2414 = vld [vmem:[#allocation3 + $0x4] sm:$0xf]
        %v2415 = vld [vmem:[#allocation3 + $0x8] sm:$0xf]
        %v2416 = vld [vmem:[#allocation3 + $0xc] sm:$0xf]
        %v2417 = vld [vmem:[#allocation6] sm:$0x3]
        %v2418 = vld [vmem:[%s11] sm:$0xf]
        %v2419 = vld [vmem:[%s11 + $0x4] sm:$0xf]
        %v2420 = vld [vmem:[%s11 + $0x8] sm:$0xf]
        %v2421 = vld [vmem:[%s11 + $0xc] sm:$0xf]
        %v2422 = vld [vmem:[#allocation11] sm:$0x1]
        %v2423 = vld [vmem:[#allocation17] sm:$0xf]
        %v2424 = vld [vmem:[#allocation17 + $0x4] sm:$0xf]
        %v2425 = vld [vmem:[#allocation17 + $0x8] sm:$0xf]
        %v2426 = vld [vmem:[#allocation17 + $0xc] sm:$0xf]
        %v2427 = vld [vmem:[#allocation18] sm:$0x1]
        %v2428 = vld [vmem:[#allocation20] sm:$0x1]
        %v2429 = vld [vmem:[#allocation21] sm:$0x1]
        %v2430 = vpack.c.bf16 %v2408, %v2408
        %v2432 = vlaneseq
        %v2433 = vshrl.u32 %v2432, 7
        %v2434 = vsub.s32 0, %v2433
        %v2435 = vrot.slane %v2422, %v2434
        %v2441 = vunpack.c.l.b16 %v2418
        %v2442 = vunpack.c.l.b16 %v2419
        %v2443 = vunpack.c.l.b16 %v2420
        %v2444 = vunpack.c.l.b16 %v2421
        %v2445 = vpack.c.b16 %v2442, %v2441
        %v2446 = vpack.c.b16 %v2444, %v2443
        %vm2449 = vcmask 261120
        %v2451 = vsel %vm2449, %v2430, 0
        %2453 = vmatprep.subr.bf16.mxu0 0
        %2454 = vmatpush1.bf16.msra.mxu0 %v2445
        %2455 = vmatprep.subr.bf16.mxu0 0
        %2456 = vmatpush1.bf16.msra.mxu0 %v2446
        %2457 = vmatprep.subr.bf16.mxu0 0
        %2458 = vmatpush1.bf16.msra.mxu0 0
        %2459 = vmatprep.subr.bf16.mxu0 0
        %2460 = vmatpush1.bf16.msra.mxu0 0
        %2461 = vmatprep.subr.bf16.mxu0 0
        %2462 = vmatpush1.bf16.msra.mxu0 0
        %2463 = vmatprep.subr.bf16.mxu0 0
        %2464 = vmatpush1.bf16.msra.mxu0 0
        %2465 = vmatprep.subr.bf16.mxu0 0
        %2466 = vmatpush1.bf16.msra.mxu0 0
        %2467 = vmatprep.subr.bf16.mxu0 0
        %2468 = vmatpush1.bf16.msra.mxu0 0
        %2469 = vmatprep.subr.bf16.mxu0 0
        %2470 = vmatpush1.bf16.msra.mxu0 0
        %2471 = vmatprep.subr.bf16.mxu0 0
        %2472 = vmatpush1.bf16.msra.mxu0 0
        %2473 = vmatprep.subr.bf16.mxu0 0
        %2474 = vmatpush1.bf16.msra.mxu0 0
        %2475 = vmatprep.subr.bf16.mxu0 0
        %2476 = vmatpush1.bf16.msra.mxu0 0
        %2477 = vmatprep.subr.bf16.mxu0 0
        %2478 = vmatpush1.bf16.msra.mxu0 0
        %2479 = vmatprep.subr.bf16.mxu0 0
        %2480 = vmatpush1.bf16.msra.mxu0 0
        %2481 = vmatprep.subr.bf16.mxu0 0
        %2482 = vmatpush1.bf16.msra.mxu0 0
        %2483 = vmatprep.subr.bf16.mxu0 0
        %2484 = vmatpush1.bf16.msra.mxu0 0
        %2485 = vmatprep.mubr.bf16.mxu0 0
        %2486 = vmatmul.mubr.bf16.gmra.mrb[0].mxu0 %v2451
        %v2487 = vpop.f32.mrb[0].mxu0
        %v2488 = vadd.f32 %v2435, %v2487
        %v2489 = vpop.f32.mrb[0].mxu0
        %v2490 = vpop.f32.mrb[0].mxu0
        %v2491 = vpop.f32.mrb[0].mxu0
        %2492 = vdwg.mxu0
        %v2493 = vpack.c.bf16 %v2488, %v2488
        %2495 = vrot.lane.b32.xlu0 %v2493, 120
        %v2496 = vpop.permute.xlu0 %2495
        %2497 = vrot.lane.b32.xlu0 %v2493, 112
        %v2498 = vpop.permute.xlu0 %2497
        %2499 = vrot.lane.b32.xlu0 %v2493, 104
        %v2500 = vpop.permute.xlu0 %2499
        %v2502 = vunpack.c.l.s4 1983009808
        %v2503 = vunpack.c.0.s8 %v2502
        %v2504 = vlaneseq
        %v2505 = vshrl.u32 %v2504, 7
        %v2506 = vsub.s32 %v2503, %v2505
        %v2507 = vrot.slane %v2493, %v2506
        %v2510 = vunpack.c.l.s4 1983009808
        %v2511 = vunpack.c.0.s8 %v2510
        %v2512 = vlaneseq
        %v2513 = vshrl.u32 %v2512, 7
        %v2514 = vsub.s32 %v2511, %v2513
        %v2515 = vrot.slane %v2498, %v2514
        %v2516 = vcombine.low %v2507, %v2515
        %v2517 = vcombine.high %v2507, %v2515
        %v2519 = vunpack.c.l.s4 1934713408
        %v2520 = vunpack.c.0.s8 %v2519
        %v2521 = vlaneseq
        %v2522 = vshrl.u32 %v2521, 7
        %v2523 = vsub.s32 %v2520, %v2522
        %v2524 = vrot.slane %v2516, %v2523
        %v2526 = vunpack.c.l.s4 1934713408
        %v2527 = vunpack.c.0.s8 %v2526
        %v2528 = vlaneseq
        %v2529 = vshrl.u32 %v2528, 7
        %v2530 = vsub.s32 %v2527, %v2529
        %v2531 = vrot.slane %v2517, %v2530
        %v2532 = vcombine.high %v2524, 0
        %v2533 = vcombine.high %v2531, 0
        %v2536 = vunpack.c.l.s4 1983009808
        %v2537 = vunpack.c.0.s8 %v2536
        %v2538 = vlaneseq
        %v2539 = vshrl.u32 %v2538, 7
        %v2540 = vsub.s32 %v2537, %v2539
        %v2541 = vrot.slane %v2496, %v2540
        %v2544 = vunpack.c.l.s4 1983009808
        %v2545 = vunpack.c.0.s8 %v2544
        %v2546 = vlaneseq
        %v2547 = vshrl.u32 %v2546, 7
        %v2548 = vsub.s32 %v2545, %v2547
        %v2549 = vrot.slane %v2500, %v2548
        %v2550 = vcombine.low %v2541, %v2549
        %v2551 = vcombine.high %v2541, %v2549
        %v2553 = vunpack.c.l.s4 1934713408
        %v2554 = vunpack.c.0.s8 %v2553
        %v2555 = vlaneseq
        %v2556 = vshrl.u32 %v2555, 7
        %v2557 = vsub.s32 %v2554, %v2556
        %v2558 = vrot.slane %v2550, %v2557
        %v2560 = vunpack.c.l.s4 1934713408
        %v2561 = vunpack.c.0.s8 %v2560
        %v2562 = vlaneseq
        %v2563 = vshrl.u32 %v2562, 7
        %v2564 = vsub.s32 %v2561, %v2563
        %v2565 = vrot.slane %v2551, %v2564
        %v2566 = vcombine.high %v2558, 0
        %v2567 = vcombine.high %v2565, 0
        %v2570 = vpack.i.b16 %v2558, %v2524
        %v2572 = vshrl.u32 %v2524, 16
        %v2573 = vshrl.u32 %v2558, 16
        %v2574 = vpack.i.b16 %v2573, %v2572
        %v2578 = vpack.i.b16 %v2566, %v2532
        %v2580 = vshrl.u32 %v2532, 16
        %v2581 = vshrl.u32 %v2566, 16
        %v2582 = vpack.i.b16 %v2581, %v2580
        %v2586 = vpack.i.b16 %v2565, %v2531
        %v2588 = vshrl.u32 %v2531, 16
        %v2589 = vshrl.u32 %v2565, 16
        %v2590 = vpack.i.b16 %v2589, %v2588
        %v2594 = vpack.i.b16 %v2567, %v2533
        %v2596 = vshrl.u32 %v2533, 16
        %v2597 = vshrl.u32 %v2567, 16
        %v2598 = vpack.i.b16 %v2597, %v2596
        %v2600 = vcombine.low %v2570, %v2586
        %v2602 = vunpack.c.l.s4 1983009808
        %v2603 = vunpack.c.0.s8 %v2602
        %v2604 = vlaneseq
        %v2605 = vshrl.u32 %v2604, 7
        %v2606 = vsub.s32 %v2603, %v2605
        %v2607 = vrot.slane %v2600, %v2606
        %v2608 = vcombine.low %v2578, %v2594
        %v2610 = vunpack.c.l.s4 1983009808
        %v2611 = vunpack.c.0.s8 %v2610
        %v2612 = vlaneseq
        %v2613 = vshrl.u32 %v2612, 7
        %v2614 = vsub.s32 %v2611, %v2613
        %v2615 = vrot.slane %v2608, %v2614
        %v2616 = vcombine.low %v2607, %v2615
        %v2618 = vunpack.c.l.s4 1934713408
        %v2619 = vunpack.c.0.s8 %v2618
        %v2620 = vlaneseq
        %v2621 = vshrl.u32 %v2620, 7
        %v2622 = vsub.s32 %v2619, %v2621
        %v2623 = vrot.slane %v2616, %v2622
        %v2624 = vcombine.high %v2623, 0
        %v2625 = vcombine.low %v2574, %v2590
        %v2627 = vunpack.c.l.s4 1983009808
        %v2628 = vunpack.c.0.s8 %v2627
        %v2629 = vlaneseq
        %v2630 = vshrl.u32 %v2629, 7
        %v2631 = vsub.s32 %v2628, %v2630
        %v2632 = vrot.slane %v2625, %v2631
        %v2633 = vcombine.low %v2582, %v2598
        %v2635 = vunpack.c.l.s4 1983009808
        %v2636 = vunpack.c.0.s8 %v2635
        %v2637 = vlaneseq
        %v2638 = vshrl.u32 %v2637, 7
        %v2639 = vsub.s32 %v2636, %v2638
        %v2640 = vrot.slane %v2633, %v2639
        %v2641 = vcombine.low %v2632, %v2640
        %v2643 = vunpack.c.l.s4 1934713408
        %v2644 = vunpack.c.0.s8 %v2643
        %v2645 = vlaneseq
        %v2646 = vshrl.u32 %v2645, 7
        %v2647 = vsub.s32 %v2644, %v2646
        %v2648 = vrot.slane %v2641, %v2647
        %v2649 = vcombine.high %v2648, 0
        %v2652 = vpack.i.b16 %v2648, %v2623
        %v2653 = vshrl.u32 %v2623, 16
        %v2654 = vshrl.u32 %v2648, 16
        %v2655 = vpack.i.b16 %v2654, %v2653
        %v2658 = vpack.i.b16 %v2649, %v2624
        %v2659 = vshrl.u32 %v2624, 16
        %v2660 = vshrl.u32 %v2649, 16
        %v2661 = vpack.i.b16 %v2660, %v2659
        %vm2662 = vcmask 64512
        %v2664 = vsel %vm2662, %v2652, 0
        %v2667 = vsel %vm2662, %v2409, 0
        %2669 = vmatprep.subr.bf16.mxu0 0
        %2670 = vmatpush1.bf16.xpose.msra.mxu0 %v2667
        %2671 = vmatprep.subr.bf16.mxu0 0
        %2672 = vmatpush1.bf16.xpose.msra.mxu0 0
        %2673 = vmatprep.subr.bf16.mxu0 0
        %2674 = vmatpush1.bf16.xpose.msra.mxu0 0
        %2675 = vmatprep.subr.bf16.mxu0 0
        %2676 = vmatpush1.bf16.xpose.msra.mxu0 0
        %2677 = vmatprep.subr.bf16.mxu0 0
        %2678 = vmatpush1.bf16.xpose.msra.mxu0 0
        %2679 = vmatprep.subr.bf16.mxu0 0
        %2680 = vmatpush1.bf16.xpose.msra.mxu0 0
        %2681 = vmatprep.subr.bf16.mxu0 0
        %2682 = vmatpush1.bf16.xpose.msra.mxu0 0
        %2683 = vmatprep.subr.bf16.mxu0 0
        %2684 = vmatpush1.bf16.xpose.msra.mxu0 0
        %2685 = vmatprep.subr.bf16.mxu0 0
        %2686 = vmatpush1.bf16.xpose.msra.mxu0 0
        %2687 = vmatprep.subr.bf16.mxu0 0
        %2688 = vmatpush1.bf16.xpose.msra.mxu0 0
        %2689 = vmatprep.subr.bf16.mxu0 0
        %2690 = vmatpush1.bf16.xpose.msra.mxu0 0
        %2691 = vmatprep.subr.bf16.mxu0 0
        %2692 = vmatpush1.bf16.xpose.msra.mxu0 0
        %2693 = vmatprep.subr.bf16.mxu0 0
        %2694 = vmatpush1.bf16.xpose.msra.mxu0 0
        %2695 = vmatprep.subr.bf16.mxu0 0
        %2696 = vmatpush1.bf16.xpose.msra.mxu0 0
        %2697 = vmatprep.subr.bf16.mxu0 0
        %2698 = vmatpush1.bf16.xpose.msra.mxu0 0
        %2699 = vmatprep.subr.bf16.mxu0 0
        %2700 = vmatpush1.bf16.xpose.msra.mxu0 0
        %2701 = vmatprep.mubr.bf16.mxu0 0
        %2702 = vmatmul.mubr.bf16.gmra.mrb[0].mxu0 %v2664
        %v2703 = vpop.f32.mrb[0].mxu0
        %v2704 = vadd.f32 0.0, %v2703
        %v2705 = vpop.f32.mrb[0].mxu0
        %v2706 = vpop.f32.mrb[0].mxu0
        %v2707 = vpop.f32.mrb[0].mxu0
        %2708 = vdwg.mxu0
        %v2710 = vsel %vm2662, %v2655, 0
        %v2713 = vsel %vm2662, %v2410, 0
        %2715 = vmatprep.subr.bf16.mxu0 0
        %2716 = vmatpush1.bf16.xpose.msra.mxu0 %v2713
        %2717 = vmatprep.subr.bf16.mxu0 0
        %2718 = vmatpush1.bf16.xpose.msra.mxu0 0
        %2719 = vmatprep.subr.bf16.mxu0 0
        %2720 = vmatpush1.bf16.xpose.msra.mxu0 0
        %2721 = vmatprep.subr.bf16.mxu0 0
        %2722 = vmatpush1.bf16.xpose.msra.mxu0 0
        %2723 = vmatprep.subr.bf16.mxu0 0
        %2724 = vmatpush1.bf16.xpose.msra.mxu0 0
        %2725 = vmatprep.subr.bf16.mxu0 0
        %2726 = vmatpush1.bf16.xpose.msra.mxu0 0
        %2727 = vmatprep.subr.bf16.mxu0 0
        %2728 = vmatpush1.bf16.xpose.msra.mxu0 0
        %2729 = vmatprep.subr.bf16.mxu0 0
        %2730 = vmatpush1.bf16.xpose.msra.mxu0 0
        %2731 = vmatprep.subr.bf16.mxu0 0
        %2732 = vmatpush1.bf16.xpose.msra.mxu0 0
        %2733 = vmatprep.subr.bf16.mxu0 0
        %2734 = vmatpush1.bf16.xpose.msra.mxu0 0
        %2735 = vmatprep.subr.bf16.mxu0 0
        %2736 = vmatpush1.bf16.xpose.msra.mxu0 0
        %2737 = vmatprep.subr.bf16.mxu0 0
        %2738 = vmatpush1.bf16.xpose.msra.mxu0 0
        %2739 = vmatprep.subr.bf16.mxu0 0
        %2740 = vmatpush1.bf16.xpose.msra.mxu0 0
        %2741 = vmatprep.subr.bf16.mxu0 0
        %2742 = vmatpush1.bf16.xpose.msra.mxu0 0
        %2743 = vmatprep.subr.bf16.mxu0 0
        %2744 = vmatpush1.bf16.xpose.msra.mxu0 0
        %2745 = vmatprep.subr.bf16.mxu0 0
        %2746 = vmatpush1.bf16.xpose.msra.mxu0 0
        %2747 = vmatprep.mubr.bf16.mxu0 0
        %2748 = vmatmul.mubr.bf16.gmra.mrb[0].mxu0 %v2710
        %v2749 = vpop.f32.mrb[0].mxu0
        %v2750 = vadd.f32 0.0, %v2749
        %v2751 = vpop.f32.mrb[0].mxu0
        %v2752 = vpop.f32.mrb[0].mxu0
        %v2753 = vpop.f32.mrb[0].mxu0
        %2754 = vdwg.mxu0
        %v2756 = vsel %vm2662, %v2658, 0
        %v2759 = vsel %vm2662, %v2411, 0
        %2761 = vmatprep.subr.bf16.mxu0 0
        %2762 = vmatpush1.bf16.xpose.msra.mxu0 %v2759
        %2763 = vmatprep.subr.bf16.mxu0 0
        %2764 = vmatpush1.bf16.xpose.msra.mxu0 0
        %2765 = vmatprep.subr.bf16.mxu0 0
        %2766 = vmatpush1.bf16.xpose.msra.mxu0 0
        %2767 = vmatprep.subr.bf16.mxu0 0
        %2768 = vmatpush1.bf16.xpose.msra.mxu0 0
        %2769 = vmatprep.subr.bf16.mxu0 0
        %2770 = vmatpush1.bf16.xpose.msra.mxu0 0
        %2771 = vmatprep.subr.bf16.mxu0 0
        %2772 = vmatpush1.bf16.xpose.msra.mxu0 0
        %2773 = vmatprep.subr.bf16.mxu0 0
        %2774 = vmatpush1.bf16.xpose.msra.mxu0 0
        %2775 = vmatprep.subr.bf16.mxu0 0
        %2776 = vmatpush1.bf16.xpose.msra.mxu0 0
        %2777 = vmatprep.subr.bf16.mxu0 0
        %2778 = vmatpush1.bf16.xpose.msra.mxu0 0
        %2779 = vmatprep.subr.bf16.mxu0 0
        %2780 = vmatpush1.bf16.xpose.msra.mxu0 0
        %2781 = vmatprep.subr.bf16.mxu0 0
        %2782 = vmatpush1.bf16.xpose.msra.mxu0 0
        %2783 = vmatprep.subr.bf16.mxu0 0
        %2784 = vmatpush1.bf16.xpose.msra.mxu0 0
        %2785 = vmatprep.subr.bf16.mxu0 0
        %2786 = vmatpush1.bf16.xpose.msra.mxu0 0
        %2787 = vmatprep.subr.bf16.mxu0 0
        %2788 = vmatpush1.bf16.xpose.msra.mxu0 0
        %2789 = vmatprep.subr.bf16.mxu0 0
        %2790 = vmatpush1.bf16.xpose.msra.mxu0 0
        %2791 = vmatprep.subr.bf16.mxu0 0
        %2792 = vmatpush1.bf16.xpose.msra.mxu0 0
        %2793 = vmatprep.mubr.bf16.mxu0 0
        %2794 = vmatmul.mubr.bf16.gmra.mrb[0].mxu0 %v2756
        %v2795 = vpop.f32.mrb[0].mxu0
        %v2796 = vadd.f32 0.0, %v2795
        %v2797 = vpop.f32.mrb[0].mxu0
        %v2798 = vpop.f32.mrb[0].mxu0
        %v2799 = vpop.f32.mrb[0].mxu0
        %2800 = vdwg.mxu0
        %v2802 = vsel %vm2662, %v2661, 0
        %v2805 = vsel %vm2662, %v2412, 0
        %2807 = vmatprep.subr.bf16.mxu0 0
        %2808 = vmatpush1.bf16.xpose.msra.mxu0 %v2805
        %2809 = vmatprep.subr.bf16.mxu0 0
        %2810 = vmatpush1.bf16.xpose.msra.mxu0 0
        %2811 = vmatprep.subr.bf16.mxu0 0
        %2812 = vmatpush1.bf16.xpose.msra.mxu0 0
        %2813 = vmatprep.subr.bf16.mxu0 0
        %2814 = vmatpush1.bf16.xpose.msra.mxu0 0
        %2815 = vmatprep.subr.bf16.mxu0 0
        %2816 = vmatpush1.bf16.xpose.msra.mxu0 0
        %2817 = vmatprep.subr.bf16.mxu0 0
        %2818 = vmatpush1.bf16.xpose.msra.mxu0 0
        %2819 = vmatprep.subr.bf16.mxu0 0
        %2820 = vmatpush1.bf16.xpose.msra.mxu0 0
        %2821 = vmatprep.subr.bf16.mxu0 0
        %2822 = vmatpush1.bf16.xpose.msra.mxu0 0
        %2823 = vmatprep.subr.bf16.mxu0 0
        %2824 = vmatpush1.bf16.xpose.msra.mxu0 0
        %2825 = vmatprep.subr.bf16.mxu0 0
        %2826 = vmatpush1.bf16.xpose.msra.mxu0 0
        %2827 = vmatprep.subr.bf16.mxu0 0
        %2828 = vmatpush1.bf16.xpose.msra.mxu0 0
        %2829 = vmatprep.subr.bf16.mxu0 0
        %2830 = vmatpush1.bf16.xpose.msra.mxu0 0
        %2831 = vmatprep.subr.bf16.mxu0 0
        %2832 = vmatpush1.bf16.xpose.msra.mxu0 0
        %2833 = vmatprep.subr.bf16.mxu0 0
        %2834 = vmatpush1.bf16.xpose.msra.mxu0 0
        %2835 = vmatprep.subr.bf16.mxu0 0
        %2836 = vmatpush1.bf16.xpose.msra.mxu0 0
        %2837 = vmatprep.subr.bf16.mxu0 0
        %2838 = vmatpush1.bf16.xpose.msra.mxu0 0
        %2839 = vmatprep.mubr.bf16.mxu0 0
        %2840 = vmatmul.mubr.bf16.gmra.mrb[0].mxu0 %v2802
        %v2841 = vpop.f32.mrb[0].mxu0
        %v2842 = vadd.f32 0.0, %v2841
        %v2843 = vpop.f32.mrb[0].mxu0
        %v2844 = vpop.f32.mrb[0].mxu0
        %v2845 = vpop.f32.mrb[0].mxu0
        %2846 = vdwg.mxu0
        %vm2847 = vnez %v2417
        %v2848 = vsel %vm2847, 16843009, 0
        %v2849 = vunpack.c.0.s8 %v2848
        %vm2850 = vcmp.ne.s32.totalorder %v2849, 0
        %v2851 = vsel %vm2850, 1, 0
        %vm2852 = vcmp.eq.s32.totalorder %v2851, 1
        %v2853 = vsel %vm2852, -1e+30, %v2704
        %v2854 = vsel %vm2852, -1e+30, %v2750
        %v2855 = vsel %vm2852, -1e+30, %v2796
        %v2856 = vsel %vm2852, -1e+30, %v2842
        %v2857 = vsel %vm2662, %v2853, -inf
        %2858 = vmax.xlane.f32.xlu0 %v2857
        %v2859 = vpop.xlane.xlu0 %2858
        %v2860 = vsel %vm2662, %v2854, -inf
        %2861 = vmax.xlane.f32.xlu0 %v2860
        %v2862 = vpop.xlane.xlu0 %2861
        %v2863 = vsel %vm2662, %v2855, -inf
        %2864 = vmax.xlane.f32.xlu0 %v2863
        %v2865 = vpop.xlane.xlu0 %2864
        %v2866 = vsel %vm2662, %v2856, -inf
        %2867 = vmax.xlane.f32.xlu0 %v2866
        %v2868 = vpop.xlane.xlu0 %2867
        %v2869 = vsub.f32 %v2853, %v2859
        %v2870 = vsub.f32 %v2854, %v2862
        %v2871 = vsub.f32 %v2855, %v2865
        %v2872 = vsub.f32 %v2856, %v2868
        %v2873 = vmul.f32 %v2869, 1.442695
        %v2874 = vpow.pop %v2873
        %v2875 = vmul.f32 %v2870, 1.442695
        %v2876 = vpow.pop %v2875
        %v2877 = vmul.f32 %v2871, 1.442695
        %v2878 = vpow.pop %v2877
        %v2879 = vmul.f32 %v2872, 1.442695
        %v2880 = vpow.pop %v2879
        %v2881 = vsel %vm2662, %v2874, 0.0
        %2882 = vadd.xlane.f32.xlu0 %v2881
        %v2883 = vpop.xlane.xlu0 %2882
        %v2884 = vsel %vm2662, %v2876, 0.0
        %2885 = vadd.xlane.f32.xlu0 %v2884
        %v2886 = vpop.xlane.xlu0 %2885
        %v2887 = vsel %vm2662, %v2878, 0.0
        %2888 = vadd.xlane.f32.xlu0 %v2887
        %v2889 = vpop.xlane.xlu0 %2888
        %v2890 = vsel %vm2662, %v2880, 0.0
        %2891 = vadd.xlane.f32.xlu0 %v2890
        %v2892 = vpop.xlane.xlu0 %2891
        %v2893 = vrcp.pop %v2883
        %v2894 = vrcp.pop %v2886
        %v2895 = vrcp.pop %v2889
        %v2896 = vrcp.pop %v2892
        %v2897 = vmul.f32 %v2874, %v2893
        %v2898 = vmul.f32 %v2876, %v2894
        %v2899 = vmul.f32 %v2878, %v2895
        %v2900 = vmul.f32 %v2880, %v2896
        %v2901 = vpack.c.bf16 %v2897, %v2897
        %v2902 = vpack.c.bf16 %v2898, %v2898
        %v2903 = vpack.c.bf16 %v2899, %v2899
        %v2904 = vpack.c.bf16 %v2900, %v2900
        %v2906 = vsel %vm2662, %v2901, 0
        %vm2908 = vcmask 1043456
        %v2910 = vsel %vm2908, %v2413, 0
        %2912 = vmatprep.subr.bf16.mxu0 0
        %2913 = vmatpush1.bf16.msra.mxu0 %v2910
        %2914 = vmatprep.subr.bf16.mxu0 0
        %2915 = vmatpush1.bf16.msra.mxu0 0
        %2916 = vmatprep.subr.bf16.mxu0 0
        %2917 = vmatpush1.bf16.msra.mxu0 0
        %2918 = vmatprep.subr.bf16.mxu0 0
        %2919 = vmatpush1.bf16.msra.mxu0 0
        %2920 = vmatprep.subr.bf16.mxu0 0
        %2921 = vmatpush1.bf16.msra.mxu0 0
        %2922 = vmatprep.subr.bf16.mxu0 0
        %2923 = vmatpush1.bf16.msra.mxu0 0
        %2924 = vmatprep.subr.bf16.mxu0 0
        %2925 = vmatpush1.bf16.msra.mxu0 0
        %2926 = vmatprep.subr.bf16.mxu0 0
        %2927 = vmatpush1.bf16.msra.mxu0 0
        %2928 = vmatprep.subr.bf16.mxu0 0
        %2929 = vmatpush1.bf16.msra.mxu0 0
        %2930 = vmatprep.subr.bf16.mxu0 0
        %2931 = vmatpush1.bf16.msra.mxu0 0
        %2932 = vmatprep.subr.bf16.mxu0 0
        %2933 = vmatpush1.bf16.msra.mxu0 0
        %2934 = vmatprep.subr.bf16.mxu0 0
        %2935 = vmatpush1.bf16.msra.mxu0 0
        %2936 = vmatprep.subr.bf16.mxu0 0
        %2937 = vmatpush1.bf16.msra.mxu0 0
        %2938 = vmatprep.subr.bf16.mxu0 0
        %2939 = vmatpush1.bf16.msra.mxu0 0
        %2940 = vmatprep.subr.bf16.mxu0 0
        %2941 = vmatpush1.bf16.msra.mxu0 0
        %2942 = vmatprep.subr.bf16.mxu0 0
        %2943 = vmatpush1.bf16.msra.mxu0 0
        %2944 = vmatprep.mubr.bf16.mxu0 0
        %2945 = vmatmul.mubr.bf16.gmra.mrb[0].mxu0 %v2906
        %v2946 = vpop.f32.mrb[0].mxu0
        %v2947 = vadd.f32 0.0, %v2946
        %v2948 = vpop.f32.mrb[0].mxu0
        %v2949 = vpop.f32.mrb[0].mxu0
        %v2950 = vpop.f32.mrb[0].mxu0
        %2951 = vdwg.mxu0
        %v2953 = vsel %vm2662, %v2902, 0
        %v2956 = vsel %vm2908, %v2414, 0
        %2958 = vmatprep.subr.bf16.mxu0 0
        %2959 = vmatpush1.bf16.msra.mxu0 %v2956
        %2960 = vmatprep.subr.bf16.mxu0 0
        %2961 = vmatpush1.bf16.msra.mxu0 0
        %2962 = vmatprep.subr.bf16.mxu0 0
        %2963 = vmatpush1.bf16.msra.mxu0 0
        %2964 = vmatprep.subr.bf16.mxu0 0
        %2965 = vmatpush1.bf16.msra.mxu0 0
        %2966 = vmatprep.subr.bf16.mxu0 0
        %2967 = vmatpush1.bf16.msra.mxu0 0
        %2968 = vmatprep.subr.bf16.mxu0 0
        %2969 = vmatpush1.bf16.msra.mxu0 0
        %2970 = vmatprep.subr.bf16.mxu0 0
        %2971 = vmatpush1.bf16.msra.mxu0 0
        %2972 = vmatprep.subr.bf16.mxu0 0
        %2973 = vmatpush1.bf16.msra.mxu0 0
        %2974 = vmatprep.subr.bf16.mxu0 0
        %2975 = vmatpush1.bf16.msra.mxu0 0
        %2976 = vmatprep.subr.bf16.mxu0 0
        %2977 = vmatpush1.bf16.msra.mxu0 0
        %2978 = vmatprep.subr.bf16.mxu0 0
        %2979 = vmatpush1.bf16.msra.mxu0 0
        %2980 = vmatprep.subr.bf16.mxu0 0
        %2981 = vmatpush1.bf16.msra.mxu0 0
        %2982 = vmatprep.subr.bf16.mxu0 0
        %2983 = vmatpush1.bf16.msra.mxu0 0
        %2984 = vmatprep.subr.bf16.mxu0 0
        %2985 = vmatpush1.bf16.msra.mxu0 0
        %2986 = vmatprep.subr.bf16.mxu0 0
        %2987 = vmatpush1.bf16.msra.mxu0 0
        %2988 = vmatprep.subr.bf16.mxu0 0
        %2989 = vmatpush1.bf16.msra.mxu0 0
        %2990 = vmatprep.mubr.bf16.mxu0 0
        %2991 = vmatmul.mubr.bf16.gmra.mrb[0].mxu0 %v2953
        %v2992 = vpop.f32.mrb[0].mxu0
        %v2993 = vadd.f32 0.0, %v2992
        %v2994 = vpop.f32.mrb[0].mxu0
        %v2995 = vpop.f32.mrb[0].mxu0
        %v2996 = vpop.f32.mrb[0].mxu0
        %2997 = vdwg.mxu0
        %v2999 = vsel %vm2662, %v2903, 0
        %v3002 = vsel %vm2908, %v2415, 0
        %3004 = vmatprep.subr.bf16.mxu0 0
        %3005 = vmatpush1.bf16.msra.mxu0 %v3002
        %3006 = vmatprep.subr.bf16.mxu0 0
        %3007 = vmatpush1.bf16.msra.mxu0 0
        %3008 = vmatprep.subr.bf16.mxu0 0
        %3009 = vmatpush1.bf16.msra.mxu0 0
        %3010 = vmatprep.subr.bf16.mxu0 0
        %3011 = vmatpush1.bf16.msra.mxu0 0
        %3012 = vmatprep.subr.bf16.mxu0 0
        %3013 = vmatpush1.bf16.msra.mxu0 0
        %3014 = vmatprep.subr.bf16.mxu0 0
        %3015 = vmatpush1.bf16.msra.mxu0 0
        %3016 = vmatprep.subr.bf16.mxu0 0
        %3017 = vmatpush1.bf16.msra.mxu0 0
        %3018 = vmatprep.subr.bf16.mxu0 0
        %3019 = vmatpush1.bf16.msra.mxu0 0
        %3020 = vmatprep.subr.bf16.mxu0 0
        %3021 = vmatpush1.bf16.msra.mxu0 0
        %3022 = vmatprep.subr.bf16.mxu0 0
        %3023 = vmatpush1.bf16.msra.mxu0 0
        %3024 = vmatprep.subr.bf16.mxu0 0
        %3025 = vmatpush1.bf16.msra.mxu0 0
        %3026 = vmatprep.subr.bf16.mxu0 0
        %3027 = vmatpush1.bf16.msra.mxu0 0
        %3028 = vmatprep.subr.bf16.mxu0 0
        %3029 = vmatpush1.bf16.msra.mxu0 0
        %3030 = vmatprep.subr.bf16.mxu0 0
        %3031 = vmatpush1.bf16.msra.mxu0 0
        %3032 = vmatprep.subr.bf16.mxu0 0
        %3033 = vmatpush1.bf16.msra.mxu0 0
        %3034 = vmatprep.subr.bf16.mxu0 0
        %3035 = vmatpush1.bf16.msra.mxu0 0
        %3036 = vmatprep.mubr.bf16.mxu0 0
        %3037 = vmatmul.mubr.bf16.gmra.mrb[0].mxu0 %v2999
        %v3038 = vpop.f32.mrb[0].mxu0
        %v3039 = vadd.f32 0.0, %v3038
        %v3040 = vpop.f32.mrb[0].mxu0
        %v3041 = vpop.f32.mrb[0].mxu0
        %v3042 = vpop.f32.mrb[0].mxu0
        %3043 = vdwg.mxu0
        %v3045 = vsel %vm2662, %v2904, 0
        %v3048 = vsel %vm2908, %v2416, 0
        %3050 = vmatprep.subr.bf16.mxu0 0
        %3051 = vmatpush1.bf16.msra.mxu0 %v3048
        %3052 = vmatprep.subr.bf16.mxu0 0
        %3053 = vmatpush1.bf16.msra.mxu0 0
        %3054 = vmatprep.subr.bf16.mxu0 0
        %3055 = vmatpush1.bf16.msra.mxu0 0
        %3056 = vmatprep.subr.bf16.mxu0 0
        %3057 = vmatpush1.bf16.msra.mxu0 0
        %3058 = vmatprep.subr.bf16.mxu0 0
        %3059 = vmatpush1.bf16.msra.mxu0 0
        %3060 = vmatprep.subr.bf16.mxu0 0
        %3061 = vmatpush1.bf16.msra.mxu0 0
        %3062 = vmatprep.subr.bf16.mxu0 0
        %3063 = vmatpush1.bf16.msra.mxu0 0
        %3064 = vmatprep.subr.bf16.mxu0 0
        %3065 = vmatpush1.bf16.msra.mxu0 0
        %3066 = vmatprep.subr.bf16.mxu0 0
        %3067 = vmatpush1.bf16.msra.mxu0 0
        %3068 = vmatprep.subr.bf16.mxu0 0
        %3069 = vmatpush1.bf16.msra.mxu0 0
        %3070 = vmatprep.subr.bf16.mxu0 0
        %3071 = vmatpush1.bf16.msra.mxu0 0
        %3072 = vmatprep.subr.bf16.mxu0 0
        %3073 = vmatpush1.bf16.msra.mxu0 0
        %3074 = vmatprep.subr.bf16.mxu0 0
        %3075 = vmatpush1.bf16.msra.mxu0 0
        %3076 = vmatprep.subr.bf16.mxu0 0
        %3077 = vmatpush1.bf16.msra.mxu0 0
        %3078 = vmatprep.subr.bf16.mxu0 0
        %3079 = vmatpush1.bf16.msra.mxu0 0
        %3080 = vmatprep.subr.bf16.mxu0 0
        %3081 = vmatpush1.bf16.msra.mxu0 0
        %3082 = vmatprep.mubr.bf16.mxu0 0
        %3083 = vmatmul.mubr.bf16.gmra.mrb[0].mxu0 %v3045
        %v3084 = vpop.f32.mrb[0].mxu0
        %v3085 = vadd.f32 0.0, %v3084
        %v3086 = vpop.f32.mrb[0].mxu0
        %v3087 = vpop.f32.mrb[0].mxu0
        %v3088 = vpop.f32.mrb[0].mxu0
        %3089 = vdwg.mxu0
        %v3090 = vpack.c.bf16 %v2947, %v2947
        %v3092 = vunpack.c.l.s4 1983009808
        %v3093 = vunpack.c.0.s8 %v3092
        %v3094 = vlaneseq
        %v3095 = vshrl.u32 %v3094, 7
        %v3096 = vsub.s32 %v3093, %v3095
        %v3097 = vrot.slane %v3090, %v3096
        %v3098 = vpack.c.bf16 %v3039, %v3039
        %v3100 = vunpack.c.l.s4 1983009808
        %v3101 = vunpack.c.0.s8 %v3100
        %v3102 = vlaneseq
        %v3103 = vshrl.u32 %v3102, 7
        %v3104 = vsub.s32 %v3101, %v3103
        %v3105 = vrot.slane %v3098, %v3104
        %v3106 = vcombine.low %v3097, %v3105
        %v3107 = vcombine.high %v3097, %v3105
        %v3109 = vunpack.c.l.s4 1934713408
        %v3110 = vunpack.c.0.s8 %v3109
        %v3111 = vlaneseq
        %v3112 = vshrl.u32 %v3111, 7
        %v3113 = vsub.s32 %v3110, %v3112
        %v3114 = vrot.slane %v3106, %v3113
        %v3116 = vunpack.c.l.s4 1934713408
        %v3117 = vunpack.c.0.s8 %v3116
        %v3118 = vlaneseq
        %v3119 = vshrl.u32 %v3118, 7
        %v3120 = vsub.s32 %v3117, %v3119
        %v3121 = vrot.slane %v3107, %v3120
        %v3122 = vcombine.high %v3114, 0
        %v3123 = vcombine.high %v3121, 0
        %v3124 = vpack.c.bf16 %v2993, %v2993
        %v3126 = vunpack.c.l.s4 1983009808
        %v3127 = vunpack.c.0.s8 %v3126
        %v3128 = vlaneseq
        %v3129 = vshrl.u32 %v3128, 7
        %v3130 = vsub.s32 %v3127, %v3129
        %v3131 = vrot.slane %v3124, %v3130
        %v3132 = vpack.c.bf16 %v3085, %v3085
        %v3134 = vunpack.c.l.s4 1983009808
        %v3135 = vunpack.c.0.s8 %v3134
        %v3136 = vlaneseq
        %v3137 = vshrl.u32 %v3136, 7
        %v3138 = vsub.s32 %v3135, %v3137
        %v3139 = vrot.slane %v3132, %v3138
        %v3140 = vcombine.low %v3131, %v3139
        %v3141 = vcombine.high %v3131, %v3139
        %v3143 = vunpack.c.l.s4 1934713408
        %v3144 = vunpack.c.0.s8 %v3143
        %v3145 = vlaneseq
        %v3146 = vshrl.u32 %v3145, 7
        %v3147 = vsub.s32 %v3144, %v3146
        %v3148 = vrot.slane %v3140, %v3147
        %v3150 = vunpack.c.l.s4 1934713408
        %v3151 = vunpack.c.0.s8 %v3150
        %v3152 = vlaneseq
        %v3153 = vshrl.u32 %v3152, 7
        %v3154 = vsub.s32 %v3151, %v3153
        %v3155 = vrot.slane %v3141, %v3154
        %v3156 = vcombine.high %v3148, 0
        %v3157 = vcombine.high %v3155, 0
        %v3160 = vpack.i.b16 %v3148, %v3114
        %v3162 = vshrl.u32 %v3114, 16
        %v3163 = vshrl.u32 %v3148, 16
        %v3164 = vpack.i.b16 %v3163, %v3162
        %v3168 = vpack.i.b16 %v3156, %v3122
        %v3170 = vshrl.u32 %v3122, 16
        %v3171 = vshrl.u32 %v3156, 16
        %v3172 = vpack.i.b16 %v3171, %v3170
        %v3176 = vpack.i.b16 %v3155, %v3121
        %v3178 = vshrl.u32 %v3121, 16
        %v3179 = vshrl.u32 %v3155, 16
        %v3180 = vpack.i.b16 %v3179, %v3178
        %v3184 = vpack.i.b16 %v3157, %v3123
        %v3186 = vshrl.u32 %v3123, 16
        %v3187 = vshrl.u32 %v3157, 16
        %v3188 = vpack.i.b16 %v3187, %v3186
        %v3190 = vcombine.low %v3160, %v3176
        %v3192 = vunpack.c.l.s4 1983009808
        %v3193 = vunpack.c.0.s8 %v3192
        %v3194 = vlaneseq
        %v3195 = vshrl.u32 %v3194, 7
        %v3196 = vsub.s32 %v3193, %v3195
        %v3197 = vrot.slane %v3190, %v3196
        %v3198 = vcombine.low %v3168, %v3184
        %v3200 = vunpack.c.l.s4 1983009808
        %v3201 = vunpack.c.0.s8 %v3200
        %v3202 = vlaneseq
        %v3203 = vshrl.u32 %v3202, 7
        %v3204 = vsub.s32 %v3201, %v3203
        %v3205 = vrot.slane %v3198, %v3204
        %v3206 = vcombine.low %v3197, %v3205
        %v3208 = vunpack.c.l.s4 1934713408
        %v3209 = vunpack.c.0.s8 %v3208
        %v3210 = vlaneseq
        %v3211 = vshrl.u32 %v3210, 7
        %v3212 = vsub.s32 %v3209, %v3211
        %v3213 = vrot.slane %v3206, %v3212
        %v3214 = vcombine.high %v3213, 0
        %v3215 = vcombine.low %v3164, %v3180
        %v3217 = vunpack.c.l.s4 1983009808
        %v3218 = vunpack.c.0.s8 %v3217
        %v3219 = vlaneseq
        %v3220 = vshrl.u32 %v3219, 7
        %v3221 = vsub.s32 %v3218, %v3220
        %v3222 = vrot.slane %v3215, %v3221
        %v3223 = vcombine.low %v3172, %v3188
        %v3225 = vunpack.c.l.s4 1983009808
        %v3226 = vunpack.c.0.s8 %v3225
        %v3227 = vlaneseq
        %v3228 = vshrl.u32 %v3227, 7
        %v3229 = vsub.s32 %v3226, %v3228
        %v3230 = vrot.slane %v3223, %v3229
        %v3231 = vcombine.low %v3222, %v3230
        %v3233 = vunpack.c.l.s4 1934713408
        %v3234 = vunpack.c.0.s8 %v3233
        %v3235 = vlaneseq
        %v3236 = vshrl.u32 %v3235, 7
        %v3237 = vsub.s32 %v3234, %v3236
        %v3238 = vrot.slane %v3231, %v3237
        %v3239 = vcombine.high %v3238, 0
        %v3242 = vpack.i.b16 %v3238, %v3213
        %v3243 = vshrl.u32 %v3213, 16
        %v3244 = vshrl.u32 %v3238, 16
        %v3245 = vpack.i.b16 %v3244, %v3243
        %v3248 = vpack.i.b16 %v3239, %v3214
        %v3249 = vshrl.u32 %v3214, 16
        %v3250 = vshrl.u32 %v3239, 16
        %v3251 = vpack.i.b16 %v3250, %v3249
        %3252 = vrot.lane.b32.xlu0 %v3245, 8
        %v3253 = vpop.permute.xlu0 %3252
        %3254 = vrot.lane.b32.xlu0 %v3248, 16
        %v3255 = vpop.permute.xlu0 %3254
        %3256 = vrot.lane.b32.xlu0 %v3251, 24
        %v3257 = vpop.permute.xlu0 %3256
        %v3260 = vsel %vm2662, %v3242, %v3253
        %vm3261 = vcmask 130048
        %v3263 = vsel %vm3261, %v3260, %v3255
        %vm3264 = vcmask 195584
        %v3266 = vsel %vm3264, %v3263, %v3257
        %v3268 = vlaneseq
        %v3269 = vshrl.u32 %v3268, 7
        %v3270 = vsub.s32 0, %v3269
        %v3271 = vrot.slane %v2427, %v3270
        %v3277 = vunpack.c.l.b16 %v2423
        %v3278 = vunpack.c.l.b16 %v2424
        %v3279 = vunpack.c.l.b16 %v2425
        %v3280 = vunpack.c.l.b16 %v2426
        %v3281 = vpack.c.b16 %v3278, %v3277
        %v3282 = vpack.c.b16 %v3280, %v3279
        %v3285 = vsel %vm2449, %v3266, 0
        %3287 = vmatprep.subr.bf16.mxu0 0
        %3288 = vmatpush1.bf16.msra.mxu0 %v3281
        %3289 = vmatprep.subr.bf16.mxu0 0
        %3290 = vmatpush1.bf16.msra.mxu0 %v3282
        %3291 = vmatprep.subr.bf16.mxu0 0
        %3292 = vmatpush1.bf16.msra.mxu0 0
        %3293 = vmatprep.subr.bf16.mxu0 0
        %3294 = vmatpush1.bf16.msra.mxu0 0
        %3295 = vmatprep.subr.bf16.mxu0 0
        %3296 = vmatpush1.bf16.msra.mxu0 0
        %3297 = vmatprep.subr.bf16.mxu0 0
        %3298 = vmatpush1.bf16.msra.mxu0 0
        %3299 = vmatprep.subr.bf16.mxu0 0
        %3300 = vmatpush1.bf16.msra.mxu0 0
        %3301 = vmatprep.subr.bf16.mxu0 0
        %3302 = vmatpush1.bf16.msra.mxu0 0
        %3303 = vmatprep.subr.bf16.mxu0 0
        %3304 = vmatpush1.bf16.msra.mxu0 0
        %3305 = vmatprep.subr.bf16.mxu0 0
        %3306 = vmatpush1.bf16.msra.mxu0 0
        %3307 = vmatprep.subr.bf16.mxu0 0
        %3308 = vmatpush1.bf16.msra.mxu0 0
        %3309 = vmatprep.subr.bf16.mxu0 0
        %3310 = vmatpush1.bf16.msra.mxu0 0
        %3311 = vmatprep.subr.bf16.mxu0 0
        %3312 = vmatpush1.bf16.msra.mxu0 0
        %3313 = vmatprep.subr.bf16.mxu0 0
        %3314 = vmatpush1.bf16.msra.mxu0 0
        %3315 = vmatprep.subr.bf16.mxu0 0
        %3316 = vmatpush1.bf16.msra.mxu0 0
        %3317 = vmatprep.subr.bf16.mxu0 0
        %3318 = vmatpush1.bf16.msra.mxu0 0
        %3319 = vmatprep.mubr.bf16.mxu0 0
        %3320 = vmatmul.mubr.bf16.gmra.mrb[0].mxu0 %v3285
        %v3321 = vpop.f32.mrb[0].mxu0
        %v3322 = vadd.f32 %v3271, %v3321
        %v3323 = vpop.f32.mrb[0].mxu0
        %v3324 = vpop.f32.mrb[0].mxu0
        %v3325 = vpop.f32.mrb[0].mxu0
        %3326 = vdwg.mxu0
        %v3327 = vadd.f32 %v2408, %v3322
        %v3328 = vsel %vm2449, %v3327, 0.0
        %3329 = vadd.xlane.f32.xlu0 %v3328
        %v3330 = vpop.xlane.xlu0 %3329
        %v3331 = vrcp.pop 32.0
        %v3332 = vmul.f32 %v3330, %v3331
        %v3333 = vsub.f32 %v3327, %v3332
        %v3334 = vmul.f32 %v3333, %v3333
        %v3335 = vsel %vm2449, %v3334, 0.0
        %3336 = vadd.xlane.f32.xlu0 %v3335
        %v3337 = vpop.xlane.xlu0 %3336
        %v3338 = vmul.f32 %v3337, %v3331
        %v3339 = vadd.f32 %v3338, 1e-05
        %v3340 = vrsqrt.pop %v3339
        %v3341 = vmul.f32 %v3333, %v3340
        %v3343 = vlaneseq
        %v3344 = vshrl.u32 %v3343, 7
        %v3345 = vsub.s32 0, %v3344
        %v3346 = vrot.slane %v2428, %v3345
        %v3348 = vmul.f32 %v3341, %v3346
        %v3350 = vlaneseq
        %v3351 = vshrl.u32 %v3350, 7
        %v3352 = vsub.s32 0, %v3351
        %v3353 = vrot.slane %v2429, %v3352
        %v3355 = vadd.f32 %v3348, %v3353
        %v3356 = vld [vmem:[#allocation4] sm:$0xff]
        %v3357 = vld [vmem:[#allocation4 + $0x8] sm:$0xff]
        %v3358 = vld [vmem:[#allocation4 + $0x10] sm:$0xff]
        %v3359 = vld [vmem:[#allocation4 + $0x18] sm:$0xff]
        %v3360 = vld [vmem:[#allocation5] sm:$0xff]
        %v3361 = vld [vmem:[#allocation5 + $0x8] sm:$0xff]
        %v3362 = vld [vmem:[#allocation5 + $0x10] sm:$0xff]
        %v3363 = vld [vmem:[#allocation5 + $0x18] sm:$0xff]
        %v3364 = vld [vmem:[%s1066] sm:$0x3]
        %v3365 = vld [vmem:[%s31] sm:$0xf]
        %v3366 = vld [vmem:[%s31 + $0x4] sm:$0xf]
        %v3367 = vld [vmem:[%s31 + $0x8] sm:$0xf]
        %v3368 = vld [vmem:[%s31 + $0xc] sm:$0xf]
        %v3369 = vld [vmem:[#allocation23] sm:$0x1]
        %v3370 = vld [vmem:[#allocation26] sm:$0xf]
        %v3371 = vld [vmem:[#allocation26 + $0x4] sm:$0xf]
        %v3372 = vld [vmem:[#allocation26 + $0x8] sm:$0xf]
        %v3373 = vld [vmem:[#allocation26 + $0xc] sm:$0xf]
        %v3374 = vld [vmem:[%s45] sm:$0x1]
        %v3375 = vld [vmem:[%s47] sm:$0x1]
        %v3376 = vld [vmem:[%s49] sm:$0x1]
        %v3377 = vpack.c.bf16 %v3355, %v3355
        %v3379 = vlaneseq
        %v3380 = vshrl.u32 %v3379, 7
        %v3381 = vsub.s32 0, %v3380
        %v3382 = vrot.slane %v3369, %v3381
        %v3388 = vunpack.c.l.b16 %v3365
        %v3389 = vunpack.c.l.b16 %v3366
        %v3390 = vunpack.c.l.b16 %v3367
        %v3391 = vunpack.c.l.b16 %v3368
        %v3392 = vpack.c.b16 %v3389, %v3388
        %v3393 = vpack.c.b16 %v3391, %v3390
        %v3397 = vsel %vm2449, %v3377, 0
        %3399 = vmatprep.subr.bf16.mxu0 0
        %3400 = vmatpush1.bf16.msra.mxu0 %v3392
        %3401 = vmatprep.subr.bf16.mxu0 0
        %3402 = vmatpush1.bf16.msra.mxu0 %v3393
        %3403 = vmatprep.subr.bf16.mxu0 0
        %3404 = vmatpush1.bf16.msra.mxu0 0
        %3405 = vmatprep.subr.bf16.mxu0 0
        %3406 = vmatpush1.bf16.msra.mxu0 0
        %3407 = vmatprep.subr.bf16.mxu0 0
        %3408 = vmatpush1.bf16.msra.mxu0 0
        %3409 = vmatprep.subr.bf16.mxu0 0
        %3410 = vmatpush1.bf16.msra.mxu0 0
        %3411 = vmatprep.subr.bf16.mxu0 0
        %3412 = vmatpush1.bf16.msra.mxu0 0
        %3413 = vmatprep.subr.bf16.mxu0 0
        %3414 = vmatpush1.bf16.msra.mxu0 0
        %3415 = vmatprep.subr.bf16.mxu0 0
        %3416 = vmatpush1.bf16.msra.mxu0 0
        %3417 = vmatprep.subr.bf16.mxu0 0
        %3418 = vmatpush1.bf16.msra.mxu0 0
        %3419 = vmatprep.subr.bf16.mxu0 0
        %3420 = vmatpush1.bf16.msra.mxu0 0
        %3421 = vmatprep.subr.bf16.mxu0 0
        %3422 = vmatpush1.bf16.msra.mxu0 0
        %3423 = vmatprep.subr.bf16.mxu0 0
        %3424 = vmatpush1.bf16.msra.mxu0 0
        %3425 = vmatprep.subr.bf16.mxu0 0
        %3426 = vmatpush1.bf16.msra.mxu0 0
        %3427 = vmatprep.subr.bf16.mxu0 0
        %3428 = vmatpush1.bf16.msra.mxu0 0
        %3429 = vmatprep.subr.bf16.mxu0 0
        %3430 = vmatpush1.bf16.msra.mxu0 0
        %3431 = vmatprep.mubr.bf16.mxu0 0
        %3432 = vmatmul.mubr.bf16.gmra.mrb[0].mxu0 %v3397
        %v3433 = vpop.f32.mrb[0].mxu0
        %v3434 = vadd.f32 %v3382, %v3433
        %v3435 = vpop.f32.mrb[0].mxu0
        %v3436 = vpop.f32.mrb[0].mxu0
        %v3437 = vpop.f32.mrb[0].mxu0
        %3438 = vdwg.mxu0
        %v3439 = vpack.c.bf16 %v3434, %v3434
        %3441 = vrot.lane.b32.xlu0 %v3439, 120
        %v3442 = vpop.permute.xlu0 %3441
        %3443 = vrot.lane.b32.xlu0 %v3439, 112
        %v3444 = vpop.permute.xlu0 %3443
        %3445 = vrot.lane.b32.xlu0 %v3439, 104
        %v3446 = vpop.permute.xlu0 %3445
        %v3448 = vunpack.c.l.s4 1983009808
        %v3449 = vunpack.c.0.s8 %v3448
        %v3450 = vlaneseq
        %v3451 = vshrl.u32 %v3450, 7
        %v3452 = vsub.s32 %v3449, %v3451
        %v3453 = vrot.slane %v3439, %v3452
        %v3456 = vunpack.c.l.s4 1983009808
        %v3457 = vunpack.c.0.s8 %v3456
        %v3458 = vlaneseq
        %v3459 = vshrl.u32 %v3458, 7
        %v3460 = vsub.s32 %v3457, %v3459
        %v3461 = vrot.slane %v3444, %v3460
        %v3462 = vcombine.low %v3453, %v3461
        %v3463 = vcombine.high %v3453, %v3461
        %v3465 = vunpack.c.l.s4 1934713408
        %v3466 = vunpack.c.0.s8 %v3465
        %v3467 = vlaneseq
        %v3468 = vshrl.u32 %v3467, 7
        %v3469 = vsub.s32 %v3466, %v3468
        %v3470 = vrot.slane %v3462, %v3469
        %v3472 = vunpack.c.l.s4 1934713408
        %v3473 = vunpack.c.0.s8 %v3472
        %v3474 = vlaneseq
        %v3475 = vshrl.u32 %v3474, 7
        %v3476 = vsub.s32 %v3473, %v3475
        %v3477 = vrot.slane %v3463, %v3476
        %v3478 = vcombine.high %v3470, 0
        %v3479 = vcombine.high %v3477, 0
        %v3482 = vunpack.c.l.s4 1983009808
        %v3483 = vunpack.c.0.s8 %v3482
        %v3484 = vlaneseq
        %v3485 = vshrl.u32 %v3484, 7
        %v3486 = vsub.s32 %v3483, %v3485
        %v3487 = vrot.slane %v3442, %v3486
        %v3490 = vunpack.c.l.s4 1983009808
        %v3491 = vunpack.c.0.s8 %v3490
        %v3492 = vlaneseq
        %v3493 = vshrl.u32 %v3492, 7
        %v3494 = vsub.s32 %v3491, %v3493
        %v3495 = vrot.slane %v3446, %v3494
        %v3496 = vcombine.low %v3487, %v3495
        %v3497 = vcombine.high %v3487, %v3495
        %v3499 = vunpack.c.l.s4 1934713408
        %v3500 = vunpack.c.0.s8 %v3499
        %v3501 = vlaneseq
        %v3502 = vshrl.u32 %v3501, 7
        %v3503 = vsub.s32 %v3500, %v3502
        %v3504 = vrot.slane %v3496, %v3503
        %v3506 = vunpack.c.l.s4 1934713408
        %v3507 = vunpack.c.0.s8 %v3506
        %v3508 = vlaneseq
        %v3509 = vshrl.u32 %v3508, 7
        %v3510 = vsub.s32 %v3507, %v3509
        %v3511 = vrot.slane %v3497, %v3510
        %v3512 = vcombine.high %v3504, 0
        %v3513 = vcombine.high %v3511, 0
        %v3516 = vpack.i.b16 %v3504, %v3470
        %v3518 = vshrl.u32 %v3470, 16
        %v3519 = vshrl.u32 %v3504, 16
        %v3520 = vpack.i.b16 %v3519, %v3518
        %v3524 = vpack.i.b16 %v3512, %v3478
        %v3526 = vshrl.u32 %v3478, 16
        %v3527 = vshrl.u32 %v3512, 16
        %v3528 = vpack.i.b16 %v3527, %v3526
        %v3532 = vpack.i.b16 %v3511, %v3477
        %v3534 = vshrl.u32 %v3477, 16
        %v3535 = vshrl.u32 %v3511, 16
        %v3536 = vpack.i.b16 %v3535, %v3534
        %v3540 = vpack.i.b16 %v3513, %v3479
        %v3542 = vshrl.u32 %v3479, 16
        %v3543 = vshrl.u32 %v3513, 16
        %v3544 = vpack.i.b16 %v3543, %v3542
        %v3546 = vcombine.low %v3516, %v3532
        %v3548 = vunpack.c.l.s4 1983009808
        %v3549 = vunpack.c.0.s8 %v3548
        %v3550 = vlaneseq
        %v3551 = vshrl.u32 %v3550, 7
        %v3552 = vsub.s32 %v3549, %v3551
        %v3553 = vrot.slane %v3546, %v3552
        %v3554 = vcombine.low %v3524, %v3540
        %v3556 = vunpack.c.l.s4 1983009808
        %v3557 = vunpack.c.0.s8 %v3556
        %v3558 = vlaneseq
        %v3559 = vshrl.u32 %v3558, 7
        %v3560 = vsub.s32 %v3557, %v3559
        %v3561 = vrot.slane %v3554, %v3560
        %v3562 = vcombine.low %v3553, %v3561
        %v3564 = vunpack.c.l.s4 1934713408
        %v3565 = vunpack.c.0.s8 %v3564
        %v3566 = vlaneseq
        %v3567 = vshrl.u32 %v3566, 7
        %v3568 = vsub.s32 %v3565, %v3567
        %v3569 = vrot.slane %v3562, %v3568
        %v3570 = vcombine.high %v3569, 0
        %v3571 = vcombine.low %v3520, %v3536
        %v3573 = vunpack.c.l.s4 1983009808
        %v3574 = vunpack.c.0.s8 %v3573
        %v3575 = vlaneseq
        %v3576 = vshrl.u32 %v3575, 7
        %v3577 = vsub.s32 %v3574, %v3576
        %v3578 = vrot.slane %v3571, %v3577
        %v3579 = vcombine.low %v3528, %v3544
        %v3581 = vunpack.c.l.s4 1983009808
        %v3582 = vunpack.c.0.s8 %v3581
        %v3583 = vlaneseq
        %v3584 = vshrl.u32 %v3583, 7
        %v3585 = vsub.s32 %v3582, %v3584
        %v3586 = vrot.slane %v3579, %v3585
        %v3587 = vcombine.low %v3578, %v3586
        %v3589 = vunpack.c.l.s4 1934713408
        %v3590 = vunpack.c.0.s8 %v3589
        %v3591 = vlaneseq
        %v3592 = vshrl.u32 %v3591, 7
        %v3593 = vsub.s32 %v3590, %v3592
        %v3594 = vrot.slane %v3587, %v3593
        %v3595 = vcombine.high %v3594, 0
        %v3598 = vpack.i.b16 %v3594, %v3569
        %v3599 = vshrl.u32 %v3569, 16
        %v3600 = vshrl.u32 %v3594, 16
        %v3601 = vpack.i.b16 %v3600, %v3599
        %v3604 = vpack.i.b16 %v3595, %v3570
        %v3605 = vshrl.u32 %v3570, 16
        %v3606 = vshrl.u32 %v3595, 16
        %v3607 = vpack.i.b16 %v3606, %v3605
        %v3609 = vsel %vm2662, %v3598, 0
        %v3612 = vsel %vm2662, %v3356, 0
        %3614 = vmatprep.subr.bf16.mxu0 0
        %3615 = vmatpush1.bf16.xpose.msra.mxu0 %v3612
        %3616 = vmatprep.subr.bf16.mxu0 0
        %3617 = vmatpush1.bf16.xpose.msra.mxu0 0
        %3618 = vmatprep.subr.bf16.mxu0 0
        %3619 = vmatpush1.bf16.xpose.msra.mxu0 0
        %3620 = vmatprep.subr.bf16.mxu0 0
        %3621 = vmatpush1.bf16.xpose.msra.mxu0 0
        %3622 = vmatprep.subr.bf16.mxu0 0
        %3623 = vmatpush1.bf16.xpose.msra.mxu0 0
        %3624 = vmatprep.subr.bf16.mxu0 0
        %3625 = vmatpush1.bf16.xpose.msra.mxu0 0
        %3626 = vmatprep.subr.bf16.mxu0 0
        %3627 = vmatpush1.bf16.xpose.msra.mxu0 0
        %3628 = vmatprep.subr.bf16.mxu0 0
        %3629 = vmatpush1.bf16.xpose.msra.mxu0 0
        %3630 = vmatprep.subr.bf16.mxu0 0
        %3631 = vmatpush1.bf16.xpose.msra.mxu0 0
        %3632 = vmatprep.subr.bf16.mxu0 0
        %3633 = vmatpush1.bf16.xpose.msra.mxu0 0
        %3634 = vmatprep.subr.bf16.mxu0 0
        %3635 = vmatpush1.bf16.xpose.msra.mxu0 0
        %3636 = vmatprep.subr.bf16.mxu0 0
        %3637 = vmatpush1.bf16.xpose.msra.mxu0 0
        %3638 = vmatprep.subr.bf16.mxu0 0
        %3639 = vmatpush1.bf16.xpose.msra.mxu0 0
        %3640 = vmatprep.subr.bf16.mxu0 0
        %3641 = vmatpush1.bf16.xpose.msra.mxu0 0
        %3642 = vmatprep.subr.bf16.mxu0 0
        %3643 = vmatpush1.bf16.xpose.msra.mxu0 0
        %3644 = vmatprep.subr.bf16.mxu0 0
        %3645 = vmatpush1.bf16.xpose.msra.mxu0 0
        %3646 = vmatprep.mubr.bf16.mxu0 0
        %3647 = vmatmul.mubr.bf16.gmra.mrb[0].mxu0 %v3609
        %v3648 = vpop.f32.mrb[0].mxu0
        %v3649 = vadd.f32 0.0, %v3648
        %v3650 = vpop.f32.mrb[0].mxu0
        %v3651 = vpop.f32.mrb[0].mxu0
        %v3652 = vpop.f32.mrb[0].mxu0
        %3653 = vdwg.mxu0
        %v3655 = vsel %vm2662, %v3601, 0
        %v3658 = vsel %vm2662, %v3357, 0
        %3660 = vmatprep.subr.bf16.mxu0 0
        %3661 = vmatpush1.bf16.xpose.msra.mxu0 %v3658
        %3662 = vmatprep.subr.bf16.mxu0 0
        %3663 = vmatpush1.bf16.xpose.msra.mxu0 0
        %3664 = vmatprep.subr.bf16.mxu0 0
        %3665 = vmatpush1.bf16.xpose.msra.mxu0 0
        %3666 = vmatprep.subr.bf16.mxu0 0
        %3667 = vmatpush1.bf16.xpose.msra.mxu0 0
        %3668 = vmatprep.subr.bf16.mxu0 0
        %3669 = vmatpush1.bf16.xpose.msra.mxu0 0
        %3670 = vmatprep.subr.bf16.mxu0 0
        %3671 = vmatpush1.bf16.xpose.msra.mxu0 0
        %3672 = vmatprep.subr.bf16.mxu0 0
        %3673 = vmatpush1.bf16.xpose.msra.mxu0 0
        %3674 = vmatprep.subr.bf16.mxu0 0
        %3675 = vmatpush1.bf16.xpose.msra.mxu0 0
        %3676 = vmatprep.subr.bf16.mxu0 0
        %3677 = vmatpush1.bf16.xpose.msra.mxu0 0
        %3678 = vmatprep.subr.bf16.mxu0 0
        %3679 = vmatpush1.bf16.xpose.msra.mxu0 0
        %3680 = vmatprep.subr.bf16.mxu0 0
        %3681 = vmatpush1.bf16.xpose.msra.mxu0 0
        %3682 = vmatprep.subr.bf16.mxu0 0
        %3683 = vmatpush1.bf16.xpose.msra.mxu0 0
        %3684 = vmatprep.subr.bf16.mxu0 0
        %3685 = vmatpush1.bf16.xpose.msra.mxu0 0
        %3686 = vmatprep.subr.bf16.mxu0 0
        %3687 = vmatpush1.bf16.xpose.msra.mxu0 0
        %3688 = vmatprep.subr.bf16.mxu0 0
        %3689 = vmatpush1.bf16.xpose.msra.mxu0 0
        %3690 = vmatprep.subr.bf16.mxu0 0
        %3691 = vmatpush1.bf16.xpose.msra.mxu0 0
        %3692 = vmatprep.mubr.bf16.mxu0 0
        %3693 = vmatmul.mubr.bf16.gmra.mrb[0].mxu0 %v3655
        %v3694 = vpop.f32.mrb[0].mxu0
        %v3695 = vadd.f32 0.0, %v3694
        %v3696 = vpop.f32.mrb[0].mxu0
        %v3697 = vpop.f32.mrb[0].mxu0
        %v3698 = vpop.f32.mrb[0].mxu0
        %3699 = vdwg.mxu0
        %v3701 = vsel %vm2662, %v3604, 0
        %v3704 = vsel %vm2662, %v3358, 0
        %3706 = vmatprep.subr.bf16.mxu0 0
        %3707 = vmatpush1.bf16.xpose.msra.mxu0 %v3704
        %3708 = vmatprep.subr.bf16.mxu0 0
        %3709 = vmatpush1.bf16.xpose.msra.mxu0 0
        %3710 = vmatprep.subr.bf16.mxu0 0
        %3711 = vmatpush1.bf16.xpose.msra.mxu0 0
        %3712 = vmatprep.subr.bf16.mxu0 0
        %3713 = vmatpush1.bf16.xpose.msra.mxu0 0
        %3714 = vmatprep.subr.bf16.mxu0 0
        %3715 = vmatpush1.bf16.xpose.msra.mxu0 0
        %3716 = vmatprep.subr.bf16.mxu0 0
        %3717 = vmatpush1.bf16.xpose.msra.mxu0 0
        %3718 = vmatprep.subr.bf16.mxu0 0
        %3719 = vmatpush1.bf16.xpose.msra.mxu0 0
        %3720 = vmatprep.subr.bf16.mxu0 0
        %3721 = vmatpush1.bf16.xpose.msra.mxu0 0
        %3722 = vmatprep.subr.bf16.mxu0 0
        %3723 = vmatpush1.bf16.xpose.msra.mxu0 0
        %3724 = vmatprep.subr.bf16.mxu0 0
        %3725 = vmatpush1.bf16.xpose.msra.mxu0 0
        %3726 = vmatprep.subr.bf16.mxu0 0
        %3727 = vmatpush1.bf16.xpose.msra.mxu0 0
        %3728 = vmatprep.subr.bf16.mxu0 0
        %3729 = vmatpush1.bf16.xpose.msra.mxu0 0
        %3730 = vmatprep.subr.bf16.mxu0 0
        %3731 = vmatpush1.bf16.xpose.msra.mxu0 0
        %3732 = vmatprep.subr.bf16.mxu0 0
        %3733 = vmatpush1.bf16.xpose.msra.mxu0 0
        %3734 = vmatprep.subr.bf16.mxu0 0
        %3735 = vmatpush1.bf16.xpose.msra.mxu0 0
        %3736 = vmatprep.subr.bf16.mxu0 0
        %3737 = vmatpush1.bf16.xpose.msra.mxu0 0
        %3738 = vmatprep.mubr.bf16.mxu0 0
        %3739 = vmatmul.mubr.bf16.gmra.mrb[0].mxu0 %v3701
        %v3740 = vpop.f32.mrb[0].mxu0
        %v3741 = vadd.f32 0.0, %v3740
        %v3742 = vpop.f32.mrb[0].mxu0
        %v3743 = vpop.f32.mrb[0].mxu0
        %v3744 = vpop.f32.mrb[0].mxu0
        %3745 = vdwg.mxu0
        %v3747 = vsel %vm2662, %v3607, 0
        %v3750 = vsel %vm2662, %v3359, 0
        %3752 = vmatprep.subr.bf16.mxu0 0
        %3753 = vmatpush1.bf16.xpose.msra.mxu0 %v3750
        %3754 = vmatprep.subr.bf16.mxu0 0
        %3755 = vmatpush1.bf16.xpose.msra.mxu0 0
        %3756 = vmatprep.subr.bf16.mxu0 0
        %3757 = vmatpush1.bf16.xpose.msra.mxu0 0
        %3758 = vmatprep.subr.bf16.mxu0 0
        %3759 = vmatpush1.bf16.xpose.msra.mxu0 0
        %3760 = vmatprep.subr.bf16.mxu0 0
        %3761 = vmatpush1.bf16.xpose.msra.mxu0 0
        %3762 = vmatprep.subr.bf16.mxu0 0
        %3763 = vmatpush1.bf16.xpose.msra.mxu0 0
        %3764 = vmatprep.subr.bf16.mxu0 0
        %3765 = vmatpush1.bf16.xpose.msra.mxu0 0
        %3766 = vmatprep.subr.bf16.mxu0 0
        %3767 = vmatpush1.bf16.xpose.msra.mxu0 0
        %3768 = vmatprep.subr.bf16.mxu0 0
        %3769 = vmatpush1.bf16.xpose.msra.mxu0 0
        %3770 = vmatprep.subr.bf16.mxu0 0
        %3771 = vmatpush1.bf16.xpose.msra.mxu0 0
        %3772 = vmatprep.subr.bf16.mxu0 0
        %3773 = vmatpush1.bf16.xpose.msra.mxu0 0
        %3774 = vmatprep.subr.bf16.mxu0 0
        %3775 = vmatpush1.bf16.xpose.msra.mxu0 0
        %3776 = vmatprep.subr.bf16.mxu0 0
        %3777 = vmatpush1.bf16.xpose.msra.mxu0 0
        %3778 = vmatprep.subr.bf16.mxu0 0
        %3779 = vmatpush1.bf16.xpose.msra.mxu0 0
        %3780 = vmatprep.subr.bf16.mxu0 0
        %3781 = vmatpush1.bf16.xpose.msra.mxu0 0
        %3782 = vmatprep.subr.bf16.mxu0 0
        %3783 = vmatpush1.bf16.xpose.msra.mxu0 0
        %3784 = vmatprep.mubr.bf16.mxu0 0
        %3785 = vmatmul.mubr.bf16.gmra.mrb[0].mxu0 %v3747
        %v3786 = vpop.f32.mrb[0].mxu0
        %v3787 = vadd.f32 0.0, %v3786
        %v3788 = vpop.f32.mrb[0].mxu0
        %v3789 = vpop.f32.mrb[0].mxu0
        %v3790 = vpop.f32.mrb[0].mxu0
        %3791 = vdwg.mxu0
        %vm3792 = vnez %v3364
        %v3793 = vsel %vm3792, 16843009, 0
        %v3794 = vunpack.c.0.s8 %v3793
        %vm3795 = vcmp.ne.s32.totalorder %v3794, 0
        %v3796 = vsel %vm3795, 1, 0
        %vm3797 = vcmp.eq.s32.totalorder %v3796, 1
        %v3798 = vsel %vm3797, -1e+30, %v3649
        %v3799 = vsel %vm3797, -1e+30, %v3695
        %v3800 = vsel %vm3797, -1e+30, %v3741
        %v3801 = vsel %vm3797, -1e+30, %v3787
        %v3802 = vsel %vm3261, %v3798, -inf
        %3803 = vmax.xlane.f32.xlu0 %v3802
        %v3804 = vpop.xlane.xlu0 %3803
        %v3805 = vsel %vm3261, %v3799, -inf
        %3806 = vmax.xlane.f32.xlu0 %v3805
        %v3807 = vpop.xlane.xlu0 %3806
        %v3808 = vsel %vm3261, %v3800, -inf
        %3809 = vmax.xlane.f32.xlu0 %v3808
        %v3810 = vpop.xlane.xlu0 %3809
        %v3811 = vsel %vm3261, %v3801, -inf
        %3812 = vmax.xlane.f32.xlu0 %v3811
        %v3813 = vpop.xlane.xlu0 %3812
        %v3814 = vsub.f32 %v3798, %v3804
        %v3815 = vsub.f32 %v3799, %v3807
        %v3816 = vsub.f32 %v3800, %v3810
        %v3817 = vsub.f32 %v3801, %v3813
        %v3818 = vmul.f32 %v3814, 1.442695
        %v3819 = vpow.pop %v3818
        %v3820 = vmul.f32 %v3815, 1.442695
        %v3821 = vpow.pop %v3820
        %v3822 = vmul.f32 %v3816, 1.442695
        %v3823 = vpow.pop %v3822
        %v3824 = vmul.f32 %v3817, 1.442695
        %v3825 = vpow.pop %v3824
        %v3826 = vsel %vm3261, %v3819, 0.0
        %3827 = vadd.xlane.f32.xlu0 %v3826
        %v3828 = vpop.xlane.xlu0 %3827
        %v3829 = vsel %vm3261, %v3821, 0.0
        %3830 = vadd.xlane.f32.xlu0 %v3829
        %v3831 = vpop.xlane.xlu0 %3830
        %v3832 = vsel %vm3261, %v3823, 0.0
        %3833 = vadd.xlane.f32.xlu0 %v3832
        %v3834 = vpop.xlane.xlu0 %3833
        %v3835 = vsel %vm3261, %v3825, 0.0
        %3836 = vadd.xlane.f32.xlu0 %v3835
        %v3837 = vpop.xlane.xlu0 %3836
        %v3838 = vrcp.pop %v3828
        %v3839 = vrcp.pop %v3831
        %v3840 = vrcp.pop %v3834
        %v3841 = vrcp.pop %v3837
        %v3842 = vmul.f32 %v3819, %v3838
        %v3843 = vmul.f32 %v3821, %v3839
        %v3844 = vmul.f32 %v3823, %v3840
        %v3845 = vmul.f32 %v3825, %v3841
        %v3846 = vpack.c.bf16 %v3842, %v3842
        %v3847 = vpack.c.bf16 %v3843, %v3843
        %v3848 = vpack.c.bf16 %v3844, %v3844
        %v3849 = vpack.c.bf16 %v3845, %v3845
        %v3851 = vsel %vm3261, %v3846, 0
        %3853 = vmatprep.subr.bf16.mxu0 0
        %3854 = vmatpush1.bf16.msra.mxu0 %v3360
        %3855 = vmatprep.subr.bf16.mxu0 0
        %3856 = vmatpush1.bf16.msra.mxu0 0
        %3857 = vmatprep.subr.bf16.mxu0 0
        %3858 = vmatpush1.bf16.msra.mxu0 0
        %3859 = vmatprep.subr.bf16.mxu0 0
        %3860 = vmatpush1.bf16.msra.mxu0 0
        %3861 = vmatprep.subr.bf16.mxu0 0
        %3862 = vmatpush1.bf16.msra.mxu0 0
        %3863 = vmatprep.subr.bf16.mxu0 0
        %3864 = vmatpush1.bf16.msra.mxu0 0
        %3865 = vmatprep.subr.bf16.mxu0 0
        %3866 = vmatpush1.bf16.msra.mxu0 0
        %3867 = vmatprep.subr.bf16.mxu0 0
        %3868 = vmatpush1.bf16.msra.mxu0 0
        %3869 = vmatprep.subr.bf16.mxu0 0
        %3870 = vmatpush1.bf16.msra.mxu0 0
        %3871 = vmatprep.subr.bf16.mxu0 0
        %3872 = vmatpush1.bf16.msra.mxu0 0
        %3873 = vmatprep.subr.bf16.mxu0 0
        %3874 = vmatpush1.bf16.msra.mxu0 0
        %3875 = vmatprep.subr.bf16.mxu0 0
        %3876 = vmatpush1.bf16.msra.mxu0 0
        %3877 = vmatprep.subr.bf16.mxu0 0
        %3878 = vmatpush1.bf16.msra.mxu0 0
        %3879 = vmatprep.subr.bf16.mxu0 0
        %3880 = vmatpush1.bf16.msra.mxu0 0
        %3881 = vmatprep.subr.bf16.mxu0 0
        %3882 = vmatpush1.bf16.msra.mxu0 0
        %3883 = vmatprep.subr.bf16.mxu0 0
        %3884 = vmatpush1.bf16.msra.mxu0 0
        %3885 = vmatprep.mubr.bf16.mxu0 0
        %3886 = vmatmul.mubr.bf16.gmra.mrb[0].mxu0 %v3851
        %v3887 = vpop.f32.mrb[0].mxu0
        %v3888 = vadd.f32 0.0, %v3887
        %v3889 = vpop.f32.mrb[0].mxu0
        %v3890 = vpop.f32.mrb[0].mxu0
        %v3891 = vpop.f32.mrb[0].mxu0
        %3892 = vdwg.mxu0
        %v3894 = vsel %vm3261, %v3847, 0
        %3896 = vmatprep.subr.bf16.mxu0 0
        %3897 = vmatpush1.bf16.msra.mxu0 %v3361
        %3898 = vmatprep.subr.bf16.mxu0 0
        %3899 = vmatpush1.bf16.msra.mxu0 0
        %3900 = vmatprep.subr.bf16.mxu0 0
        %3901 = vmatpush1.bf16.msra.mxu0 0
        %3902 = vmatprep.subr.bf16.mxu0 0
        %3903 = vmatpush1.bf16.msra.mxu0 0
        %3904 = vmatprep.subr.bf16.mxu0 0
        %3905 = vmatpush1.bf16.msra.mxu0 0
        %3906 = vmatprep.subr.bf16.mxu0 0
        %3907 = vmatpush1.bf16.msra.mxu0 0
        %3908 = vmatprep.subr.bf16.mxu0 0
        %3909 = vmatpush1.bf16.msra.mxu0 0
        %3910 = vmatprep.subr.bf16.mxu0 0
        %3911 = vmatpush1.bf16.msra.mxu0 0
        %3912 = vmatprep.subr.bf16.mxu0 0
        %3913 = vmatpush1.bf16.msra.mxu0 0
        %3914 = vmatprep.subr.bf16.mxu0 0
        %3915 = vmatpush1.bf16.msra.mxu0 0
        %3916 = vmatprep.subr.bf16.mxu0 0
        %3917 = vmatpush1.bf16.msra.mxu0 0
        %3918 = vmatprep.subr.bf16.mxu0 0
        %3919 = vmatpush1.bf16.msra.mxu0 0
        %3920 = vmatprep.subr.bf16.mxu0 0
        %3921 = vmatpush1.bf16.msra.mxu0 0
        %3922 = vmatprep.subr.bf16.mxu0 0
        %3923 = vmatpush1.bf16.msra.mxu0 0
        %3924 = vmatprep.subr.bf16.mxu0 0
        %3925 = vmatpush1.bf16.msra.mxu0 0
        %3926 = vmatprep.subr.bf16.mxu0 0
        %3927 = vmatpush1.bf16.msra.mxu0 0
        %3928 = vmatprep.mubr.bf16.mxu0 0
        %3929 = vmatmul.mubr.bf16.gmra.mrb[0].mxu0 %v3894
        %v3930 = vpop.f32.mrb[0].mxu0
        %v3931 = vadd.f32 0.0, %v3930
        %v3932 = vpop.f32.mrb[0].mxu0
        %v3933 = vpop.f32.mrb[0].mxu0
        %v3934 = vpop.f32.mrb[0].mxu0
        %3935 = vdwg.mxu0
        %v3937 = vsel %vm3261, %v3848, 0
        %3939 = vmatprep.subr.bf16.mxu0 0
        %3940 = vmatpush1.bf16.msra.mxu0 %v3362
        %3941 = vmatprep.subr.bf16.mxu0 0
        %3942 = vmatpush1.bf16.msra.mxu0 0
        %3943 = vmatprep.subr.bf16.mxu0 0
        %3944 = vmatpush1.bf16.msra.mxu0 0
        %3945 = vmatprep.subr.bf16.mxu0 0
        %3946 = vmatpush1.bf16.msra.mxu0 0
        %3947 = vmatprep.subr.bf16.mxu0 0
        %3948 = vmatpush1.bf16.msra.mxu0 0
        %3949 = vmatprep.subr.bf16.mxu0 0
        %3950 = vmatpush1.bf16.msra.mxu0 0
        %3951 = vmatprep.subr.bf16.mxu0 0
        %3952 = vmatpush1.bf16.msra.mxu0 0
        %3953 = vmatprep.subr.bf16.mxu0 0
        %3954 = vmatpush1.bf16.msra.mxu0 0
        %3955 = vmatprep.subr.bf16.mxu0 0
        %3956 = vmatpush1.bf16.msra.mxu0 0
        %3957 = vmatprep.subr.bf16.mxu0 0
        %3958 = vmatpush1.bf16.msra.mxu0 0
        %3959 = vmatprep.subr.bf16.mxu0 0
        %3960 = vmatpush1.bf16.msra.mxu0 0
        %3961 = vmatprep.subr.bf16.mxu0 0
        %3962 = vmatpush1.bf16.msra.mxu0 0
        %3963 = vmatprep.subr.bf16.mxu0 0
        %3964 = vmatpush1.bf16.msra.mxu0 0
        %3965 = vmatprep.subr.bf16.mxu0 0
        %3966 = vmatpush1.bf16.msra.mxu0 0
        %3967 = vmatprep.subr.bf16.mxu0 0
        %3968 = vmatpush1.bf16.msra.mxu0 0
        %3969 = vmatprep.subr.bf16.mxu0 0
        %3970 = vmatpush1.bf16.msra.mxu0 0
        %3971 = vmatprep.mubr.bf16.mxu0 0
        %3972 = vmatmul.mubr.bf16.gmra.mrb[0].mxu0 %v3937
        %v3973 = vpop.f32.mrb[0].mxu0
        %v3974 = vadd.f32 0.0, %v3973
        %v3975 = vpop.f32.mrb[0].mxu0
        %v3976 = vpop.f32.mrb[0].mxu0
        %v3977 = vpop.f32.mrb[0].mxu0
        %3978 = vdwg.mxu0
        %v3980 = vsel %vm3261, %v3849, 0
        %3982 = vmatprep.subr.bf16.mxu0 0
        %3983 = vmatpush1.bf16.msra.mxu0 %v3363
        %3984 = vmatprep.subr.bf16.mxu0 0
        %3985 = vmatpush1.bf16.msra.mxu0 0
        %3986 = vmatprep.subr.bf16.mxu0 0
        %3987 = vmatpush1.bf16.msra.mxu0 0
        %3988 = vmatprep.subr.bf16.mxu0 0
        %3989 = vmatpush1.bf16.msra.mxu0 0
        %3990 = vmatprep.subr.bf16.mxu0 0
        %3991 = vmatpush1.bf16.msra.mxu0 0
        %3992 = vmatprep.subr.bf16.mxu0 0
        %3993 = vmatpush1.bf16.msra.mxu0 0
        %3994 = vmatprep.subr.bf16.mxu0 0
        %3995 = vmatpush1.bf16.msra.mxu0 0
        %3996 = vmatprep.subr.bf16.mxu0 0
        %3997 = vmatpush1.bf16.msra.mxu0 0
        %3998 = vmatprep.subr.bf16.mxu0 0
        %3999 = vmatpush1.bf16.msra.mxu0 0
        %4000 = vmatprep.subr.bf16.mxu0 0
        %4001 = vmatpush1.bf16.msra.mxu0 0
        %4002 = vmatprep.subr.bf16.mxu0 0
        %4003 = vmatpush1.bf16.msra.mxu0 0
        %4004 = vmatprep.subr.bf16.mxu0 0
        %4005 = vmatpush1.bf16.msra.mxu0 0
        %4006 = vmatprep.subr.bf16.mxu0 0
        %4007 = vmatpush1.bf16.msra.mxu0 0
        %4008 = vmatprep.subr.bf16.mxu0 0
        %4009 = vmatpush1.bf16.msra.mxu0 0
        %4010 = vmatprep.subr.bf16.mxu0 0
        %4011 = vmatpush1.bf16.msra.mxu0 0
        %4012 = vmatprep.subr.bf16.mxu0 0
        %4013 = vmatpush1.bf16.msra.mxu0 0
        %4014 = vmatprep.mubr.bf16.mxu0 0
        %4015 = vmatmul.mubr.bf16.gmra.mrb[0].mxu0 %v3980
        %v4016 = vpop.f32.mrb[0].mxu0
        %v4017 = vadd.f32 0.0, %v4016
        %v4018 = vpop.f32.mrb[0].mxu0
        %v4019 = vpop.f32.mrb[0].mxu0
        %v4020 = vpop.f32.mrb[0].mxu0
        %4021 = vdwg.mxu0
        %v4022 = vpack.c.bf16 %v3888, %v3888
        %v4024 = vunpack.c.l.s4 1983009808
        %v4025 = vunpack.c.0.s8 %v4024
        %v4026 = vlaneseq
        %v4027 = vshrl.u32 %v4026, 7
        %v4028 = vsub.s32 %v4025, %v4027
        %v4029 = vrot.slane %v4022, %v4028
        %v4030 = vpack.c.bf16 %v3974, %v3974
        %v4032 = vunpack.c.l.s4 1983009808
        %v4033 = vunpack.c.0.s8 %v4032
        %v4034 = vlaneseq
        %v4035 = vshrl.u32 %v4034, 7
        %v4036 = vsub.s32 %v4033, %v4035
        %v4037 = vrot.slane %v4030, %v4036
        %v4038 = vcombine.low %v4029, %v4037
        %v4039 = vcombine.high %v4029, %v4037
        %v4041 = vunpack.c.l.s4 1934713408
        %v4042 = vunpack.c.0.s8 %v4041
        %v4043 = vlaneseq
        %v4044 = vshrl.u32 %v4043, 7
        %v4045 = vsub.s32 %v4042, %v4044
        %v4046 = vrot.slane %v4038, %v4045
        %v4048 = vunpack.c.l.s4 1934713408
        %v4049 = vunpack.c.0.s8 %v4048
        %v4050 = vlaneseq
        %v4051 = vshrl.u32 %v4050, 7
        %v4052 = vsub.s32 %v4049, %v4051
        %v4053 = vrot.slane %v4039, %v4052
        %v4054 = vcombine.high %v4046, 0
        %v4055 = vcombine.high %v4053, 0
        %v4056 = vpack.c.bf16 %v3931, %v3931
        %v4058 = vunpack.c.l.s4 1983009808
        %v4059 = vunpack.c.0.s8 %v4058
        %v4060 = vlaneseq
        %v4061 = vshrl.u32 %v4060, 7
        %v4062 = vsub.s32 %v4059, %v4061
        %v4063 = vrot.slane %v4056, %v4062
        %v4064 = vpack.c.bf16 %v4017, %v4017
        %v4066 = vunpack.c.l.s4 1983009808
        %v4067 = vunpack.c.0.s8 %v4066
        %v4068 = vlaneseq
        %v4069 = vshrl.u32 %v4068, 7
        %v4070 = vsub.s32 %v4067, %v4069
        %v4071 = vrot.slane %v4064, %v4070
        %v4072 = vcombine.low %v4063, %v4071
        %v4073 = vcombine.high %v4063, %v4071
        %v4075 = vunpack.c.l.s4 1934713408
        %v4076 = vunpack.c.0.s8 %v4075
        %v4077 = vlaneseq
        %v4078 = vshrl.u32 %v4077, 7
        %v4079 = vsub.s32 %v4076, %v4078
        %v4080 = vrot.slane %v4072, %v4079
        %v4082 = vunpack.c.l.s4 1934713408
        %v4083 = vunpack.c.0.s8 %v4082
        %v4084 = vlaneseq
        %v4085 = vshrl.u32 %v4084, 7
        %v4086 = vsub.s32 %v4083, %v4085
        %v4087 = vrot.slane %v4073, %v4086
        %v4088 = vcombine.high %v4080, 0
        %v4089 = vcombine.high %v4087, 0
        %v4092 = vpack.i.b16 %v4080, %v4046
        %v4094 = vshrl.u32 %v4046, 16
        %v4095 = vshrl.u32 %v4080, 16
        %v4096 = vpack.i.b16 %v4095, %v4094
        %v4100 = vpack.i.b16 %v4088, %v4054
        %v4102 = vshrl.u32 %v4054, 16
        %v4103 = vshrl.u32 %v4088, 16
        %v4104 = vpack.i.b16 %v4103, %v4102
        %v4108 = vpack.i.b16 %v4087, %v4053
        %v4110 = vshrl.u32 %v4053, 16
        %v4111 = vshrl.u32 %v4087, 16
        %v4112 = vpack.i.b16 %v4111, %v4110
        %v4116 = vpack.i.b16 %v4089, %v4055
        %v4118 = vshrl.u32 %v4055, 16
        %v4119 = vshrl.u32 %v4089, 16
        %v4120 = vpack.i.b16 %v4119, %v4118
        %v4122 = vcombine.low %v4092, %v4108
        %v4124 = vunpack.c.l.s4 1983009808
        %v4125 = vunpack.c.0.s8 %v4124
        %v4126 = vlaneseq
        %v4127 = vshrl.u32 %v4126, 7
        %v4128 = vsub.s32 %v4125, %v4127
        %v4129 = vrot.slane %v4122, %v4128
        %v4130 = vcombine.low %v4100, %v4116
        %v4132 = vunpack.c.l.s4 1983009808
        %v4133 = vunpack.c.0.s8 %v4132
        %v4134 = vlaneseq
        %v4135 = vshrl.u32 %v4134, 7
        %v4136 = vsub.s32 %v4133, %v4135
        %v4137 = vrot.slane %v4130, %v4136
        %v4138 = vcombine.low %v4129, %v4137
        %v4140 = vunpack.c.l.s4 1934713408
        %v4141 = vunpack.c.0.s8 %v4140
        %v4142 = vlaneseq
        %v4143 = vshrl.u32 %v4142, 7
        %v4144 = vsub.s32 %v4141, %v4143
        %v4145 = vrot.slane %v4138, %v4144
        %v4146 = vcombine.high %v4145, 0
        %v4147 = vcombine.low %v4096, %v4112
        %v4149 = vunpack.c.l.s4 1983009808
        %v4150 = vunpack.c.0.s8 %v4149
        %v4151 = vlaneseq
        %v4152 = vshrl.u32 %v4151, 7
        %v4153 = vsub.s32 %v4150, %v4152
        %v4154 = vrot.slane %v4147, %v4153
        %v4155 = vcombine.low %v4104, %v4120
        %v4157 = vunpack.c.l.s4 1983009808
        %v4158 = vunpack.c.0.s8 %v4157
        %v4159 = vlaneseq
        %v4160 = vshrl.u32 %v4159, 7
        %v4161 = vsub.s32 %v4158, %v4160
        %v4162 = vrot.slane %v4155, %v4161
        %v4163 = vcombine.low %v4154, %v4162
        %v4165 = vunpack.c.l.s4 1934713408
        %v4166 = vunpack.c.0.s8 %v4165
        %v4167 = vlaneseq
        %v4168 = vshrl.u32 %v4167, 7
        %v4169 = vsub.s32 %v4166, %v4168
        %v4170 = vrot.slane %v4163, %v4169
        %v4171 = vcombine.high %v4170, 0
        %v4174 = vpack.i.b16 %v4170, %v4145
        %v4175 = vshrl.u32 %v4145, 16
        %v4176 = vshrl.u32 %v4170, 16
        %v4177 = vpack.i.b16 %v4176, %v4175
        %v4180 = vpack.i.b16 %v4171, %v4146
        %v4181 = vshrl.u32 %v4146, 16
        %v4182 = vshrl.u32 %v4171, 16
        %v4183 = vpack.i.b16 %v4182, %v4181
        %4184 = vrot.lane.b32.xlu0 %v4177, 8
        %v4185 = vpop.permute.xlu0 %4184
        %4186 = vrot.lane.b32.xlu0 %v4180, 16
        %v4187 = vpop.permute.xlu0 %4186
        %4188 = vrot.lane.b32.xlu0 %v4183, 24
        %v4189 = vpop.permute.xlu0 %4188
        %v4192 = vsel %vm2662, %v4174, %v4185
        %v4194 = vsel %vm3261, %v4192, %v4187
        %v4196 = vsel %vm3264, %v4194, %v4189
        %v4198 = vlaneseq
        %v4199 = vshrl.u32 %v4198, 7
        %v4200 = vsub.s32 0, %v4199
        %v4201 = vrot.slane %v3374, %v4200
        %v4207 = vunpack.c.l.b16 %v3370
        %v4208 = vunpack.c.l.b16 %v3371
        %v4209 = vunpack.c.l.b16 %v3372
        %v4210 = vunpack.c.l.b16 %v3373
        %v4211 = vpack.c.b16 %v4208, %v4207
        %v4212 = vpack.c.b16 %v4210, %v4209
        %v4215 = vsel %vm2449, %v4196, 0
        %4217 = vmatprep.subr.bf16.mxu0 0
        %4218 = vmatpush1.bf16.msra.mxu0 %v4211
        %4219 = vmatprep.subr.bf16.mxu0 0
        %4220 = vmatpush1.bf16.msra.mxu0 %v4212
        %4221 = vmatprep.subr.bf16.mxu0 0
        %4222 = vmatpush1.bf16.msra.mxu0 0
        %4223 = vmatprep.subr.bf16.mxu0 0
        %4224 = vmatpush1.bf16.msra.mxu0 0
        %4225 = vmatprep.subr.bf16.mxu0 0
        %4226 = vmatpush1.bf16.msra.mxu0 0
        %4227 = vmatprep.subr.bf16.mxu0 0
        %4228 = vmatpush1.bf16.msra.mxu0 0
        %4229 = vmatprep.subr.bf16.mxu0 0
        %4230 = vmatpush1.bf16.msra.mxu0 0
        %4231 = vmatprep.subr.bf16.mxu0 0
        %4232 = vmatpush1.bf16.msra.mxu0 0
        %4233 = vmatprep.subr.bf16.mxu0 0
        %4234 = vmatpush1.bf16.msra.mxu0 0
        %4235 = vmatprep.subr.bf16.mxu0 0
        %4236 = vmatpush1.bf16.msra.mxu0 0
        %4237 = vmatprep.subr.bf16.mxu0 0
        %4238 = vmatpush1.bf16.msra.mxu0 0
        %4239 = vmatprep.subr.bf16.mxu0 0
        %4240 = vmatpush1.bf16.msra.mxu0 0
        %4241 = vmatprep.subr.bf16.mxu0 0
        %4242 = vmatpush1.bf16.msra.mxu0 0
        %4243 = vmatprep.subr.bf16.mxu0 0
        %4244 = vmatpush1.bf16.msra.mxu0 0
        %4245 = vmatprep.subr.bf16.mxu0 0
        %4246 = vmatpush1.bf16.msra.mxu0 0
        %4247 = vmatprep.subr.bf16.mxu0 0
        %4248 = vmatpush1.bf16.msra.mxu0 0
        %4249 = vmatprep.mubr.bf16.mxu0 0
        %4250 = vmatmul.mubr.bf16.gmra.mrb[0].mxu0 %v4215
        %v4251 = vpop.f32.mrb[0].mxu0
        %v4252 = vadd.f32 %v4201, %v4251
        %v4253 = vpop.f32.mrb[0].mxu0
        %v4254 = vpop.f32.mrb[0].mxu0
        %v4255 = vpop.f32.mrb[0].mxu0
        %4256 = vdwg.mxu0
        %v4257 = vadd.f32 %v3355, %v4252
        %v4258 = vsel %vm2449, %v4257, 0.0
        %4259 = vadd.xlane.f32.xlu0 %v4258
        %v4260 = vpop.xlane.xlu0 %4259
        %v4261 = vmul.f32 %v4260, %v3331
        %v4262 = vsub.f32 %v4257, %v4261
        %v4263 = vmul.f32 %v4262, %v4262
        %v4264 = vsel %vm2449, %v4263, 0.0
        %4265 = vadd.xlane.f32.xlu0 %v4264
        %v4266 = vpop.xlane.xlu0 %4265
        %v4267 = vmul.f32 %v4266, %v3331
        %v4268 = vadd.f32 %v4267, 1e-05
        %v4269 = vrsqrt.pop %v4268
        %v4270 = vmul.f32 %v4262, %v4269
        %v4272 = vlaneseq
        %v4273 = vshrl.u32 %v4272, 7
        %v4274 = vsub.s32 0, %v4273
        %v4275 = vrot.slane %v3375, %v4274
        %v4277 = vmul.f32 %v4270, %v4275
        %v4279 = vlaneseq
        %v4280 = vshrl.u32 %v4279, 7
        %v4281 = vsub.s32 0, %v4280
        %v4282 = vrot.slane %v3376, %v4281
        %v4284 = vadd.f32 %v4277, %v4282
        %v4285 = vpack.c.bf16 %v4284, %v4284
        %v4286 = vld [vmem:[%s51] sm:$0xf]
        %v4287 = vld [vmem:[%s51 + $0x4] sm:$0xf]
        %v4288 = vld [vmem:[%s51 + $0x8] sm:$0xf]
        %v4289 = vld [vmem:[%s51 + $0xc] sm:$0xf]
        %v4290 = vld [vmem:[%s53] sm:$0x1]
        %v4292 = vlaneseq
        %v4293 = vshrl.u32 %v4292, 7
        %v4294 = vsub.s32 0, %v4293
        %v4295 = vrot.slane %v4290, %v4294
        %v4301 = vunpack.c.l.b16 %v4286
        %v4302 = vunpack.c.l.b16 %v4287
        %v4303 = vunpack.c.l.b16 %v4288
        %v4304 = vunpack.c.l.b16 %v4289
        %v4305 = vpack.c.b16 %v4302, %v4301
        %v4306 = vpack.c.b16 %v4304, %v4303
        %v4310 = vsel %vm2449, %v4285, 0
        %4312 = vmatprep.subr.bf16.mxu0 0
        %4313 = vmatpush1.bf16.msra.mxu0 %v4305
        %4314 = vmatprep.subr.bf16.mxu0 0
        %4315 = vmatpush1.bf16.msra.mxu0 %v4306
        %4316 = vmatprep.subr.bf16.mxu0 0
        %4317 = vmatpush1.bf16.msra.mxu0 0
        %4318 = vmatprep.subr.bf16.mxu0 0
        %4319 = vmatpush1.bf16.msra.mxu0 0
        %4320 = vmatprep.subr.bf16.mxu0 0
        %4321 = vmatpush1.bf16.msra.mxu0 0
        %4322 = vmatprep.subr.bf16.mxu0 0
        %4323 = vmatpush1.bf16.msra.mxu0 0
        %4324 = vmatprep.subr.bf16.mxu0 0
        %4325 = vmatpush1.bf16.msra.mxu0 0
        %4326 = vmatprep.subr.bf16.mxu0 0
        %4327 = vmatpush1.bf16.msra.mxu0 0
        %4328 = vmatprep.subr.bf16.mxu0 0
        %4329 = vmatpush1.bf16.msra.mxu0 0
        %4330 = vmatprep.subr.bf16.mxu0 0
        %4331 = vmatpush1.bf16.msra.mxu0 0
        %4332 = vmatprep.subr.bf16.mxu0 0
        %4333 = vmatpush1.bf16.msra.mxu0 0
        %4334 = vmatprep.subr.bf16.mxu0 0
        %4335 = vmatpush1.bf16.msra.mxu0 0
        %4336 = vmatprep.subr.bf16.mxu0 0
        %4337 = vmatpush1.bf16.msra.mxu0 0
        %4338 = vmatprep.subr.bf16.mxu0 0
        %4339 = vmatpush1.bf16.msra.mxu0 0
        %4340 = vmatprep.subr.bf16.mxu0 0
        %4341 = vmatpush1.bf16.msra.mxu0 0
        %4342 = vmatprep.subr.bf16.mxu0 0
        %4343 = vmatpush1.bf16.msra.mxu0 0
        %4344 = vmatprep.mubr.bf16.mxu0 0
        %4345 = vmatmul.mubr.bf16.gmra.mrb[0].mxu0 %v4310
        %v4346 = vpop.f32.mrb[0].mxu0
        %v4347 = vadd.f32 %v4295, %v4346
        %v4348 = vpop.f32.mrb[0].mxu0
        %v4349 = vpop.f32.mrb[0].mxu0
        %v4350 = vpop.f32.mrb[0].mxu0
        %4351 = vdwg.mxu0
        %v4352 = vmax.f32 %v4347, 0.0
        %v4353 = vpack.c.bf16 %v4352, %v4352
        %v4354 = vld [vmem:[%s55] sm:$0xf]
        %v4355 = vld [vmem:[%s55 + $0x4] sm:$0xf]
        %v4356 = vld [vmem:[%s55 + $0x8] sm:$0xf]
        %v4357 = vld [vmem:[%s55 + $0xc] sm:$0xf]
        %v4358 = vld [vmem:[%s55 + $0x10] sm:$0xf]
        %v4359 = vld [vmem:[%s55 + $0x14] sm:$0xf]
        %v4360 = vld [vmem:[%s55 + $0x18] sm:$0xf]
        %v4361 = vld [vmem:[%s55 + $0x1c] sm:$0xf]
        %v4362 = vld [vmem:[%s55 + $0x20] sm:$0xf]
        %v4363 = vld [vmem:[%s55 + $0x24] sm:$0xf]
        %v4364 = vld [vmem:[%s55 + $0x28] sm:$0xf]
        %v4365 = vld [vmem:[%s55 + $0x2c] sm:$0xf]
        %v4366 = vld [vmem:[%s55 + $0x30] sm:$0xf]
        %v4367 = vld [vmem:[%s55 + $0x34] sm:$0xf]
        %v4368 = vld [vmem:[%s55 + $0x38] sm:$0xf]
        %v4369 = vld [vmem:[%s55 + $0x3c] sm:$0xf]
        %v4370 = vld [vmem:[%s57] sm:$0x1]
        %v4372 = vlaneseq
        %v4373 = vshrl.u32 %v4372, 7
        %v4374 = vsub.s32 0, %v4373
        %v4375 = vrot.slane %v4370, %v4374
        %v4393 = vunpack.c.l.b16 %v4354
        %v4394 = vunpack.c.l.b16 %v4355
        %v4395 = vunpack.c.l.b16 %v4356
        %v4396 = vunpack.c.l.b16 %v4357
        %v4397 = vunpack.c.l.b16 %v4358
        %v4398 = vunpack.c.l.b16 %v4359
        %v4399 = vunpack.c.l.b16 %v4360
        %v4400 = vunpack.c.l.b16 %v4361
        %v4401 = vunpack.c.l.b16 %v4362
        %v4402 = vunpack.c.l.b16 %v4363
        %v4403 = vunpack.c.l.b16 %v4364
        %v4404 = vunpack.c.l.b16 %v4365
        %v4405 = vunpack.c.l.b16 %v4366
        %v4406 = vunpack.c.l.b16 %v4367
        %v4407 = vunpack.c.l.b16 %v4368
        %v4408 = vunpack.c.l.b16 %v4369
        %v4409 = vpack.c.b16 %v4394, %v4393
        %v4410 = vpack.c.b16 %v4396, %v4395
        %v4411 = vpack.c.b16 %v4398, %v4397
        %v4412 = vpack.c.b16 %v4400, %v4399
        %v4413 = vpack.c.b16 %v4402, %v4401
        %v4414 = vpack.c.b16 %v4404, %v4403
        %v4415 = vpack.c.b16 %v4406, %v4405
        %v4416 = vpack.c.b16 %v4408, %v4407
        %4425 = vmatprep.subr.bf16.mxu0 0
        %4426 = vmatpush1.bf16.msra.mxu0 %v4409
        %4427 = vmatprep.subr.bf16.mxu0 0
        %4428 = vmatpush1.bf16.msra.mxu0 %v4410
        %4429 = vmatprep.subr.bf16.mxu0 0
        %4430 = vmatpush1.bf16.msra.mxu0 %v4411
        %4431 = vmatprep.subr.bf16.mxu0 0
        %4432 = vmatpush1.bf16.msra.mxu0 %v4412
        %4433 = vmatprep.subr.bf16.mxu0 0
        %4434 = vmatpush1.bf16.msra.mxu0 %v4413
        %4435 = vmatprep.subr.bf16.mxu0 0
        %4436 = vmatpush1.bf16.msra.mxu0 %v4414
        %4437 = vmatprep.subr.bf16.mxu0 0
        %4438 = vmatpush1.bf16.msra.mxu0 %v4415
        %4439 = vmatprep.subr.bf16.mxu0 0
        %4440 = vmatpush1.bf16.msra.mxu0 %v4416
        %4441 = vmatprep.subr.bf16.mxu0 0
        %4442 = vmatpush1.bf16.msra.mxu0 0
        %4443 = vmatprep.subr.bf16.mxu0 0
        %4444 = vmatpush1.bf16.msra.mxu0 0
        %4445 = vmatprep.subr.bf16.mxu0 0
        %4446 = vmatpush1.bf16.msra.mxu0 0
        %4447 = vmatprep.subr.bf16.mxu0 0
        %4448 = vmatpush1.bf16.msra.mxu0 0
        %4449 = vmatprep.subr.bf16.mxu0 0
        %4450 = vmatpush1.bf16.msra.mxu0 0
        %4451 = vmatprep.subr.bf16.mxu0 0
        %4452 = vmatpush1.bf16.msra.mxu0 0
        %4453 = vmatprep.subr.bf16.mxu0 0
        %4454 = vmatpush1.bf16.msra.mxu0 0
        %4455 = vmatprep.subr.bf16.mxu0 0
        %4456 = vmatpush1.bf16.msra.mxu0 0
        %4457 = vmatprep.mubr.bf16.mxu0 0
        %4458 = vmatmul.mubr.bf16.gmra.mrb[0].mxu0 %v4353
        %v4459 = vpop.f32.mrb[0].mxu0
        %v4460 = vadd.f32 %v4375, %v4459
        %v4461 = vpop.f32.mrb[0].mxu0
        %v4462 = vpop.f32.mrb[0].mxu0
        %v4463 = vpop.f32.mrb[0].mxu0
        %4464 = vdwg.mxu0
        %v4465 = vadd.f32 %v4284, %v4460
        %v4466 = vld [vmem:[%s59] sm:$0x1]
        %v4467 = vld [vmem:[%s61] sm:$0x1]
        %v4468 = vsel %vm2449, %v4465, 0.0
        %4469 = vadd.xlane.f32.xlu0 %v4468
        %v4470 = vpop.xlane.xlu0 %4469
        %v4471 = vmul.f32 %v4470, %v3331
        %v4472 = vsub.f32 %v4465, %v4471
        %v4473 = vmul.f32 %v4472, %v4472
        %v4474 = vsel %vm2449, %v4473, 0.0
        %4475 = vadd.xlane.f32.xlu0 %v4474
        %v4476 = vpop.xlane.xlu0 %4475
        %v4477 = vmul.f32 %v4476, %v3331
        %v4478 = vadd.f32 %v4477, 1e-05
        %v4479 = vrsqrt.pop %v4478
        %v4480 = vmul.f32 %v4472, %v4479
        %v4482 = vlaneseq
        %v4483 = vshrl.u32 %v4482, 7
        %v4484 = vsub.s32 0, %v4483
        %v4485 = vrot.slane %v4466, %v4484
        %v4487 = vmul.f32 %v4480, %v4485
        %v4489 = vlaneseq
        %v4490 = vshrl.u32 %v4489, 7
        %v4491 = vsub.s32 0, %v4490
        %v4492 = vrot.slane %v4467, %v4491
        %v4494 = vadd.f32 %v4487, %v4492
        %4495 = vst.msk [vmem:[%s1204] sm:$0xff] %vm2449, %v4494
        %s4496 = sand.u32 %s788, 1
        %s4497 = scalar_lea.sflag [#allocation8], %s4496
        %s4498 = sand.u32 %s788, 1
        %s4499 = smul.addr %s4498, 8
        %s4500 = scalar_lea.vmem [#allocation27], %s4499
        // Predicated region
        $region201: #{tpu_custom_call.1} parent=143 // pred_check
          %p4501 = pneg %p798
        $region202: #{tpu_custom_call.1} parent=143 // pred_check_branch
          %4503 = sbr.rel (%p4501) target = $region204
        $region203: #{tpu_custom_call.1} parent=143 // pred_region
          %s4505 = ssub.s32 128, 128
          %4506 = vsyncadd %s4497, %s4505
          %s4507 = sadd.s32 %s91, %s90
          %s4508 = smul.addr %s4507, 128
          %s4509 = scalar_lea.hbm %s63, %s4508
          %s4511 = sshll.u32 %s4500, 4
          %s4512 = int_to_ptr.vmem [resolvable:$true] %s4511
          %4514 = dma.vmem_to_hbm [thread:$0]  %s4512, 128, %s4509, %s4497
        $region204: #{tpu_custom_call.1} parent=143 // pred_fallthru
          _
      $region144: #{tpu_custom_call.1} parent=5 // pred_fallthru
        _
      %p4515 = scmp.le.s32.totalorder 2, %s81
      // Predicated region
      $region205: #{tpu_custom_call.1} parent=5 // pred_check
        %p4516 = pneg %p4515
      $region206: #{tpu_custom_call.1} parent=5 // pred_check_branch
        %4518 = sbr.rel (%p4516) target = $region208
      $region207: #{tpu_custom_call.1} parent=5 // pred_region
        %s4519 = ssub.s32 %s81, 2
        // Predicated region
        $region209: #{tpu_custom_call.1} parent=207 // pred_check
          %p4520 = pneg %p804
        $region210: #{tpu_custom_call.1} parent=207 // pred_check_branch
          %4522 = sbr.rel (%p4520) target = $region212
        $region211: #{tpu_custom_call.1} parent=207 // pred_region
          %s4523 = sand.u32 %s789, 1
          %s4524 = scalar_lea.sflag [#allocation8], %s4523
          %s4525 = sand.u32 %s789, 1
          %s4526 = smul.addr %s4525, 8
          %s4527 = scalar_lea.vmem [#allocation27], %s4526
          %4528 = dma.done %s4524, 128
        $region212: #{tpu_custom_call.1} parent=207 // pred_fallthru
          _
      $region208: #{tpu_custom_call.1} parent=5 // pred_fallthru
        _
    $region6: #{tpu_custom_call.1} parent=1 // loop_footer
      %s85 = sadd.s32 1, %s81
    $region7: #{tpu_custom_call.1} parent=1 // loop_footer_branch
      %80 = sbr.rel target = $region3
    $region8: #{tpu_custom_call.1} parent=1 // loop_exit
      _
    %4529 = vsyncpa [#allocation7], 1
    %s4530 = scalar_lea.sflag [#allocation7], 1
    %4531 = vsyncpa %s4530, 1
    %4532 = vsyncpa [#allocation10], 1
    %s4533 = scalar_lea.sflag [#allocation10], 1
    %4534 = vsyncpa %s4533, 1
    %4535 = vsyncpa [#allocation13], 1
    %4536 = vsyncpa [#allocation16], 1
    %4537 = vsyncpa [#allocation19], 1
    %4538 = vsyncpa [#allocation22], 1
    %4539 = vsyncpa [#allocation25], 1
    %4540 = vsyncpa [#allocation8], 1
    %s4541 = scalar_lea.sflag [#allocation8], 1
    %4542 = vsyncpa %s4541, 1

</llo_original>
